<compile_context>
chip_gen: v6e
topology: v6e:2x2x1
jax: 0.10.0
libtpu: 0.0.40
codegen_flags: <defaults>
</compile_context>

<pallas_src>
import jax
import jax.numpy as jnp
from jax.experimental import pallas as pl
from jax.experimental.pallas import tpu as pltpu

EPS = 1e-5
LANE = 128


# ------------------------------- helpers ----------------------------------- #

def _round_up(n, m):
    return ((n + m - 1) // m) * m


def _vmem_limit(block_bytes):
    """Per-call VMEM budget: double-buffered blocks + slack, capped per chip."""
    try:
        phys = int(getattr(pltpu.get_tpu_info(), "vmem_capacity_bytes", 64 << 20))
    except Exception:
        phys = 64 << 20                      # conservative (v7x per-TC) fallback
    cap = min(max(int(phys * 0.6), 16 << 20), 96 << 20)
    return int(min(max(2 * block_bytes + (4 << 20), 16 << 20), cap))


def _fold_bn_params(stats, gamma_p, beta_p, rows_per_tile):
    """Chan-combine per-tile (mean, M2) partials -> per-channel (scale, shift)."""
    means = stats[:, 0, :]                             # (T, CL)
    m2s = stats[:, 1, :]
    t = stats.shape[0]
    total = t * rows_per_tile
    mean = jnp.mean(means, axis=0)                     # equal row counts per tile
    m2 = jnp.sum(m2s, axis=0) + rows_per_tile * jnp.sum((means - mean) ** 2, axis=0)
    var = m2 / total                                   # biased var (PyTorch BN train)
    scale = gamma_p * jax.lax.rsqrt(var + EPS)
    shift = beta_p - mean * scale
    return jnp.stack([scale, shift]).astype(jnp.float32)          # (2, CL)


# ----------------------------- Pallas kernels ------------------------------- #

def _make_conv1_kernel(ho, wo, cin, cl, hp1, mxu_dtype):
    """3x3/s2 conv from stride-2 phase slabs + per-image partial BN stats."""
    mo = ho * wo

    def kernel(ph_ref, w_ref, acc_ref, stats_ref):
        acc = jnp.zeros((mo, cl), jnp.float32)
        for kh in range(3):
            for kw in range(3):
                p = 2 * (kh % 2) + (kw % 2)            # phase index
                r0 = p * hp1 + kh // 2                 # row into stacked phases
                c0 = kw // 2
                tap = ph_ref[pl.ds(r0, ho), pl.ds(c0, wo), :]      # (ho, wo, cin)
                tap = tap.reshape(mo, cin).astype(mxu_dtype)
                acc = acc + jnp.dot(tap, w_ref[kh * 3 + kw],
                                    preferred_element_type=jnp.float32)
        acc_ref[...] = acc.astype(acc_ref.dtype)       # bf16 accumulator to HBM
        mean = jnp.sum(acc, axis=0, keepdims=True) * (1.0 / mo)
        stats_ref[0:1, :] = mean
        stats_ref[1:2, :] = jnp.sum((acc - mean) ** 2, axis=0, keepdims=True)

    return kernel


def _make_conv2_kernel(ho, wo, cl, mxu_dtype):
    """BN1+ReLU (in-kernel) -> 3x3/s1 conv + per-image partial BN stats."""
    mo = ho * wo
    hp2, wp2 = ho + 2, wo + 2

    def kernel(a1_ref, ss_ref, w_ref, acc_ref, stats_ref):
        scale = ss_ref[0:1, :].reshape(1, 1, cl)
        shift = ss_ref[1:2, :].reshape(1, 1, cl)
        a = a1_ref[...].astype(jnp.float32)            # padded conv1 acc (hp2,wp2,cl)
        y = jnp.maximum(a * scale + shift, 0.0)        # BN1 + ReLU
        ri = jax.lax.broadcasted_iota(jnp.int32, (hp2, wp2, cl), 0)
        ci = jax.lax.broadcasted_iota(jnp.int32, (hp2, wp2, cl), 1)
        interior = (ri >= 1) & (ri <= ho) & (ci >= 1) & (ci <= wo)
        y = jnp.where(interior, y, 0.0)                # zero halo ring ("same" pad)

        acc = jnp.zeros((mo, cl), jnp.float32)
        for kh in range(3):
            for kw in range(3):
                tap = y[kh:kh + ho, kw:kw + wo, :]     # (ho, wo, cl)
                tap = tap.reshape(mo, cl).astype(mxu_dtype)
                acc = acc + jnp.dot(tap, w_ref[kh * 3 + kw],
                                    preferred_element_type=jnp.float32)
        acc_ref[...] = acc.astype(acc_ref.dtype)
        mean = jnp.sum(acc, axis=0, keepdims=True) * (1.0 / mo)
        stats_ref[0:1, :] = mean
        stats_ref[1:2, :] = jnp.sum((acc - mean) ** 2, axis=0, keepdims=True)

    return kernel


def _make_bn_shortcut_kernel():
    """y = relu(acc2*scale + shift + xs @ Wsc): BN2-apply + 1x1/s2 shortcut."""

    def kernel(acc_ref, xs_ref, ss_ref, wsc_ref, out_ref):
        sc = jnp.dot(xs_ref[...], wsc_ref[...], preferred_element_type=jnp.float32)
        y = acc_ref[...].astype(jnp.float32) * ss_ref[0:1, :] + ss_ref[1:2, :] + sc
        out_ref[...] = jnp.maximum(y, 0.0).astype(out_ref.dtype)

    return kernel


# --------------------------- pallas_call wrappers --------------------------- #

def _conv1_call(phases, w1p, *, ho, wo, cl, mxu_dtype):
    n = phases.shape[0]
    cin = phases.shape[-1]
    hp1, wp1 = ho + 1, wo + 1
    mo = ho * wo
    block_bytes = (4 * hp1 * wp1 * cin * 4 + 9 * cin * cl * 2
                   + mo * cl * 2 + 2 * cl * 4)
    return pl.pallas_call(
        _make_conv1_kernel(ho, wo, cin, cl, hp1, mxu_dtype),
        out_shape=(jax.ShapeDtypeStruct((n, mo, cl), mxu_dtype),
                   jax.ShapeDtypeStruct((n, 2, cl), jnp.float32)),
        grid=(n,),
        in_specs=[pl.BlockSpec((None, 4 * hp1, wp1, cin), lambda i: (i, 0, 0, 0)),
                  pl.BlockSpec((9, cin, cl), lambda i: (0, 0, 0))],
        out_specs=(pl.BlockSpec((None, mo, cl), lambda i: (i, 0, 0)),
                   pl.BlockSpec((None, 2, cl), lambda i: (i, 0, 0))),
        compiler_params=pltpu.CompilerParams(
            dimension_semantics=("parallel",),
            vmem_limit_bytes=_vmem_limit(block_bytes)),
        cost_estimate=pl.CostEstimate(
            flops=2 * n * mo * 9 * cin * cl, transcendentals=0,
            bytes_accessed=(phases.size * 4 + 9 * cin * cl * 2
                            + n * mo * cl * 2 + n * 2 * cl * 4)),
    )(phases, w1p)


def _conv2_call(acc1p, ss1, w2p, *, ho, wo, cl, mxu_dtype):
    n = acc1p.shape[0]
    hp2, wp2 = ho + 2, wo + 2
    mo = ho * wo
    block_bytes = (hp2 * wp2 * cl * 2 + 2 * cl * 4 + 9 * cl * cl * 2
                   + mo * cl * 2 + 2 * cl * 4 + hp2 * wp2 * cl * 4)
    return pl.pallas_call(
        _make_conv2_kernel(ho, wo, cl, mxu_dtype),
        out_shape=(jax.ShapeDtypeStruct((n, mo, cl), mxu_dtype),
                   jax.ShapeDtypeStruct((n, 2, cl), jnp.float32)),
        grid=(n,),
        in_specs=[pl.BlockSpec((None, hp2, wp2, cl), lambda i: (i, 0, 0, 0)),
                  pl.BlockSpec((2, cl), lambda i: (0, 0)),
                  pl.BlockSpec((9, cl, cl), lambda i: (0, 0, 0))],
        out_specs=(pl.BlockSpec((None, mo, cl), lambda i: (i, 0, 0)),
                   pl.BlockSpec((None, 2, cl), lambda i: (i, 0, 0))),
        compiler_params=pltpu.CompilerParams(
            dimension_semantics=("parallel",),
            vmem_limit_bytes=_vmem_limit(block_bytes)),
        cost_estimate=pl.CostEstimate(
            flops=2 * n * mo * 9 * cl * cl, transcendentals=0,
            bytes_accessed=(acc1p.size * 2 + 9 * cl * cl * 2
                            + n * mo * cl * 2 + n * 2 * cl * 4)),
    )(acc1p, ss1, w2p)


def _bn_shortcut_call(acc2, xs, ss2, wscp, *, cl):
    n, mo, _ = acc2.shape
    cin = xs.shape[-1]
    block_bytes = (mo * cl * 2 + mo * cin * 2 + 2 * cl * 4
                   + cin * cl * 2 + mo * cl * 4)
    return pl.pallas_call(
        _make_bn_shortcut_kernel(),
        out_shape=jax.ShapeDtypeStruct((n, mo, cl), jnp.float32),
        grid=(n,),
        in_specs=[pl.BlockSpec((None, mo, cl), lambda i: (i, 0, 0)),
                  pl.BlockSpec((None, mo, cin), lambda i: (i, 0, 0)),
                  pl.BlockSpec((2, cl), lambda i: (0, 0)),
                  pl.BlockSpec((cin, cl), lambda i: (0, 0))],
        out_specs=pl.BlockSpec((None, mo, cl), lambda i: (i, 0, 0)),
        compiler_params=pltpu.CompilerParams(
            dimension_semantics=("parallel",),
            vmem_limit_bytes=_vmem_limit(block_bytes)),
        cost_estimate=pl.CostEstimate(
            flops=2 * n * mo * cin * cl + 4 * n * mo * cl, transcendentals=0,
            bytes_accessed=acc2.size * 2 + xs.size * 2 + n * mo * cl * 4),
    )(acc2, xs, ss2, wscp)


# --------------------------------- glue ------------------------------------- #

def res_block_type2(x_nchw, params, *, mxu_dtype=jnp.bfloat16):
    w1, g1, b1, w2, g2, b2, wsc = params
    x = jnp.transpose(x_nchw, (0, 2, 3, 1)).astype(jnp.float32)    # NCHW -> NHWC
    n, h, w, cin = x.shape
    cout = w1.shape[-1]
    assert h % 2 == 0 and w % 2 == 0, "stride-2 block expects even spatial dims"
    ho, wo = h // 2, w // 2
    mo = ho * wo
    cl = _round_up(cout, LANE)                 # lane-dense output channel band
    # TODO(synk): for small Cout on v6e/v7x, pack two 128-lane bands (or pad to
    # 256) to fully fill the 2x256x256 MXU; ResNet-scale Cout gets this for free.

    pad_c = cl - cout
    g1p = jnp.pad(g1.reshape(-1).astype(jnp.float32), (0, pad_c))
    b1p = jnp.pad(b1.reshape(-1).astype(jnp.float32), (0, pad_c))
    g2p = jnp.pad(g2.reshape(-1).astype(jnp.float32), (0, pad_c))
    b2p = jnp.pad(b2.reshape(-1).astype(jnp.float32), (0, pad_c))

    w1p = jnp.pad(w1.reshape(9, cin, cout).astype(jnp.float32),
                  ((0, 0), (0, 0), (0, pad_c))).astype(mxu_dtype)
    w2p = jnp.pad(w2.reshape(9, cout, cout).astype(jnp.float32),
                  ((0, 0), (0, pad_c), (0, pad_c))).astype(mxu_dtype)
    wscp = jnp.pad(wsc.astype(jnp.float32), ((0, 0), (0, pad_c))).astype(mxu_dtype)

    # ---- conv1 (3x3/s2/p1): stride-2 phase slabs replace the 9x im2col ------
    hp1, wp1 = ho + 1, wo + 1
    xp = jnp.pad(x, ((0, 0), (1, 1), (1, 1), (0, 0)))
    phases = jnp.concatenate(
        [xp[:, a::2, b::2, :] for a in (0, 1) for b in (0, 1)], axis=1)
    # phases: (N, 4*(Ho+1), Wo+1, Cin) f32 -- ~1x input bytes.

    acc1, st1 = _conv1_call(phases, w1p, ho=ho, wo=wo, cl=cl, mxu_dtype=mxu_dtype)
    ss1 = _fold_bn_params(st1, g1p, b1p, mo)

    # ---- conv2 (3x3/s1/p1) with BN1+ReLU fused in-kernel ---------------------
    acc1p = jnp.pad(acc1.reshape(n, ho, wo, cl), ((0, 0), (1, 1), (1, 1), (0, 0)))
    acc2, st2 = _conv2_call(acc1p, ss1, w2p, ho=ho, wo=wo, cl=cl, mxu_dtype=mxu_dtype)
    ss2 = _fold_bn_params(st2, g2p, b2p, mo)

    # ---- BN2-apply + un-fused 1x1/s2 shortcut + ReLU --------------------------
    xs = x[:, ::2, ::2, :].reshape(n, mo, cin).astype(mxu_dtype)
    out = _bn_shortcut_call(acc2, xs, ss2, wscp, cl=cl)          # (N, Mo, CL) f32

    out = out[:, :, :cout].reshape(n, ho, wo, cout)
    return jnp.transpose(out, (0, 3, 1, 2))                      # back to NCHW


# --------------------------- Pure-XLA reference ----------------------------- #

def _bn_ref(y, g, b):
    mean = y.mean(axis=(0, 1, 2), keepdims=True)
    var = ((y - mean) ** 2).mean(axis=(0, 1, 2), keepdims=True)
    return ((y - mean) * jax.lax.rsqrt(var + EPS) * g.reshape(1, 1, 1, -1)
            + b.reshape(1, 1, 1, -1))


def reference(x_nchw, params, conv_dtype=jnp.bfloat16):
    """XLA reference with the same MXU-input precision policy (bf16 in, f32 acc)."""
    w1, g1, b1, w2, g2, b2, wsc = params
    x = jnp.transpose(x_nchw, (0, 2, 3, 1)).astype(jnp.float32)
    dn = ('NHWC', 'HWIO', 'NHWC')

    def conv(lhs, rhs, stride, pad):
        return jax.lax.conv_general_dilated(
            lhs.astype(conv_dtype), rhs.astype(conv_dtype), (stride, stride), pad,
            dimension_numbers=dn, preferred_element_type=jnp.float32)

    c1 = conv(x, w1, 2, ((1, 1), (1, 1)))
    y1 = jnp.maximum(_bn_ref(c1, g1, b1), 0.0).astype(conv_dtype)
    c2 = conv(y1, w2, 1, ((1, 1), (1, 1)))
    y2 = _bn_ref(c2, g2, b2)
    sc = conv(x, wsc.reshape(1, 1, *wsc.shape), 2, ((0, 0), (0, 0)))
    out = jnp.maximum(y2 + sc, 0.0)
    return jnp.transpose(out, (0, 3, 1, 2))


# ---------------------------------- main ------------------------------------ #

if __name__ == "__main__":
    N, Cin, H, W, Cout = 2, 4, 16, 16, 8

    key = jax.random.PRNGKey(0)
    k1, k2, k3, kx = jax.random.split(key, 4)
    x = jax.random.normal(kx, (N, Cin, H, W), jnp.float32)

    # Conv weights HWIO; BN gamma=1 / beta=0 (PyTorch default init); no conv bias.
    w1 = jax.random.normal(k1, (3, 3, Cin, Cout), jnp.float32) * 0.1
    w2 = jax.random.normal(k2, (3, 3, Cout, Cout), jnp.float32) * 0.1
    wsc = jax.random.normal(k3, (Cin, Cout), jnp.float32) * 0.1
    g1 = jnp.ones((Cout,), jnp.float32); b1 = jnp.zeros((Cout,), jnp.float32)
    g2 = jnp.ones((Cout,), jnp.float32); b2 = jnp.zeros((Cout,), jnp.float32)
    params = (w1, g1, b1, w2, g2, b2, wsc)

    fwd = jax.jit(res_block_type2)
    out = jax.block_until_ready(fwd(x, params))
    ref = jax.block_until_ready(reference(x, params))

    assert out.shape == (N, Cout, H // 2, W // 2), out.shape
    assert bool(jnp.all(jnp.isfinite(out))), "non-finite output"
    # bf16 MXU operands + bf16 accumulator storage (f32 stats / BN math) -> a
    # slightly looser bound than pure-f32 accumulation, vs a reference using the
    # same bf16-input precision policy.
    assert jnp.allclose(out, ref, atol=3e-2, rtol=3e-2), (
        f"mismatch vs reference (max abs err {jnp.max(jnp.abs(out - ref))})")
    print("KERNEL_OK")
</pallas_src>

<mosaic_0001>
module attributes {stable_mosaic.version = 11 : i64} {
  func.func @kernel(%arg0: i32, %arg1: memref<1x36x9x4xf32, #tpu.memory_space<vmem>>, %arg2: memref<9x4x128xbf16, #tpu.memory_space<vmem>>, %arg3: memref<1x64x128xbf16, #tpu.memory_space<vmem>>, %arg4: memref<1x2x128xf32, #tpu.memory_space<vmem>>) attributes {dimension_semantics = [#tpu.dimension_semantics<parallel>], iteration_bounds = array<i64: 2>, scalar_prefetch = 0 : i64, scratch_operands = 0 : i64, tpu.core_type = #tpu.core_type<tc>, window_params = [{transform_indices = @transform_0, window_bounds = array<i64: 1, 36, 9, 4>}, {pipeline_mode = #tpu.pipeline_mode<synchronous>, transform_indices = @transform_1, window_bounds = array<i64: 9, 4, 128>}, {transform_indices = @transform_2, window_bounds = array<i64: 1, 64, 128>}, {transform_indices = @transform_3, window_bounds = array<i64: 1, 2, 128>}]} {
    %cst = arith.constant 0.000000e+00 : f32
    %0 = vector.broadcast %cst : f32 to vector<64x128xf32>
    %c0 = arith.constant 0 : index
    %c0_0 = arith.constant 0 : index
    %c0_1 = arith.constant 0 : index
    %c0_2 = arith.constant 0 : index
    %1 = vector.load %arg1[%c0, %c0_0, %c0_1, %c0_2] : memref<1x36x9x4xf32, #tpu.memory_space<vmem>>, vector<1x8x8x4xf32>
    %2 = vector.shape_cast %1 : vector<1x8x8x4xf32> to vector<8x8x4xf32>
    %3 = vector.shape_cast %2 : vector<8x8x4xf32> to vector<64x4xf32>
    %4 = arith.truncf %3 : vector<64x4xf32> to vector<64x4xbf16>
    %c0_3 = arith.constant 0 : index
    %c0_4 = arith.constant 0 : index
    %c0_5 = arith.constant 0 : index
    %5 = vector.load %arg2[%c0_3, %c0_4, %c0_5] : memref<9x4x128xbf16, #tpu.memory_space<vmem>>, vector<1x4x128xbf16>
    %6 = vector.shape_cast %5 : vector<1x4x128xbf16> to vector<4x128xbf16>
    %cst_6 = arith.constant dense<0.000000e+00> : vector<64x128xf32>
    %7 = tpu.matmul %4, %6, %cst_6 {dimension_numbers = #tpu.dot_dimension_numbers<[1], [0], [0], [1], [0, 0, 1, 1], [], []>} : vector<64x4xbf16>, vector<4x128xbf16>, vector<64x128xf32> -> vector<64x128xf32>
    %8 = arith.addf %0, %7 : vector<64x128xf32>
    %c0_7 = arith.constant 0 : index
    %c9 = arith.constant 9 : index
    %c0_8 = arith.constant 0 : index
    %c0_9 = arith.constant 0 : index
    %9 = vector.load %arg1[%c0_7, %c9, %c0_8, %c0_9] : memref<1x36x9x4xf32, #tpu.memory_space<vmem>>, vector<1x8x8x4xf32>
    %10 = vector.shape_cast %9 : vector<1x8x8x4xf32> to vector<8x8x4xf32>
    %11 = vector.shape_cast %10 : vector<8x8x4xf32> to vector<64x4xf32>
    %12 = arith.truncf %11 : vector<64x4xf32> to vector<64x4xbf16>
    %c1 = arith.constant 1 : index
    %c0_10 = arith.constant 0 : index
    %c0_11 = arith.constant 0 : index
    %13 = vector.load %arg2[%c1, %c0_10, %c0_11] : memref<9x4x128xbf16, #tpu.memory_space<vmem>>, vector<1x4x128xbf16>
    %14 = vector.shape_cast %13 : vector<1x4x128xbf16> to vector<4x128xbf16>
    %cst_12 = arith.constant dense<0.000000e+00> : vector<64x128xf32>
    %15 = tpu.matmul %12, %14, %cst_12 {dimension_numbers = #tpu.dot_dimension_numbers<[1], [0], [0], [1], [0, 0, 1, 1], [], []>} : vector<64x4xbf16>, vector<4x128xbf16>, vector<64x128xf32> -> vector<64x128xf32>
    %16 = arith.addf %8, %15 : vector<64x128xf32>
    %c0_13 = arith.constant 0 : index
    %c0_14 = arith.constant 0 : index
    %c1_15 = arith.constant 1 : index
    %c0_16 = arith.constant 0 : index
    %17 = vector.load %arg1[%c0_13, %c0_14, %c1_15, %c0_16] : memref<1x36x9x4xf32, #tpu.memory_space<vmem>>, vector<1x8x8x4xf32>
    %18 = vector.shape_cast %17 : vector<1x8x8x4xf32> to vector<8x8x4xf32>
    %19 = vector.shape_cast %18 : vector<8x8x4xf32> to vector<64x4xf32>
    %20 = arith.truncf %19 : vector<64x4xf32> to vector<64x4xbf16>
    %c2 = arith.constant 2 : index
    %c0_17 = arith.constant 0 : index
    %c0_18 = arith.constant 0 : index
    %21 = vector.load %arg2[%c2, %c0_17, %c0_18] : memref<9x4x128xbf16, #tpu.memory_space<vmem>>, vector<1x4x128xbf16>
    %22 = vector.shape_cast %21 : vector<1x4x128xbf16> to vector<4x128xbf16>
    %cst_19 = arith.constant dense<0.000000e+00> : vector<64x128xf32>
    %23 = tpu.matmul %20, %22, %cst_19 {dimension_numbers = #tpu.dot_dimension_numbers<[1], [0], [0], [1], [0, 0, 1, 1], [], []>} : vector<64x4xbf16>, vector<4x128xbf16>, vector<64x128xf32> -> vector<64x128xf32>
    %24 = arith.addf %16, %23 : vector<64x128xf32>
    %c0_20 = arith.constant 0 : index
    %c18 = arith.constant 18 : index
    %c0_21 = arith.constant 0 : index
    %c0_22 = arith.constant 0 : index
    %25 = vector.load %arg1[%c0_20, %c18, %c0_21, %c0_22] : memref<1x36x9x4xf32, #tpu.memory_space<vmem>>, vector<1x8x8x4xf32>
    %26 = vector.shape_cast %25 : vector<1x8x8x4xf32> to vector<8x8x4xf32>
    %27 = vector.shape_cast %26 : vector<8x8x4xf32> to vector<64x4xf32>
    %28 = arith.truncf %27 : vector<64x4xf32> to vector<64x4xbf16>
    %c3 = arith.constant 3 : index
    %c0_23 = arith.constant 0 : index
    %c0_24 = arith.constant 0 : index
    %29 = vector.load %arg2[%c3, %c0_23, %c0_24] : memref<9x4x128xbf16, #tpu.memory_space<vmem>>, vector<1x4x128xbf16>
    %30 = vector.shape_cast %29 : vector<1x4x128xbf16> to vector<4x128xbf16>
    %cst_25 = arith.constant dense<0.000000e+00> : vector<64x128xf32>
    %31 = tpu.matmul %28, %30, %cst_25 {dimension_numbers = #tpu.dot_dimension_numbers<[1], [0], [0], [1], [0, 0, 1, 1], [], []>} : vector<64x4xbf16>, vector<4x128xbf16>, vector<64x128xf32> -> vector<64x128xf32>
    %32 = arith.addf %24, %31 : vector<64x128xf32>
    %c0_26 = arith.constant 0 : index
    %c27 = arith.constant 27 : index
    %c0_27 = arith.constant 0 : index
    %c0_28 = arith.constant 0 : index
    %33 = vector.load %arg1[%c0_26, %c27, %c0_27, %c0_28] : memref<1x36x9x4xf32, #tpu.memory_space<vmem>>, vector<1x8x8x4xf32>
    %34 = vector.shape_cast %33 : vector<1x8x8x4xf32> to vector<8x8x4xf32>
    %35 = vector.shape_cast %34 : vector<8x8x4xf32> to vector<64x4xf32>
    %36 = arith.truncf %35 : vector<64x4xf32> to vector<64x4xbf16>
    %c4 = arith.constant 4 : index
    %c0_29 = arith.constant 0 : index
    %c0_30 = arith.constant 0 : index
    %37 = vector.load %arg2[%c4, %c0_29, %c0_30] : memref<9x4x128xbf16, #tpu.memory_space<vmem>>, vector<1x4x128xbf16>
    %38 = vector.shape_cast %37 : vector<1x4x128xbf16> to vector<4x128xbf16>
    %cst_31 = arith.constant dense<0.000000e+00> : vector<64x128xf32>
    %39 = tpu.matmul %36, %38, %cst_31 {dimension_numbers = #tpu.dot_dimension_numbers<[1], [0], [0], [1], [0, 0, 1, 1], [], []>} : vector<64x4xbf16>, vector<4x128xbf16>, vector<64x128xf32> -> vector<64x128xf32>
    %40 = arith.addf %32, %39 : vector<64x128xf32>
    %c0_32 = arith.constant 0 : index
    %c18_33 = arith.constant 18 : index
    %c1_34 = arith.constant 1 : index
    %c0_35 = arith.constant 0 : index
    %41 = vector.load %arg1[%c0_32, %c18_33, %c1_34, %c0_35] : memref<1x36x9x4xf32, #tpu.memory_space<vmem>>, vector<1x8x8x4xf32>
    %42 = vector.shape_cast %41 : vector<1x8x8x4xf32> to vector<8x8x4xf32>
    %43 = vector.shape_cast %42 : vector<8x8x4xf32> to vector<64x4xf32>
    %44 = arith.truncf %43 : vector<64x4xf32> to vector<64x4xbf16>
    %c5 = arith.constant 5 : index
    %c0_36 = arith.constant 0 : index
    %c0_37 = arith.constant 0 : index
    %45 = vector.load %arg2[%c5, %c0_36, %c0_37] : memref<9x4x128xbf16, #tpu.memory_space<vmem>>, vector<1x4x128xbf16>
    %46 = vector.shape_cast %45 : vector<1x4x128xbf16> to vector<4x128xbf16>
    %cst_38 = arith.constant dense<0.000000e+00> : vector<64x128xf32>
    %47 = tpu.matmul %44, %46, %cst_38 {dimension_numbers = #tpu.dot_dimension_numbers<[1], [0], [0], [1], [0, 0, 1, 1], [], []>} : vector<64x4xbf16>, vector<4x128xbf16>, vector<64x128xf32> -> vector<64x128xf32>
    %48 = arith.addf %40, %47 : vector<64x128xf32>
    %c0_39 = arith.constant 0 : index
    %c1_40 = arith.constant 1 : index
    %c0_41 = arith.constant 0 : index
    %c0_42 = arith.constant 0 : index
    %49 = vector.load %arg1[%c0_39, %c1_40, %c0_41, %c0_42] : memref<1x36x9x4xf32, #tpu.memory_space<vmem>>, vector<1x8x8x4xf32>
    %50 = vector.shape_cast %49 : vector<1x8x8x4xf32> to vector<8x8x4xf32>
    %51 = vector.shape_cast %50 : vector<8x8x4xf32> to vector<64x4xf32>
    %52 = arith.truncf %51 : vector<64x4xf32> to vector<64x4xbf16>
    %c6 = arith.constant 6 : index
    %c0_43 = arith.constant 0 : index
    %c0_44 = arith.constant 0 : index
    %53 = vector.load %arg2[%c6, %c0_43, %c0_44] : memref<9x4x128xbf16, #tpu.memory_space<vmem>>, vector<1x4x128xbf16>
    %54 = vector.shape_cast %53 : vector<1x4x128xbf16> to vector<4x128xbf16>
    %cst_45 = arith.constant dense<0.000000e+00> : vector<64x128xf32>
    %55 = tpu.matmul %52, %54, %cst_45 {dimension_numbers = #tpu.dot_dimension_numbers<[1], [0], [0], [1], [0, 0, 1, 1], [], []>} : vector<64x4xbf16>, vector<4x128xbf16>, vector<64x128xf32> -> vector<64x128xf32>
    %56 = arith.addf %48, %55 : vector<64x128xf32>
    %c0_46 = arith.constant 0 : index
    %c10 = arith.constant 10 : index
    %c0_47 = arith.constant 0 : index
    %c0_48 = arith.constant 0 : index
    %57 = vector.load %arg1[%c0_46, %c10, %c0_47, %c0_48] : memref<1x36x9x4xf32, #tpu.memory_space<vmem>>, vector<1x8x8x4xf32>
    %58 = vector.shape_cast %57 : vector<1x8x8x4xf32> to vector<8x8x4xf32>
    %59 = vector.shape_cast %58 : vector<8x8x4xf32> to vector<64x4xf32>
    %60 = arith.truncf %59 : vector<64x4xf32> to vector<64x4xbf16>
    %c7 = arith.constant 7 : index
    %c0_49 = arith.constant 0 : index
    %c0_50 = arith.constant 0 : index
    %61 = vector.load %arg2[%c7, %c0_49, %c0_50] : memref<9x4x128xbf16, #tpu.memory_space<vmem>>, vector<1x4x128xbf16>
    %62 = vector.shape_cast %61 : vector<1x4x128xbf16> to vector<4x128xbf16>
    %cst_51 = arith.constant dense<0.000000e+00> : vector<64x128xf32>
    %63 = tpu.matmul %60, %62, %cst_51 {dimension_numbers = #tpu.dot_dimension_numbers<[1], [0], [0], [1], [0, 0, 1, 1], [], []>} : vector<64x4xbf16>, vector<4x128xbf16>, vector<64x128xf32> -> vector<64x128xf32>
    %64 = arith.addf %56, %63 : vector<64x128xf32>
    %c0_52 = arith.constant 0 : index
    %c1_53 = arith.constant 1 : index
    %c1_54 = arith.constant 1 : index
    %c0_55 = arith.constant 0 : index
    %65 = vector.load %arg1[%c0_52, %c1_53, %c1_54, %c0_55] : memref<1x36x9x4xf32, #tpu.memory_space<vmem>>, vector<1x8x8x4xf32>
    %66 = vector.shape_cast %65 : vector<1x8x8x4xf32> to vector<8x8x4xf32>
    %67 = vector.shape_cast %66 : vector<8x8x4xf32> to vector<64x4xf32>
    %68 = arith.truncf %67 : vector<64x4xf32> to vector<64x4xbf16>
    %c8 = arith.constant 8 : index
    %c0_56 = arith.constant 0 : index
    %c0_57 = arith.constant 0 : index
    %69 = vector.load %arg2[%c8, %c0_56, %c0_57] : memref<9x4x128xbf16, #tpu.memory_space<vmem>>, vector<1x4x128xbf16>
    %70 = vector.shape_cast %69 : vector<1x4x128xbf16> to vector<4x128xbf16>
    %cst_58 = arith.constant dense<0.000000e+00> : vector<64x128xf32>
    %71 = tpu.matmul %68, %70, %cst_58 {dimension_numbers = #tpu.dot_dimension_numbers<[1], [0], [0], [1], [0, 0, 1, 1], [], []>} : vector<64x4xbf16>, vector<4x128xbf16>, vector<64x128xf32> -> vector<64x128xf32>
    %72 = arith.addf %64, %71 : vector<64x128xf32>
    %73 = arith.truncf %72 : vector<64x128xf32> to vector<64x128xbf16>
    %c0_59 = arith.constant 0 : index
    %c0_60 = arith.constant 0 : index
    %c0_61 = arith.constant 0 : index
    %74 = vector.load %arg3[%c0_59, %c0_60, %c0_61] : memref<1x64x128xbf16, #tpu.memory_space<vmem>>, vector<1x64x128xbf16>
    %75 = vector.shape_cast %74 : vector<1x64x128xbf16> to vector<64x128xbf16>
    %76 = vector.shape_cast %73 : vector<64x128xbf16> to vector<1x64x128xbf16>
    tpu.vector_store %arg3[%c0_59, %c0_60, %c0_61], %76 {strides = array<i32>} : memref<1x64x128xbf16, #tpu.memory_space<vmem>>, vector<1x64x128xbf16>,
    %cst_62 = arith.constant dense<0.000000e+00> : vector<128xf32>
    %77 = vector.multi_reduction <add>, %72, %cst_62 [0] : vector<64x128xf32> to vector<128xf32>
    %78 = vector.shape_cast %77 : vector<128xf32> to vector<1x128xf32>
    %cst_63 = arith.constant 1.562500e-02 : f32
    %79 = vector.broadcast %cst_63 : f32 to vector<1x128xf32>
    %80 = arith.mulf %78, %79 : vector<1x128xf32>
    %c0_64 = arith.constant 0 : index
    %c0_65 = arith.constant 0 : index
    %c0_66 = arith.constant 0 : index
    %81 = vector.load %arg4[%c0_64, %c0_65, %c0_66] : memref<1x2x128xf32, #tpu.memory_space<vmem>>, vector<1x1x128xf32>
    %82 = vector.shape_cast %81 : vector<1x1x128xf32> to vector<1x128xf32>
    %83 = vector.shape_cast %80 : vector<1x128xf32> to vector<1x1x128xf32>
    tpu.vector_store %arg4[%c0_64, %c0_65, %c0_66], %83 {strides = array<i32>} : memref<1x2x128xf32, #tpu.memory_space<vmem>>, vector<1x1x128xf32>,
    %84 = vector.broadcast %80 : vector<1x128xf32> to vector<64x128xf32>
    %85 = arith.subf %72, %84 : vector<64x128xf32>
    %86 = arith.mulf %85, %85 : vector<64x128xf32>
    %cst_67 = arith.constant dense<0.000000e+00> : vector<128xf32>
    %87 = vector.multi_reduction <add>, %86, %cst_67 [0] : vector<64x128xf32> to vector<128xf32>
    %88 = vector.shape_cast %87 : vector<128xf32> to vector<1x128xf32>
    %c0_68 = arith.constant 0 : index
    %c1_69 = arith.constant 1 : index
    %c0_70 = arith.constant 0 : index
    %89 = vector.load %arg4[%c0_68, %c1_69, %c0_70] : memref<1x2x128xf32, #tpu.memory_space<vmem>>, vector<1x1x128xf32>
    %90 = vector.shape_cast %89 : vector<1x1x128xf32> to vector<1x128xf32>
    %91 = vector.shape_cast %88 : vector<1x128xf32> to vector<1x1x128xf32>
    tpu.vector_store %arg4[%c0_68, %c1_69, %c0_70], %91 {strides = array<i32>} : memref<1x2x128xf32, #tpu.memory_space<vmem>>, vector<1x1x128xf32>,
    return
  }
  func.func @transform_0(%arg0: i32) -> (i32, i32, i32, i32) {
    %c0_i32 = arith.constant 0 : i32
    %c0_i32_0 = arith.constant 0 : i32
    %c0_i32_1 = arith.constant 0 : i32
    %c0_i32_2 = arith.constant 0 : i32
    return %arg0, %c0_i32, %c0_i32_0, %c0_i32_1 : i32, i32, i32, i32
  }
  func.func @transform_1(%arg0: i32) -> (i32, i32, i32) {
    %c0_i32 = arith.constant 0 : i32
    %c0_i32_0 = arith.constant 0 : i32
    %c0_i32_1 = arith.constant 0 : i32
    %c0_i32_2 = arith.constant 0 : i32
    return %c0_i32, %c0_i32_0, %c0_i32_1 : i32, i32, i32
  }
  func.func @transform_2(%arg0: i32) -> (i32, i32, i32) {
    %c0_i32 = arith.constant 0 : i32
    %c0_i32_0 = arith.constant 0 : i32
    %c0_i32_1 = arith.constant 0 : i32
    return %arg0, %c0_i32, %c0_i32_0 : i32, i32, i32
  }
  func.func @transform_3(%arg0: i32) -> (i32, i32, i32) {
    %c0_i32 = arith.constant 0 : i32
    %c0_i32_0 = arith.constant 0 : i32
    %c0_i32_1 = arith.constant 0 : i32
    return %arg0, %c0_i32, %c0_i32_0 : i32, i32, i32
  }
}

module attributes {stable_mosaic.version = 11 : i64} {
  func.func @kernel(%arg0: i32, %arg1: memref<1x10x10x128xbf16, #tpu.memory_space<vmem>>, %arg2: memref<2x128xf32, #tpu.memory_space<vmem>>, %arg3: memref<9x128x128xbf16, #tpu.memory_space<vmem>>, %arg4: memref<1x64x128xbf16, #tpu.memory_space<vmem>>, %arg5: memref<1x2x128xf32, #tpu.memory_space<vmem>>) attributes {dimension_semantics = [#tpu.dimension_semantics<parallel>], iteration_bounds = array<i64: 2>, scalar_prefetch = 0 : i64, scratch_operands = 0 : i64, tpu.core_type = #tpu.core_type<tc>, window_params = [{transform_indices = @transform_0, window_bounds = array<i64: 1, 10, 10, 128>}, {pipeline_mode = #tpu.pipeline_mode<synchronous>, transform_indices = @transform_1, window_bounds = array<i64: 2, 128>}, {pipeline_mode = #tpu.pipeline_mode<synchronous>, transform_indices = @transform_2, window_bounds = array<i64: 9, 128, 128>}, {transform_indices = @transform_3, window_bounds = array<i64: 1, 64, 128>}, {transform_indices = @transform_4, window_bounds = array<i64: 1, 2, 128>}]} {
    %c0 = arith.constant 0 : index
    %c0_0 = arith.constant 0 : index
    %0 = vector.load %arg2[%c0, %c0_0] : memref<2x128xf32, #tpu.memory_space<vmem>>, vector<1x128xf32>
    %1 = vector.shape_cast %0 : vector<1x128xf32> to vector<1x1x128xf32>
    %c1 = arith.constant 1 : index
    %c0_1 = arith.constant 0 : index
    %2 = vector.load %arg2[%c1, %c0_1] : memref<2x128xf32, #tpu.memory_space<vmem>>, vector<1x128xf32>
    %3 = vector.shape_cast %2 : vector<1x128xf32> to vector<1x1x128xf32>
    %c0_2 = arith.constant 0 : index
    %c0_3 = arith.constant 0 : index
    %c0_4 = arith.constant 0 : index
    %c0_5 = arith.constant 0 : index
    %4 = vector.load %arg1[%c0_2, %c0_3, %c0_4, %c0_5] : memref<1x10x10x128xbf16, #tpu.memory_space<vmem>>, vector<1x10x10x128xbf16>
    %5 = vector.shape_cast %4 : vector<1x10x10x128xbf16> to vector<10x10x128xbf16>
    %6 = arith.extf %5 : vector<10x10x128xbf16> to vector<10x10x128xf32>
    %7 = vector.broadcast %1 : vector<1x1x128xf32> to vector<10x10x128xf32>
    %8 = arith.mulf %6, %7 : vector<10x10x128xf32>
    %9 = vector.broadcast %3 : vector<1x1x128xf32> to vector<10x10x128xf32>
    %10 = arith.addf %8, %9 : vector<10x10x128xf32>
    %cst = arith.constant 0.000000e+00 : f32
    %11 = vector.broadcast %cst : f32 to vector<10x10x128xf32>
    %12 = arith.maximumf %10, %11 : vector<10x10x128xf32>
    %13 = tpu.iota {dimensions = array<i32: 0>} : vector<10x10x128xi32>
    %14 = tpu.iota {dimensions = array<i32: 1>} : vector<10x10x128xi32>
    %c1_i32 = arith.constant 1 : i32
    %15 = vector.broadcast %c1_i32 : i32 to vector<10x10x128xi32>
    %16 = arith.cmpi sge, %13, %15 : vector<10x10x128xi32>
    %c8_i32 = arith.constant 8 : i32
    %17 = vector.broadcast %c8_i32 : i32 to vector<10x10x128xi32>
    %18 = arith.cmpi sle, %13, %17 : vector<10x10x128xi32>
    %19 = arith.andi %16, %18 : vector<10x10x128xi1>
    %c1_i32_6 = arith.constant 1 : i32
    %20 = vector.broadcast %c1_i32_6 : i32 to vector<10x10x128xi32>
    %21 = arith.cmpi sge, %14, %20 : vector<10x10x128xi32>
    %22 = arith.andi %19, %21 : vector<10x10x128xi1>
    %c8_i32_7 = arith.constant 8 : i32
    %23 = vector.broadcast %c8_i32_7 : i32 to vector<10x10x128xi32>
    %24 = arith.cmpi sle, %14, %23 : vector<10x10x128xi32>
    %25 = arith.andi %22, %24 : vector<10x10x128xi1>
    %cst_8 = arith.constant 0.000000e+00 : f32
    %26 = vector.broadcast %cst_8 : f32 to vector<10x10x128xf32>
    %27 = arith.select %25, %12, %26 : vector<10x10x128xi1>, vector<10x10x128xf32>
    %cst_9 = arith.constant 0.000000e+00 : f32
    %28 = vector.broadcast %cst_9 : f32 to vector<64x128xf32>
    %29 = vector.extract_strided_slice %27 {offsets = [0, 0, 0], sizes = [8, 8, 128], strides = [1, 1, 1]} : vector<10x10x128xf32> to vector<8x8x128xf32>
    %30 = vector.shape_cast %29 : vector<8x8x128xf32> to vector<64x128xf32>
    %31 = arith.truncf %30 : vector<64x128xf32> to vector<64x128xbf16>
    %c0_10 = arith.constant 0 : index
    %c0_11 = arith.constant 0 : index
    %c0_12 = arith.constant 0 : index
    %32 = vector.load %arg3[%c0_10, %c0_11, %c0_12] : memref<9x128x128xbf16, #tpu.memory_space<vmem>>, vector<1x128x128xbf16>
    %33 = vector.shape_cast %32 : vector<1x128x128xbf16> to vector<128x128xbf16>
    %cst_13 = arith.constant dense<0.000000e+00> : vector<64x128xf32>
    %34 = tpu.matmul %31, %33, %cst_13 {dimension_numbers = #tpu.dot_dimension_numbers<[1], [0], [0], [1], [0, 0, 1, 1], [], []>} : vector<64x128xbf16>, vector<128x128xbf16>, vector<64x128xf32> -> vector<64x128xf32>
    %35 = arith.addf %28, %34 : vector<64x128xf32>
    %36 = vector.extract_strided_slice %27 {offsets = [0, 1, 0], sizes = [8, 8, 128], strides = [1, 1, 1]} : vector<10x10x128xf32> to vector<8x8x128xf32>
    %37 = vector.shape_cast %36 : vector<8x8x128xf32> to vector<64x128xf32>
    %38 = arith.truncf %37 : vector<64x128xf32> to vector<64x128xbf16>
    %c1_14 = arith.constant 1 : index
    %c0_15 = arith.constant 0 : index
    %c0_16 = arith.constant 0 : index
    %39 = vector.load %arg3[%c1_14, %c0_15, %c0_16] : memref<9x128x128xbf16, #tpu.memory_space<vmem>>, vector<1x128x128xbf16>
    %40 = vector.shape_cast %39 : vector<1x128x128xbf16> to vector<128x128xbf16>
    %cst_17 = arith.constant dense<0.000000e+00> : vector<64x128xf32>
    %41 = tpu.matmul %38, %40, %cst_17 {dimension_numbers = #tpu.dot_dimension_numbers<[1], [0], [0], [1], [0, 0, 1, 1], [], []>} : vector<64x128xbf16>, vector<128x128xbf16>, vector<64x128xf32> -> vector<64x128xf32>
    %42 = arith.addf %35, %41 : vector<64x128xf32>
    %43 = vector.extract_strided_slice %27 {offsets = [0, 2, 0], sizes = [8, 8, 128], strides = [1, 1, 1]} : vector<10x10x128xf32> to vector<8x8x128xf32>
    %44 = vector.shape_cast %43 : vector<8x8x128xf32> to vector<64x128xf32>
    %45 = arith.truncf %44 : vector<64x128xf32> to vector<64x128xbf16>
    %c2 = arith.constant 2 : index
    %c0_18 = arith.constant 0 : index
    %c0_19 = arith.constant 0 : index
    %46 = vector.load %arg3[%c2, %c0_18, %c0_19] : memref<9x128x128xbf16, #tpu.memory_space<vmem>>, vector<1x128x128xbf16>
    %47 = vector.shape_cast %46 : vector<1x128x128xbf16> to vector<128x128xbf16>
    %cst_20 = arith.constant dense<0.000000e+00> : vector<64x128xf32>
    %48 = tpu.matmul %45, %47, %cst_20 {dimension_numbers = #tpu.dot_dimension_numbers<[1], [0], [0], [1], [0, 0, 1, 1], [], []>} : vector<64x128xbf16>, vector<128x128xbf16>, vector<64x128xf32> -> vector<64x128xf32>
    %49 = arith.addf %42, %48 : vector<64x128xf32>
    %50 = vector.extract_strided_slice %27 {offsets = [1, 0, 0], sizes = [8, 8, 128], strides = [1, 1, 1]} : vector<10x10x128xf32> to vector<8x8x128xf32>
    %51 = vector.shape_cast %50 : vector<8x8x128xf32> to vector<64x128xf32>
    %52 = arith.truncf %51 : vector<64x128xf32> to vector<64x128xbf16>
    %c3 = arith.constant 3 : index
    %c0_21 = arith.constant 0 : index
    %c0_22 = arith.constant 0 : index
    %53 = vector.load %arg3[%c3, %c0_21, %c0_22] : memref<9x128x128xbf16, #tpu.memory_space<vmem>>, vector<1x128x128xbf16>
    %54 = vector.shape_cast %53 : vector<1x128x128xbf16> to vector<128x128xbf16>
    %cst_23 = arith.constant dense<0.000000e+00> : vector<64x128xf32>
    %55 = tpu.matmul %52, %54, %cst_23 {dimension_numbers = #tpu.dot_dimension_numbers<[1], [0], [0], [1], [0, 0, 1, 1], [], []>} : vector<64x128xbf16>, vector<128x128xbf16>, vector<64x128xf32> -> vector<64x128xf32>
    %56 = arith.addf %49, %55 : vector<64x128xf32>
    %57 = vector.extract_strided_slice %27 {offsets = [1, 1, 0], sizes = [8, 8, 128], strides = [1, 1, 1]} : vector<10x10x128xf32> to vector<8x8x128xf32>
    %58 = vector.shape_cast %57 : vector<8x8x128xf32> to vector<64x128xf32>
    %59 = arith.truncf %58 : vector<64x128xf32> to vector<64x128xbf16>
    %c4 = arith.constant 4 : index
    %c0_24 = arith.constant 0 : index
    %c0_25 = arith.constant 0 : index
    %60 = vector.load %arg3[%c4, %c0_24, %c0_25] : memref<9x128x128xbf16, #tpu.memory_space<vmem>>, vector<1x128x128xbf16>
    %61 = vector.shape_cast %60 : vector<1x128x128xbf16> to vector<128x128xbf16>
    %cst_26 = arith.constant dense<0.000000e+00> : vector<64x128xf32>
    %62 = tpu.matmul %59, %61, %cst_26 {dimension_numbers = #tpu.dot_dimension_numbers<[1], [0], [0], [1], [0, 0, 1, 1], [], []>} : vector<64x128xbf16>, vector<128x128xbf16>, vector<64x128xf32> -> vector<64x128xf32>
    %63 = arith.addf %56, %62 : vector<64x128xf32>
    %64 = vector.extract_strided_slice %27 {offsets = [1, 2, 0], sizes = [8, 8, 128], strides = [1, 1, 1]} : vector<10x10x128xf32> to vector<8x8x128xf32>
    %65 = vector.shape_cast %64 : vector<8x8x128xf32> to vector<64x128xf32>
    %66 = arith.truncf %65 : vector<64x128xf32> to vector<64x128xbf16>
    %c5 = arith.constant 5 : index
    %c0_27 = arith.constant 0 : index
    %c0_28 = arith.constant 0 : index
    %67 = vector.load %arg3[%c5, %c0_27, %c0_28] : memref<9x128x128xbf16, #tpu.memory_space<vmem>>, vector<1x128x128xbf16>
    %68 = vector.shape_cast %67 : vector<1x128x128xbf16> to vector<128x128xbf16>
    %cst_29 = arith.constant dense<0.000000e+00> : vector<64x128xf32>
    %69 = tpu.matmul %66, %68, %cst_29 {dimension_numbers = #tpu.dot_dimension_numbers<[1], [0], [0], [1], [0, 0, 1, 1], [], []>} : vector<64x128xbf16>, vector<128x128xbf16>, vector<64x128xf32> -> vector<64x128xf32>
    %70 = arith.addf %63, %69 : vector<64x128xf32>
    %71 = vector.extract_strided_slice %27 {offsets = [2, 0, 0], sizes = [8, 8, 128], strides = [1, 1, 1]} : vector<10x10x128xf32> to vector<8x8x128xf32>
    %72 = vector.shape_cast %71 : vector<8x8x128xf32> to vector<64x128xf32>
    %73 = arith.truncf %72 : vector<64x128xf32> to vector<64x128xbf16>
    %c6 = arith.constant 6 : index
    %c0_30 = arith.constant 0 : index
    %c0_31 = arith.constant 0 : index
    %74 = vector.load %arg3[%c6, %c0_30, %c0_31] : memref<9x128x128xbf16, #tpu.memory_space<vmem>>, vector<1x128x128xbf16>
    %75 = vector.shape_cast %74 : vector<1x128x128xbf16> to vector<128x128xbf16>
    %cst_32 = arith.constant dense<0.000000e+00> : vector<64x128xf32>
    %76 = tpu.matmul %73, %75, %cst_32 {dimension_numbers = #tpu.dot_dimension_numbers<[1], [0], [0], [1], [0, 0, 1, 1], [], []>} : vector<64x128xbf16>, vector<128x128xbf16>, vector<64x128xf32> -> vector<64x128xf32>
    %77 = arith.addf %70, %76 : vector<64x128xf32>
    %78 = vector.extract_strided_slice %27 {offsets = [2, 1, 0], sizes = [8, 8, 128], strides = [1, 1, 1]} : vector<10x10x128xf32> to vector<8x8x128xf32>
    %79 = vector.shape_cast %78 : vector<8x8x128xf32> to vector<64x128xf32>
    %80 = arith.truncf %79 : vector<64x128xf32> to vector<64x128xbf16>
    %c7 = arith.constant 7 : index
    %c0_33 = arith.constant 0 : index
    %c0_34 = arith.constant 0 : index
    %81 = vector.load %arg3[%c7, %c0_33, %c0_34] : memref<9x128x128xbf16, #tpu.memory_space<vmem>>, vector<1x128x128xbf16>
    %82 = vector.shape_cast %81 : vector<1x128x128xbf16> to vector<128x128xbf16>
    %cst_35 = arith.constant dense<0.000000e+00> : vector<64x128xf32>
    %83 = tpu.matmul %80, %82, %cst_35 {dimension_numbers = #tpu.dot_dimension_numbers<[1], [0], [0], [1], [0, 0, 1, 1], [], []>} : vector<64x128xbf16>, vector<128x128xbf16>, vector<64x128xf32> -> vector<64x128xf32>
    %84 = arith.addf %77, %83 : vector<64x128xf32>
    %85 = vector.extract_strided_slice %27 {offsets = [2, 2, 0], sizes = [8, 8, 128], strides = [1, 1, 1]} : vector<10x10x128xf32> to vector<8x8x128xf32>
    %86 = vector.shape_cast %85 : vector<8x8x128xf32> to vector<64x128xf32>
    %87 = arith.truncf %86 : vector<64x128xf32> to vector<64x128xbf16>
    %c8 = arith.constant 8 : index
    %c0_36 = arith.constant 0 : index
    %c0_37 = arith.constant 0 : index
    %88 = vector.load %arg3[%c8, %c0_36, %c0_37] : memref<9x128x128xbf16, #tpu.memory_space<vmem>>, vector<1x128x128xbf16>
    %89 = vector.shape_cast %88 : vector<1x128x128xbf16> to vector<128x128xbf16>
    %cst_38 = arith.constant dense<0.000000e+00> : vector<64x128xf32>
    %90 = tpu.matmul %87, %89, %cst_38 {dimension_numbers = #tpu.dot_dimension_numbers<[1], [0], [0], [1], [0, 0, 1, 1], [], []>} : vector<64x128xbf16>, vector<128x128xbf16>, vector<64x128xf32> -> vector<64x128xf32>
    %91 = arith.addf %84, %90 : vector<64x128xf32>
    %92 = arith.truncf %91 : vector<64x128xf32> to vector<64x128xbf16>
    %c0_39 = arith.constant 0 : index
    %c0_40 = arith.constant 0 : index
    %c0_41 = arith.constant 0 : index
    %93 = vector.load %arg4[%c0_39, %c0_40, %c0_41] : memref<1x64x128xbf16, #tpu.memory_space<vmem>>, vector<1x64x128xbf16>
    %94 = vector.shape_cast %93 : vector<1x64x128xbf16> to vector<64x128xbf16>
    %95 = vector.shape_cast %92 : vector<64x128xbf16> to vector<1x64x128xbf16>
    tpu.vector_store %arg4[%c0_39, %c0_40, %c0_41], %95 {strides = array<i32>} : memref<1x64x128xbf16, #tpu.memory_space<vmem>>, vector<1x64x128xbf16>,
    %cst_42 = arith.constant dense<0.000000e+00> : vector<128xf32>
    %96 = vector.multi_reduction <add>, %91, %cst_42 [0] : vector<64x128xf32> to vector<128xf32>
    %97 = vector.shape_cast %96 : vector<128xf32> to vector<1x128xf32>
    %cst_43 = arith.constant 1.562500e-02 : f32
    %98 = vector.broadcast %cst_43 : f32 to vector<1x128xf32>
    %99 = arith.mulf %97, %98 : vector<1x128xf32>
    %c0_44 = arith.constant 0 : index
    %c0_45 = arith.constant 0 : index
    %c0_46 = arith.constant 0 : index
    %100 = vector.load %arg5[%c0_44, %c0_45, %c0_46] : memref<1x2x128xf32, #tpu.memory_space<vmem>>, vector<1x1x128xf32>
    %101 = vector.shape_cast %100 : vector<1x1x128xf32> to vector<1x128xf32>
    %102 = vector.shape_cast %99 : vector<1x128xf32> to vector<1x1x128xf32>
    tpu.vector_store %arg5[%c0_44, %c0_45, %c0_46], %102 {strides = array<i32>} : memref<1x2x128xf32, #tpu.memory_space<vmem>>, vector<1x1x128xf32>,
    %103 = vector.broadcast %99 : vector<1x128xf32> to vector<64x128xf32>
    %104 = arith.subf %91, %103 : vector<64x128xf32>
    %105 = arith.mulf %104, %104 : vector<64x128xf32>
    %cst_47 = arith.constant dense<0.000000e+00> : vector<128xf32>
    %106 = vector.multi_reduction <add>, %105, %cst_47 [0] : vector<64x128xf32> to vector<128xf32>
    %107 = vector.shape_cast %106 : vector<128xf32> to vector<1x128xf32>
    %c0_48 = arith.constant 0 : index
    %c1_49 = arith.constant 1 : index
    %c0_50 = arith.constant 0 : index
    %108 = vector.load %arg5[%c0_48, %c1_49, %c0_50] : memref<1x2x128xf32, #tpu.memory_space<vmem>>, vector<1x1x128xf32>
    %109 = vector.shape_cast %108 : vector<1x1x128xf32> to vector<1x128xf32>
    %110 = vector.shape_cast %107 : vector<1x128xf32> to vector<1x1x128xf32>
    tpu.vector_store %arg5[%c0_48, %c1_49, %c0_50], %110 {strides = array<i32>} : memref<1x2x128xf32, #tpu.memory_space<vmem>>, vector<1x1x128xf32>,
    return
  }
  func.func @transform_0(%arg0: i32) -> (i32, i32, i32, i32) {
    %c0_i32 = arith.constant 0 : i32
    %c0_i32_0 = arith.constant 0 : i32
    %c0_i32_1 = arith.constant 0 : i32
    %c0_i32_2 = arith.constant 0 : i32
    return %arg0, %c0_i32, %c0_i32_0, %c0_i32_1 : i32, i32, i32, i32
  }
  func.func @transform_1(%arg0: i32) -> (i32, i32) {
    %c0_i32 = arith.constant 0 : i32
    %c0_i32_0 = arith.constant 0 : i32
    %c0_i32_1 = arith.constant 0 : i32
    return %c0_i32, %c0_i32_0 : i32, i32
  }
  func.func @transform_2(%arg0: i32) -> (i32, i32, i32) {
    %c0_i32 = arith.constant 0 : i32
    %c0_i32_0 = arith.constant 0 : i32
    %c0_i32_1 = arith.constant 0 : i32
    %c0_i32_2 = arith.constant 0 : i32
    return %c0_i32, %c0_i32_0, %c0_i32_1 : i32, i32, i32
  }
  func.func @transform_3(%arg0: i32) -> (i32, i32, i32) {
    %c0_i32 = arith.constant 0 : i32
    %c0_i32_0 = arith.constant 0 : i32
    %c0_i32_1 = arith.constant 0 : i32
    return %arg0, %c0_i32, %c0_i32_0 : i32, i32, i32
  }
  func.func @transform_4(%arg0: i32) -> (i32, i32, i32) {
    %c0_i32 = arith.constant 0 : i32
    %c0_i32_0 = arith.constant 0 : i32
    %c0_i32_1 = arith.constant 0 : i32
    return %arg0, %c0_i32, %c0_i32_0 : i32, i32, i32
  }
}

module attributes {stable_mosaic.version = 11 : i64} {
  func.func @kernel(%arg0: i32, %arg1: memref<1x64x128xbf16, #tpu.memory_space<vmem>>, %arg2: memref<1x64x4xbf16, #tpu.memory_space<vmem>>, %arg3: memref<2x128xf32, #tpu.memory_space<vmem>>, %arg4: memref<4x128xbf16, #tpu.memory_space<vmem>>, %arg5: memref<1x64x128xf32, #tpu.memory_space<vmem>>) attributes {dimension_semantics = [#tpu.dimension_semantics<parallel>], iteration_bounds = array<i64: 2>, scalar_prefetch = 0 : i64, scratch_operands = 0 : i64, tpu.core_type = #tpu.core_type<tc>, window_params = [{transform_indices = @transform_0, window_bounds = array<i64: 1, 64, 128>}, {transform_indices = @transform_1, window_bounds = array<i64: 1, 64, 4>}, {pipeline_mode = #tpu.pipeline_mode<synchronous>, transform_indices = @transform_2, window_bounds = array<i64: 2, 128>}, {pipeline_mode = #tpu.pipeline_mode<synchronous>, transform_indices = @transform_3, window_bounds = array<i64: 4, 128>}, {transform_indices = @transform_4, window_bounds = array<i64: 1, 64, 128>}]} {
    %c0 = arith.constant 0 : index
    %c0_0 = arith.constant 0 : index
    %c0_1 = arith.constant 0 : index
    %0 = vector.load %arg2[%c0, %c0_0, %c0_1] : memref<1x64x4xbf16, #tpu.memory_space<vmem>>, vector<1x64x4xbf16>
    %1 = vector.shape_cast %0 : vector<1x64x4xbf16> to vector<64x4xbf16>
    %c0_2 = arith.constant 0 : index
    %c0_3 = arith.constant 0 : index
    %2 = vector.load %arg4[%c0_2, %c0_3] : memref<4x128xbf16, #tpu.memory_space<vmem>>, vector<4x128xbf16>
    %cst = arith.constant dense<0.000000e+00> : vector<64x128xf32>
    %3 = tpu.matmul %1, %2, %cst {dimension_numbers = #tpu.dot_dimension_numbers<[1], [0], [0], [1], [0, 0, 1, 1], [], []>} : vector<64x4xbf16>, vector<4x128xbf16>, vector<64x128xf32> -> vector<64x128xf32>
    %c0_4 = arith.constant 0 : index
    %c0_5 = arith.constant 0 : index
    %c0_6 = arith.constant 0 : index
    %4 = vector.load %arg1[%c0_4, %c0_5, %c0_6] : memref<1x64x128xbf16, #tpu.memory_space<vmem>>, vector<1x64x128xbf16>
    %5 = vector.shape_cast %4 : vector<1x64x128xbf16> to vector<64x128xbf16>
    %6 = arith.extf %5 : vector<64x128xbf16> to vector<64x128xf32>
    %c0_7 = arith.constant 0 : index
    %c0_8 = arith.constant 0 : index
    %7 = vector.load %arg3[%c0_7, %c0_8] : memref<2x128xf32, #tpu.memory_space<vmem>>, vector<1x128xf32>
    %8 = vector.broadcast %7 : vector<1x128xf32> to vector<64x128xf32>
    %9 = arith.mulf %6, %8 : vector<64x128xf32>
    %c1 = arith.constant 1 : index
    %c0_9 = arith.constant 0 : index
    %10 = vector.load %arg3[%c1, %c0_9] : memref<2x128xf32, #tpu.memory_space<vmem>>, vector<1x128xf32>
    %11 = vector.broadcast %10 : vector<1x128xf32> to vector<64x128xf32>
    %12 = arith.addf %9, %11 : vector<64x128xf32>
    %13 = arith.addf %12, %3 : vector<64x128xf32>
    %cst_10 = arith.constant 0.000000e+00 : f32
    %14 = vector.broadcast %cst_10 : f32 to vector<64x128xf32>
    %15 = arith.maximumf %13, %14 : vector<64x128xf32>
    %c0_11 = arith.constant 0 : index
    %c0_12 = arith.constant 0 : index
    %c0_13 = arith.constant 0 : index
    %16 = vector.load %arg5[%c0_11, %c0_12, %c0_13] : memref<1x64x128xf32, #tpu.memory_space<vmem>>, vector<1x64x128xf32>
    %17 = vector.shape_cast %16 : vector<1x64x128xf32> to vector<64x128xf32>
    %18 = vector.shape_cast %15 : vector<64x128xf32> to vector<1x64x128xf32>
    tpu.vector_store %arg5[%c0_11, %c0_12, %c0_13], %18 {strides = array<i32>} : memref<1x64x128xf32, #tpu.memory_space<vmem>>, vector<1x64x128xf32>,
    return
  }
  func.func @transform_0(%arg0: i32) -> (i32, i32, i32) {
    %c0_i32 = arith.constant 0 : i32
    %c0_i32_0 = arith.constant 0 : i32
    %c0_i32_1 = arith.constant 0 : i32
    return %arg0, %c0_i32, %c0_i32_0 : i32, i32, i32
  }
  func.func @transform_1(%arg0: i32) -> (i32, i32, i32) {
    %c0_i32 = arith.constant 0 : i32
    %c0_i32_0 = arith.constant 0 : i32
    %c0_i32_1 = arith.constant 0 : i32
    return %arg0, %c0_i32, %c0_i32_0 : i32, i32, i32
  }
  func.func @transform_2(%arg0: i32) -> (i32, i32) {
    %c0_i32 = arith.constant 0 : i32
    %c0_i32_0 = arith.constant 0 : i32
    %c0_i32_1 = arith.constant 0 : i32
    return %c0_i32, %c0_i32_0 : i32, i32
  }
  func.func @transform_3(%arg0: i32) -> (i32, i32) {
    %c0_i32 = arith.constant 0 : i32
    %c0_i32_0 = arith.constant 0 : i32
    %c0_i32_1 = arith.constant 0 : i32
    return %c0_i32, %c0_i32_0 : i32, i32
  }
  func.func @transform_4(%arg0: i32) -> (i32, i32, i32) {
    %c0_i32 = arith.constant 0 : i32
    %c0_i32_0 = arith.constant 0 : i32
    %c0_i32_1 = arith.constant 0 : i32
    return %arg0, %c0_i32, %c0_i32_0 : i32, i32, i32
  }
}

</mosaic_0001>

<llo_original>
// kernel: res_block_type2.3
$region0: #{res_block_type2.3}
  #allocation0 [shape = 'u32[]', space=smem, size = 0x4, offset = 0x4, fixed_abs, tag = 'smem constant byte address 0x4 - core index']
  #allocation1 [shape = 'u32[144,128]{1,0:T(1,128)}', space=vmem, size = 0x12000, scoped, tag = 'internal scratch']
  %s0 = inlined_call_operand.vmem [shape: f32[2,36,9,4], index: 0, kind: input, shape index: {}]
  %s1 = inlined_call_operand.vmem [shape: bf16[9,4,128], index: 1, kind: input, shape index: {}]
  %s2 = inlined_call_operand.vmem [shape: bf16[2,64,128], index: 2, kind: output, shape index: {0}]
  %s3 = inlined_call_operand.vmem [shape: f32[2,2,128], index: 3, kind: output, shape index: {1}]
  %4 = xla_tuple %s2, %s3
  %s5 = sld [smem:[#allocation0]]
  $region49: #{res_block_type2.3} parent=0
    _
  %s7 = ssub.s32 1, %s5
  %s8 = scalar_select 0, %s7, %s5
  loop: start=0, step=1, limit=4
  $region2: #{res_block_type2.3} parent=0 // loop_pre_header
    _
  $region3: #{res_block_type2.3} parent=0 // loop_header
    %s10 = sphi 0, %s14
    %p11 = scmp.ge.s32.totalorder %s10, 4
    %s20 = sphi 0, %s22
    %s23 = sphi 0, %s20
    %s24 = sphi 0, %s23
    %s40 = sphi 0, %s24
    %s44 = sphi 0, %s44
    %s46 = sphi 0, %s44
    %s47 = sphi 0, %s46
    %s61 = sphi 0, %s47
    %s67 = sphi 0, %s69
    %s70 = sphi 0, %s67
    %s71 = sphi 0, %s70
    %s87 = sphi 0, %s71
    %s93 = sphi 0, %s95
    %s96 = sphi 0, %s93
    %s97 = sphi 0, %s96
    %s113 = sphi 0, %s97
  $region4: #{res_block_type2.3} parent=0 // loop_header_branch
    %13 = sbr.rel (%p11) target = $region8
  $region5: #{res_block_type2.3} parent=0 // loop_body
    %s15 = ssub.s32 %s10, 1
    %s16 = ssub.s32 %s10, 2
    %s17 = sadd.s32 %s10, 1
    %s18 = ssub.s32 %s10, %s17
    %p19 = scmp.eq.s32.totalorder %s18, 0
    %s21 = sadd.s32 %s20, 1
    %s22 = scalar_select %p19, %s20, %s21
    %p25 = pneg %p19
    %p26 = scmp.eq.s32.totalorder %s10, 1
    %p27 = por %p25, %p26
    %p28 = scmp.ne.s32.totalorder %s20, %s23
    %p29 = scmp.eq.s32.totalorder %s10, 0
    %p30 = por %p28, %p29
    %p31 = scmp.ne.s32.totalorder %s20, %s23
    %p32 = scmp.eq.s32.totalorder %s15, 1
    %p33 = por %p31, %p32
    %p34 = scmp.ne.s32.totalorder %s23, %s24
    %p35 = scmp.eq.s32.totalorder %s15, 0
    %p36 = por %p34, %p35
    %p37 = scmp.ne.s32.totalorder %s23, %s24
    %p38 = scmp.eq.s32.totalorder %s16, 1
    %p39 = por %p37, %p38
    %p41 = scmp.ne.s32.totalorder %s24, %s40
    %p42 = scmp.eq.s32.totalorder %s16, 0
    %p43 = por %p41, %p42
    %s45 = sadd.s32 %s44, 1
    %p48 = scmp.eq.s32.totalorder %s10, 1
    %p49 = scmp.ne.s32.totalorder %s44, %s46
    %p50 = scmp.eq.s32.totalorder %s10, 0
    %p51 = por %p49, %p50
    %p52 = scmp.ne.s32.totalorder %s44, %s46
    %p53 = scmp.eq.s32.totalorder %s15, 1
    %p54 = por %p52, %p53
    %p55 = scmp.ne.s32.totalorder %s46, %s47
    %p56 = scmp.eq.s32.totalorder %s15, 0
    %p57 = por %p55, %p56
    %p58 = scmp.ne.s32.totalorder %s46, %s47
    %p59 = scmp.eq.s32.totalorder %s16, 1
    %p60 = por %p58, %p59
    %p62 = scmp.ne.s32.totalorder %s47, %s61
    %p63 = scmp.eq.s32.totalorder %s16, 0
    %p64 = por %p62, %p63
    %s65 = ssub.s32 %s10, %s17
    %p66 = scmp.eq.s32.totalorder %s65, 0
    %s68 = sadd.s32 %s67, 1
    %s69 = scalar_select %p66, %s67, %s68
    %p72 = pneg %p66
    %p73 = scmp.eq.s32.totalorder %s10, 1
    %p74 = por %p72, %p73
    %p75 = scmp.ne.s32.totalorder %s67, %s70
    %p76 = scmp.eq.s32.totalorder %s10, 0
    %p77 = por %p75, %p76
    %p78 = scmp.ne.s32.totalorder %s67, %s70
    %p79 = scmp.eq.s32.totalorder %s15, 1
    %p80 = por %p78, %p79
    %p81 = scmp.ne.s32.totalorder %s70, %s71
    %p82 = scmp.eq.s32.totalorder %s15, 0
    %p83 = por %p81, %p82
    %p84 = scmp.ne.s32.totalorder %s70, %s71
    %p85 = scmp.eq.s32.totalorder %s16, 1
    %p86 = por %p84, %p85
    %p88 = scmp.ne.s32.totalorder %s71, %s87
    %p89 = scmp.eq.s32.totalorder %s16, 0
    %p90 = por %p88, %p89
    %s91 = ssub.s32 %s10, %s17
    %p92 = scmp.eq.s32.totalorder %s91, 0
    %s94 = sadd.s32 %s93, 1
    %s95 = scalar_select %p92, %s93, %s94
    %p98 = pneg %p92
    %p99 = scmp.eq.s32.totalorder %s10, 1
    %p100 = por %p98, %p99
    %p101 = scmp.ne.s32.totalorder %s93, %s96
    %p102 = scmp.eq.s32.totalorder %s10, 0
    %p103 = por %p101, %p102
    %p104 = scmp.ne.s32.totalorder %s93, %s96
    %p105 = scmp.eq.s32.totalorder %s15, 1
    %p106 = por %p104, %p105
    %p107 = scmp.ne.s32.totalorder %s96, %s97
    %p108 = scmp.eq.s32.totalorder %s15, 0
    %p109 = por %p107, %p108
    %p110 = scmp.ne.s32.totalorder %s96, %s97
    %p111 = scmp.eq.s32.totalorder %s16, 1
    %p112 = por %p110, %p111
    %p114 = scmp.ne.s32.totalorder %s97, %s113
    %p115 = scmp.eq.s32.totalorder %s16, 0
    %p116 = por %p114, %p115
    %p117 = scmp.le.s32.totalorder 1, %s10
    %p118 = scmp.lt.s32.totalorder %s10, 3
    %p119 = pnand %p117, %p118
    %p120 = pneg %p119
    // Predicated region
    $region9: #{res_block_type2.3} parent=5 // pred_check
      _
    $region10: #{res_block_type2.3} parent=5 // pred_check_branch
      %122 = sbr.rel (%p119) target = $region12
    $region11: #{res_block_type2.3} parent=5 // pred_region
      %s123 = ssub.s32 %s10, 1
      // Predicated region
      $region13: #{res_block_type2.3} parent=11 // pred_check
        %p124 = pneg %p57
      $region14: #{res_block_type2.3} parent=11 // pred_check_branch
        %126 = sbr.rel (%p124) target = $region16
      $region15: #{res_block_type2.3} parent=11 // pred_region
        _
      $region16: #{res_block_type2.3} parent=11 // pred_fallthru
        _
    $region12: #{res_block_type2.3} parent=5 // pred_fallthru
      _
    %p127 = scmp.lt.s32.totalorder %s10, 2
    // Predicated region
    $region17: #{res_block_type2.3} parent=5 // pred_check
      %p128 = pneg %p127
    $region18: #{res_block_type2.3} parent=5 // pred_check_branch
      %130 = sbr.rel (%p128) target = $region20
    $region19: #{res_block_type2.3} parent=5 // pred_region
      // Predicated region
      $region21: #{res_block_type2.3} parent=19 // pred_check
        %p131 = pneg %p30
      $region22: #{res_block_type2.3} parent=19 // pred_check_branch
        %133 = sbr.rel (%p131) target = $region24
      $region23: #{res_block_type2.3} parent=19 // pred_region
        %p134 = scmp.lt.s32.totalorder %s10, 1
        %s135 = scalar_select %p134, %s10, 1
        %s136 = smul.addr %s135, 72
        %s137 = smul.addr %s136, 8
        %s138 = scalar_lea.vmem %s0, %s137
      $region24: #{res_block_type2.3} parent=19 // pred_fallthru
        _
    $region20: #{res_block_type2.3} parent=5 // pred_fallthru
      _
    %p139 = scmp.le.s32.totalorder 1, %s10
    %p140 = scmp.lt.s32.totalorder %s10, 3
    %p141 = pnand %p139, %p140
    %p142 = pneg %p141
    // Predicated region
    $region25: #{res_block_type2.3} parent=5 // pred_check
      _
    $region26: #{res_block_type2.3} parent=5 // pred_check_branch
      %144 = sbr.rel (%p141) target = $region28
    $region27: #{res_block_type2.3} parent=5 // pred_region
      %s145 = ssub.s32 %s10, 1
      %p146 = scmp.lt.s32.totalorder %s15, 1
      %s147 = scalar_select %p146, %s15, 1
      %s148 = smul.addr %s147, 72
      %s149 = smul.addr %s148, 8
      %s150 = scalar_lea.vmem %s0, %s149
      %p151 = pneg %p36
      %p152 = pneg %p33
      %p153 = pneg %p57
      %p154 = pneg %p54
      %p155 = pneg %p83
      %p156 = pneg %p80
      %p157 = scmp.lt.s32.totalorder %s15, 1
      %s158 = scalar_select %p157, %s15, 1
      %s159 = smul.addr %s158, 8
      %s160 = smul.addr %s159, 4
      %s161 = scalar_lea.vmem %s2, %s160
      %p162 = pneg %p109
      %p163 = pneg %p106
      %p164 = scmp.lt.s32.totalorder %s15, 1
      %s165 = scalar_select %p164, %s15, 1
      %s166 = smul.addr %s165, 2
      %s167 = scalar_lea.vmem %s3, %s166
      %p168 = scmp.lt.s32.totalorder %s15, 1
      %s169 = scalar_select %p168, %s15, 1
      %s170 = smul.addr %s169, 72
      %s171 = smul.addr %s170, 8
      %s172 = scalar_lea.vmem %s0, %s171
      %p173 = scmp.lt.s32.totalorder %s15, 1
      %s174 = scalar_select %p173, %s15, 1
      %s175 = smul.addr %s174, 8
      %s176 = smul.addr %s175, 4
      %s177 = scalar_lea.vmem %s2, %s176
      %p178 = scmp.lt.s32.totalorder %s15, 1
      %s179 = scalar_select %p178, %s15, 1
      %s180 = smul.addr %s179, 2
      %s181 = scalar_lea.vmem %s3, %s180
      %v183 = vld [vmem:[%s172] sm:$0xff]
      %v184 = vld [vmem:[%s172 + $0x10] sm:$0xff]
      %v185 = vld [vmem:[%s172 + $0x20] sm:$0xff]
      %v186 = vld [vmem:[%s172 + $0x30] sm:$0xff]
      %v187 = vld [vmem:[%s172 + $0x40] sm:$0xff]
      %v188 = vld [vmem:[%s172 + $0x50] sm:$0xff]
      %v189 = vld [vmem:[%s172 + $0x60] sm:$0xff]
      %v190 = vld [vmem:[%s172 + $0x70] sm:$0xff]
      %v191 = vpack.c.bf16 %v184, %v183
      %v192 = vpack.c.bf16 %v186, %v185
      %v193 = vpack.c.bf16 %v188, %v187
      %v194 = vpack.c.bf16 %v190, %v189
      %v195 = vld [vmem:[%s1] sm:$0x3]
      %s196 = scalar_lea.vmem %s172, 144
      %v197 = vld [vmem:[%s196] sm:$0xff]
      %v198 = vld [vmem:[%s196 + $0x10] sm:$0xff]
      %v199 = vld [vmem:[%s196 + $0x20] sm:$0xff]
      %v200 = vld [vmem:[%s196 + $0x30] sm:$0xff]
      %v201 = vld [vmem:[%s196 + $0x40] sm:$0xff]
      %v202 = vld [vmem:[%s196 + $0x50] sm:$0xff]
      %v203 = vld [vmem:[%s196 + $0x60] sm:$0xff]
      %v204 = vld [vmem:[%s196 + $0x70] sm:$0xff]
      %v205 = vpack.c.bf16 %v198, %v197
      %v206 = vpack.c.bf16 %v200, %v199
      %v207 = vpack.c.bf16 %v202, %v201
      %v208 = vpack.c.bf16 %v204, %v203
      %s209 = scalar_lea.vmem %s1, 2
      %v210 = vld [vmem:[%s209] sm:$0x3]
      %vm211 = vcmask 31744
      %v213 = vsel %vm211, %v205, 0
      %v216 = vsel %vm211, %v206, 0
      %v219 = vsel %vm211, %v207, 0
      %v222 = vsel %vm211, %v208, 0
      %vm224 = vcmask 1041408
      %v226 = vsel %vm224, %v210, 0
      %228 = vmatprep.subr.bf16.mxu0 0
      %229 = vmatpush1.bf16.msra.mxu0 0
      %230 = vmatprep.subr.bf16.mxu0 0
      %231 = vmatpush1.bf16.msra.mxu0 0
      %232 = vmatprep.subr.bf16.mxu0 0
      %233 = vmatpush1.bf16.msra.mxu0 0
      %234 = vmatprep.subr.bf16.mxu0 0
      %235 = vmatpush1.bf16.msra.mxu0 0
      %236 = vmatprep.subr.bf16.mxu0 0
      %237 = vmatpush1.bf16.msra.mxu0 0
      %238 = vmatprep.subr.bf16.mxu0 0
      %239 = vmatpush1.bf16.msra.mxu0 0
      %240 = vmatprep.subr.bf16.mxu0 0
      %241 = vmatpush1.bf16.msra.mxu0 0
      %242 = vmatprep.subr.bf16.mxu0 0
      %243 = vmatpush1.bf16.msra.mxu0 %v226
      %244 = vmatprep.subr.bf16.mxu0 0
      %245 = vmatpush2.bf16.msra.mxu0 0
      %246 = vmatprep.subr.bf16.mxu0 0
      %247 = vmatpush2.bf16.msra.mxu0 0
      %248 = vmatprep.subr.bf16.mxu0 0
      %249 = vmatpush2.bf16.msra.mxu0 0
      %250 = vmatprep.subr.bf16.mxu0 0
      %251 = vmatpush2.bf16.msra.mxu0 0
      %252 = vmatprep.subr.bf16.mxu0 0
      %253 = vmatpush2.bf16.msra.mxu0 0
      %254 = vmatprep.subr.bf16.mxu0 0
      %255 = vmatpush2.bf16.msra.mxu0 0
      %256 = vmatprep.subr.bf16.mxu0 0
      %257 = vmatpush2.bf16.msra.mxu0 0
      %258 = vmatprep.subr.bf16.mxu0 0
      %259 = vmatpush2.bf16.msra.mxu0 0
      %260 = vmatprep.mubr.bf16.mxu0 0
      %261 = vmatmul.mubr.bf16.gmra.mxu0 %v213
      %v262 = vpop.f32.mrf.mxu0
      %v263 = vadd.f32 0.0, %v262
      %v264 = vpop.f32.mrf.mxu0
      %v265 = vpop.f32.mrf.mxu0
      %v266 = vadd.f32 0.0, %v265
      %v267 = vpop.f32.mrf.mxu0
      %268 = vmatprep.mubr.bf16.mxu0 0
      %269 = vmatmul.mubr.bf16.gmra.mxu0 %v216
      %v270 = vpop.f32.mrf.mxu0
      %v271 = vadd.f32 0.0, %v270
      %v272 = vpop.f32.mrf.mxu0
      %v273 = vpop.f32.mrf.mxu0
      %v274 = vadd.f32 0.0, %v273
      %v275 = vpop.f32.mrf.mxu0
      %276 = vmatprep.mubr.bf16.mxu0 0
      %277 = vmatmul.mubr.bf16.gmra.mxu0 %v219
      %v278 = vpop.f32.mrf.mxu0
      %v279 = vadd.f32 0.0, %v278
      %v280 = vpop.f32.mrf.mxu0
      %v281 = vpop.f32.mrf.mxu0
      %v282 = vadd.f32 0.0, %v281
      %v283 = vpop.f32.mrf.mxu0
      %284 = vmatprep.mubr.bf16.mxu0 0
      %285 = vmatmul.mubr.bf16.gmra.mxu0 %v222
      %v286 = vpop.f32.mrf.mxu0
      %v287 = vadd.f32 0.0, %v286
      %v288 = vpop.f32.mrf.mxu0
      %v289 = vpop.f32.mrf.mxu0
      %v290 = vadd.f32 0.0, %v289
      %v291 = vpop.f32.mrf.mxu0
      %292 = vdwg.mxu0
      %v294 = vsel %vm211, %v191, 0
      %v297 = vsel %vm211, %v192, 0
      %v300 = vsel %vm211, %v193, 0
      %v303 = vsel %vm211, %v194, 0
      %v306 = vsel %vm224, %v195, 0
      %308 = vmatprep.subr.bf16.mxu0 0
      %309 = vmatpush1.bf16.msra.mxu0 0
      %310 = vmatprep.subr.bf16.mxu0 0
      %311 = vmatpush1.bf16.msra.mxu0 0
      %312 = vmatprep.subr.bf16.mxu0 0
      %313 = vmatpush1.bf16.msra.mxu0 0
      %314 = vmatprep.subr.bf16.mxu0 0
      %315 = vmatpush1.bf16.msra.mxu0 0
      %316 = vmatprep.subr.bf16.mxu0 0
      %317 = vmatpush1.bf16.msra.mxu0 0
      %318 = vmatprep.subr.bf16.mxu0 0
      %319 = vmatpush1.bf16.msra.mxu0 0
      %320 = vmatprep.subr.bf16.mxu0 0
      %321 = vmatpush1.bf16.msra.mxu0 0
      %322 = vmatprep.subr.bf16.mxu0 0
      %323 = vmatpush1.bf16.msra.mxu0 %v306
      %324 = vmatprep.subr.bf16.mxu0 0
      %325 = vmatpush2.bf16.msra.mxu0 0
      %326 = vmatprep.subr.bf16.mxu0 0
      %327 = vmatpush2.bf16.msra.mxu0 0
      %328 = vmatprep.subr.bf16.mxu0 0
      %329 = vmatpush2.bf16.msra.mxu0 0
      %330 = vmatprep.subr.bf16.mxu0 0
      %331 = vmatpush2.bf16.msra.mxu0 0
      %332 = vmatprep.subr.bf16.mxu0 0
      %333 = vmatpush2.bf16.msra.mxu0 0
      %334 = vmatprep.subr.bf16.mxu0 0
      %335 = vmatpush2.bf16.msra.mxu0 0
      %336 = vmatprep.subr.bf16.mxu0 0
      %337 = vmatpush2.bf16.msra.mxu0 0
      %338 = vmatprep.subr.bf16.mxu0 0
      %339 = vmatpush2.bf16.msra.mxu0 0
      %340 = vmatprep.mubr.bf16.mxu0 0
      %341 = vmatmul.mubr.bf16.gmra.mxu0 %v294
      %v342 = vpop.f32.mrf.mxu0
      %v343 = vadd.f32 %v263, %v342
      %v344 = vpop.f32.mrf.mxu0
      %v345 = vpop.f32.mrf.mxu0
      %v346 = vadd.f32 %v266, %v345
      %v347 = vpop.f32.mrf.mxu0
      %348 = vmatprep.mubr.bf16.mxu0 0
      %349 = vmatmul.mubr.bf16.gmra.mxu0 %v297
      %v350 = vpop.f32.mrf.mxu0
      %v351 = vadd.f32 %v271, %v350
      %v352 = vpop.f32.mrf.mxu0
      %v353 = vpop.f32.mrf.mxu0
      %v354 = vadd.f32 %v274, %v353
      %v355 = vpop.f32.mrf.mxu0
      %356 = vmatprep.mubr.bf16.mxu0 0
      %357 = vmatmul.mubr.bf16.gmra.mxu0 %v300
      %v358 = vpop.f32.mrf.mxu0
      %v359 = vadd.f32 %v279, %v358
      %v360 = vpop.f32.mrf.mxu0
      %v361 = vpop.f32.mrf.mxu0
      %v362 = vadd.f32 %v282, %v361
      %v363 = vpop.f32.mrf.mxu0
      %364 = vmatprep.mubr.bf16.mxu0 0
      %365 = vmatmul.mubr.bf16.gmra.mxu0 %v303
      %v366 = vpop.f32.mrf.mxu0
      %v367 = vadd.f32 %v287, %v366
      %v368 = vpop.f32.mrf.mxu0
      %v369 = vpop.f32.mrf.mxu0
      %v370 = vadd.f32 %v290, %v369
      %v371 = vpop.f32.mrf.mxu0
      %372 = vdwg.mxu0
      %v373 = vld [vmem:[%s172 + $0x1] sm:$0xff]
      %v374 = vld [vmem:[%s172 + $0x11] sm:$0xff]
      %v375 = vld [vmem:[%s172 + $0x21] sm:$0xff]
      %v376 = vld [vmem:[%s172 + $0x31] sm:$0xff]
      %v377 = vld [vmem:[%s172 + $0x41] sm:$0xff]
      %v378 = vld [vmem:[%s172 + $0x51] sm:$0xff]
      %v379 = vld [vmem:[%s172 + $0x61] sm:$0xff]
      %v380 = vld [vmem:[%s172 + $0x71] sm:$0xff]
      %v381 = vpack.c.bf16 %v374, %v373
      %v382 = vpack.c.bf16 %v376, %v375
      %v383 = vpack.c.bf16 %v378, %v377
      %v384 = vpack.c.bf16 %v380, %v379
      %s385 = scalar_lea.vmem %s1, 4
      %v386 = vld [vmem:[%s385] sm:$0x3]
      %v388 = vsel %vm211, %v381, 0
      %v391 = vsel %vm211, %v382, 0
      %v394 = vsel %vm211, %v383, 0
      %v397 = vsel %vm211, %v384, 0
      %v400 = vsel %vm224, %v386, 0
      %402 = vmatprep.subr.bf16.mxu0 0
      %403 = vmatpush1.bf16.msra.mxu0 0
      %404 = vmatprep.subr.bf16.mxu0 0
      %405 = vmatpush1.bf16.msra.mxu0 0
      %406 = vmatprep.subr.bf16.mxu0 0
      %407 = vmatpush1.bf16.msra.mxu0 0
      %408 = vmatprep.subr.bf16.mxu0 0
      %409 = vmatpush1.bf16.msra.mxu0 0
      %410 = vmatprep.subr.bf16.mxu0 0
      %411 = vmatpush1.bf16.msra.mxu0 0
      %412 = vmatprep.subr.bf16.mxu0 0
      %413 = vmatpush1.bf16.msra.mxu0 0
      %414 = vmatprep.subr.bf16.mxu0 0
      %415 = vmatpush1.bf16.msra.mxu0 0
      %416 = vmatprep.subr.bf16.mxu0 0
      %417 = vmatpush1.bf16.msra.mxu0 %v400
      %418 = vmatprep.subr.bf16.mxu0 0
      %419 = vmatpush2.bf16.msra.mxu0 0
      %420 = vmatprep.subr.bf16.mxu0 0
      %421 = vmatpush2.bf16.msra.mxu0 0
      %422 = vmatprep.subr.bf16.mxu0 0
      %423 = vmatpush2.bf16.msra.mxu0 0
      %424 = vmatprep.subr.bf16.mxu0 0
      %425 = vmatpush2.bf16.msra.mxu0 0
      %426 = vmatprep.subr.bf16.mxu0 0
      %427 = vmatpush2.bf16.msra.mxu0 0
      %428 = vmatprep.subr.bf16.mxu0 0
      %429 = vmatpush2.bf16.msra.mxu0 0
      %430 = vmatprep.subr.bf16.mxu0 0
      %431 = vmatpush2.bf16.msra.mxu0 0
      %432 = vmatprep.subr.bf16.mxu0 0
      %433 = vmatpush2.bf16.msra.mxu0 0
      %434 = vmatprep.mubr.bf16.mxu0 0
      %435 = vmatmul.mubr.bf16.gmra.mxu0 %v388
      %v436 = vpop.f32.mrf.mxu0
      %v437 = vadd.f32 0.0, %v436
      %v438 = vpop.f32.mrf.mxu0
      %v439 = vpop.f32.mrf.mxu0
      %v440 = vadd.f32 0.0, %v439
      %v441 = vpop.f32.mrf.mxu0
      %442 = vmatprep.mubr.bf16.mxu0 0
      %443 = vmatmul.mubr.bf16.gmra.mxu0 %v391
      %v444 = vpop.f32.mrf.mxu0
      %v445 = vadd.f32 0.0, %v444
      %v446 = vpop.f32.mrf.mxu0
      %v447 = vpop.f32.mrf.mxu0
      %v448 = vadd.f32 0.0, %v447
      %v449 = vpop.f32.mrf.mxu0
      %450 = vmatprep.mubr.bf16.mxu0 0
      %451 = vmatmul.mubr.bf16.gmra.mxu0 %v394
      %v452 = vpop.f32.mrf.mxu0
      %v453 = vadd.f32 0.0, %v452
      %v454 = vpop.f32.mrf.mxu0
      %v455 = vpop.f32.mrf.mxu0
      %v456 = vadd.f32 0.0, %v455
      %v457 = vpop.f32.mrf.mxu0
      %458 = vmatprep.mubr.bf16.mxu0 0
      %459 = vmatmul.mubr.bf16.gmra.mxu0 %v397
      %v460 = vpop.f32.mrf.mxu0
      %v461 = vadd.f32 0.0, %v460
      %v462 = vpop.f32.mrf.mxu0
      %v463 = vpop.f32.mrf.mxu0
      %v464 = vadd.f32 0.0, %v463
      %v465 = vpop.f32.mrf.mxu0
      %466 = vdwg.mxu0
      %v467 = vadd.f32 %v343, %v437
      %v468 = vadd.f32 %v346, %v440
      %v469 = vadd.f32 %v351, %v445
      %v470 = vadd.f32 %v354, %v448
      %v471 = vadd.f32 %v359, %v453
      %v472 = vadd.f32 %v362, %v456
      %v473 = vadd.f32 %v367, %v461
      %v474 = vadd.f32 %v370, %v464
      %s475 = scalar_lea.vmem %s172, 288
      %v476 = vld [vmem:[%s475] sm:$0xff]
      %v477 = vld [vmem:[%s475 + $0x10] sm:$0xff]
      %v478 = vld [vmem:[%s475 + $0x20] sm:$0xff]
      %v479 = vld [vmem:[%s475 + $0x30] sm:$0xff]
      %v480 = vld [vmem:[%s475 + $0x40] sm:$0xff]
      %v481 = vld [vmem:[%s475 + $0x50] sm:$0xff]
      %v482 = vld [vmem:[%s475 + $0x60] sm:$0xff]
      %v483 = vld [vmem:[%s475 + $0x70] sm:$0xff]
      %v484 = vpack.c.bf16 %v477, %v476
      %v485 = vpack.c.bf16 %v479, %v478
      %v486 = vpack.c.bf16 %v481, %v480
      %v487 = vpack.c.bf16 %v483, %v482
      %s488 = scalar_lea.vmem %s1, 6
      %v489 = vld [vmem:[%s488] sm:$0x3]
      %v491 = vsel %vm211, %v484, 0
      %v494 = vsel %vm211, %v485, 0
      %v497 = vsel %vm211, %v486, 0
      %v500 = vsel %vm211, %v487, 0
      %v503 = vsel %vm224, %v489, 0
      %505 = vmatprep.subr.bf16.mxu0 0
      %506 = vmatpush1.bf16.msra.mxu0 0
      %507 = vmatprep.subr.bf16.mxu0 0
      %508 = vmatpush1.bf16.msra.mxu0 0
      %509 = vmatprep.subr.bf16.mxu0 0
      %510 = vmatpush1.bf16.msra.mxu0 0
      %511 = vmatprep.subr.bf16.mxu0 0
      %512 = vmatpush1.bf16.msra.mxu0 0
      %513 = vmatprep.subr.bf16.mxu0 0
      %514 = vmatpush1.bf16.msra.mxu0 0
      %515 = vmatprep.subr.bf16.mxu0 0
      %516 = vmatpush1.bf16.msra.mxu0 0
      %517 = vmatprep.subr.bf16.mxu0 0
      %518 = vmatpush1.bf16.msra.mxu0 0
      %519 = vmatprep.subr.bf16.mxu0 0
      %520 = vmatpush1.bf16.msra.mxu0 %v503
      %521 = vmatprep.subr.bf16.mxu0 0
      %522 = vmatpush2.bf16.msra.mxu0 0
      %523 = vmatprep.subr.bf16.mxu0 0
      %524 = vmatpush2.bf16.msra.mxu0 0
      %525 = vmatprep.subr.bf16.mxu0 0
      %526 = vmatpush2.bf16.msra.mxu0 0
      %527 = vmatprep.subr.bf16.mxu0 0
      %528 = vmatpush2.bf16.msra.mxu0 0
      %529 = vmatprep.subr.bf16.mxu0 0
      %530 = vmatpush2.bf16.msra.mxu0 0
      %531 = vmatprep.subr.bf16.mxu0 0
      %532 = vmatpush2.bf16.msra.mxu0 0
      %533 = vmatprep.subr.bf16.mxu0 0
      %534 = vmatpush2.bf16.msra.mxu0 0
      %535 = vmatprep.subr.bf16.mxu0 0
      %536 = vmatpush2.bf16.msra.mxu0 0
      %537 = vmatprep.mubr.bf16.mxu0 0
      %538 = vmatmul.mubr.bf16.gmra.mxu0 %v491
      %v539 = vpop.f32.mrf.mxu0
      %v540 = vadd.f32 0.0, %v539
      %v541 = vpop.f32.mrf.mxu0
      %v542 = vpop.f32.mrf.mxu0
      %v543 = vadd.f32 0.0, %v542
      %v544 = vpop.f32.mrf.mxu0
      %545 = vmatprep.mubr.bf16.mxu0 0
      %546 = vmatmul.mubr.bf16.gmra.mxu0 %v494
      %v547 = vpop.f32.mrf.mxu0
      %v548 = vadd.f32 0.0, %v547
      %v549 = vpop.f32.mrf.mxu0
      %v550 = vpop.f32.mrf.mxu0
      %v551 = vadd.f32 0.0, %v550
      %v552 = vpop.f32.mrf.mxu0
      %553 = vmatprep.mubr.bf16.mxu0 0
      %554 = vmatmul.mubr.bf16.gmra.mxu0 %v497
      %v555 = vpop.f32.mrf.mxu0
      %v556 = vadd.f32 0.0, %v555
      %v557 = vpop.f32.mrf.mxu0
      %v558 = vpop.f32.mrf.mxu0
      %v559 = vadd.f32 0.0, %v558
      %v560 = vpop.f32.mrf.mxu0
      %561 = vmatprep.mubr.bf16.mxu0 0
      %562 = vmatmul.mubr.bf16.gmra.mxu0 %v500
      %v563 = vpop.f32.mrf.mxu0
      %v564 = vadd.f32 0.0, %v563
      %v565 = vpop.f32.mrf.mxu0
      %v566 = vpop.f32.mrf.mxu0
      %v567 = vadd.f32 0.0, %v566
      %v568 = vpop.f32.mrf.mxu0
      %569 = vdwg.mxu0
      %v570 = vadd.f32 %v467, %v540
      %v571 = vadd.f32 %v468, %v543
      %v572 = vadd.f32 %v469, %v548
      %v573 = vadd.f32 %v470, %v551
      %v574 = vadd.f32 %v471, %v556
      %v575 = vadd.f32 %v472, %v559
      %v576 = vadd.f32 %v473, %v564
      %v577 = vadd.f32 %v474, %v567
      %s578 = scalar_lea.vmem %s172, 432
      %v579 = vld [vmem:[%s578] sm:$0xff]
      %v580 = vld [vmem:[%s578 + $0x10] sm:$0xff]
      %v581 = vld [vmem:[%s578 + $0x20] sm:$0xff]
      %v582 = vld [vmem:[%s578 + $0x30] sm:$0xff]
      %v583 = vld [vmem:[%s578 + $0x40] sm:$0xff]
      %v584 = vld [vmem:[%s578 + $0x50] sm:$0xff]
      %v585 = vld [vmem:[%s578 + $0x60] sm:$0xff]
      %v586 = vld [vmem:[%s578 + $0x70] sm:$0xff]
      %v587 = vpack.c.bf16 %v580, %v579
      %v588 = vpack.c.bf16 %v582, %v581
      %v589 = vpack.c.bf16 %v584, %v583
      %v590 = vpack.c.bf16 %v586, %v585
      %s591 = scalar_lea.vmem %s1, 8
      %v592 = vld [vmem:[%s591] sm:$0x3]
      %v594 = vsel %vm211, %v587, 0
      %v597 = vsel %vm211, %v588, 0
      %v600 = vsel %vm211, %v589, 0
      %v603 = vsel %vm211, %v590, 0
      %v606 = vsel %vm224, %v592, 0
      %608 = vmatprep.subr.bf16.mxu0 0
      %609 = vmatpush1.bf16.msra.mxu0 0
      %610 = vmatprep.subr.bf16.mxu0 0
      %611 = vmatpush1.bf16.msra.mxu0 0
      %612 = vmatprep.subr.bf16.mxu0 0
      %613 = vmatpush1.bf16.msra.mxu0 0
      %614 = vmatprep.subr.bf16.mxu0 0
      %615 = vmatpush1.bf16.msra.mxu0 0
      %616 = vmatprep.subr.bf16.mxu0 0
      %617 = vmatpush1.bf16.msra.mxu0 0
      %618 = vmatprep.subr.bf16.mxu0 0
      %619 = vmatpush1.bf16.msra.mxu0 0
      %620 = vmatprep.subr.bf16.mxu0 0
      %621 = vmatpush1.bf16.msra.mxu0 0
      %622 = vmatprep.subr.bf16.mxu0 0
      %623 = vmatpush1.bf16.msra.mxu0 %v606
      %624 = vmatprep.subr.bf16.mxu0 0
      %625 = vmatpush2.bf16.msra.mxu0 0
      %626 = vmatprep.subr.bf16.mxu0 0
      %627 = vmatpush2.bf16.msra.mxu0 0
      %628 = vmatprep.subr.bf16.mxu0 0
      %629 = vmatpush2.bf16.msra.mxu0 0
      %630 = vmatprep.subr.bf16.mxu0 0
      %631 = vmatpush2.bf16.msra.mxu0 0
      %632 = vmatprep.subr.bf16.mxu0 0
      %633 = vmatpush2.bf16.msra.mxu0 0
      %634 = vmatprep.subr.bf16.mxu0 0
      %635 = vmatpush2.bf16.msra.mxu0 0
      %636 = vmatprep.subr.bf16.mxu0 0
      %637 = vmatpush2.bf16.msra.mxu0 0
      %638 = vmatprep.subr.bf16.mxu0 0
      %639 = vmatpush2.bf16.msra.mxu0 0
      %640 = vmatprep.mubr.bf16.mxu0 0
      %641 = vmatmul.mubr.bf16.gmra.mxu0 %v594
      %v642 = vpop.f32.mrf.mxu0
      %v643 = vadd.f32 0.0, %v642
      %v644 = vpop.f32.mrf.mxu0
      %v645 = vpop.f32.mrf.mxu0
      %v646 = vadd.f32 0.0, %v645
      %v647 = vpop.f32.mrf.mxu0
      %648 = vmatprep.mubr.bf16.mxu0 0
      %649 = vmatmul.mubr.bf16.gmra.mxu0 %v597
      %v650 = vpop.f32.mrf.mxu0
      %v651 = vadd.f32 0.0, %v650
      %v652 = vpop.f32.mrf.mxu0
      %v653 = vpop.f32.mrf.mxu0
      %v654 = vadd.f32 0.0, %v653
      %v655 = vpop.f32.mrf.mxu0
      %656 = vmatprep.mubr.bf16.mxu0 0
      %657 = vmatmul.mubr.bf16.gmra.mxu0 %v600
      %v658 = vpop.f32.mrf.mxu0
      %v659 = vadd.f32 0.0, %v658
      %v660 = vpop.f32.mrf.mxu0
      %v661 = vpop.f32.mrf.mxu0
      %v662 = vadd.f32 0.0, %v661
      %v663 = vpop.f32.mrf.mxu0
      %664 = vmatprep.mubr.bf16.mxu0 0
      %665 = vmatmul.mubr.bf16.gmra.mxu0 %v603
      %v666 = vpop.f32.mrf.mxu0
      %v667 = vadd.f32 0.0, %v666
      %v668 = vpop.f32.mrf.mxu0
      %v669 = vpop.f32.mrf.mxu0
      %v670 = vadd.f32 0.0, %v669
      %v671 = vpop.f32.mrf.mxu0
      %672 = vdwg.mxu0
      %v673 = vadd.f32 %v570, %v643
      %v674 = vadd.f32 %v571, %v646
      %v675 = vadd.f32 %v572, %v651
      %v676 = vadd.f32 %v573, %v654
      %v677 = vadd.f32 %v574, %v659
      %v678 = vadd.f32 %v575, %v662
      %v679 = vadd.f32 %v576, %v667
      %v680 = vadd.f32 %v577, %v670
      %v681 = vld [vmem:[%s475 + $0x1] sm:$0xff]
      %v682 = vld [vmem:[%s475 + $0x11] sm:$0xff]
      %v683 = vld [vmem:[%s475 + $0x21] sm:$0xff]
      %v684 = vld [vmem:[%s475 + $0x31] sm:$0xff]
      %v685 = vld [vmem:[%s475 + $0x41] sm:$0xff]
      %v686 = vld [vmem:[%s475 + $0x51] sm:$0xff]
      %v687 = vld [vmem:[%s475 + $0x61] sm:$0xff]
      %v688 = vld [vmem:[%s475 + $0x71] sm:$0xff]
      %v689 = vpack.c.bf16 %v682, %v681
      %v690 = vpack.c.bf16 %v684, %v683
      %v691 = vpack.c.bf16 %v686, %v685
      %v692 = vpack.c.bf16 %v688, %v687
      %s693 = scalar_lea.vmem %s1, 10
      %v694 = vld [vmem:[%s693] sm:$0x3]
      %v696 = vsel %vm211, %v689, 0
      %v699 = vsel %vm211, %v690, 0
      %v702 = vsel %vm211, %v691, 0
      %v705 = vsel %vm211, %v692, 0
      %v708 = vsel %vm224, %v694, 0
      %710 = vmatprep.subr.bf16.mxu0 0
      %711 = vmatpush1.bf16.msra.mxu0 0
      %712 = vmatprep.subr.bf16.mxu0 0
      %713 = vmatpush1.bf16.msra.mxu0 0
      %714 = vmatprep.subr.bf16.mxu0 0
      %715 = vmatpush1.bf16.msra.mxu0 0
      %716 = vmatprep.subr.bf16.mxu0 0
      %717 = vmatpush1.bf16.msra.mxu0 0
      %718 = vmatprep.subr.bf16.mxu0 0
      %719 = vmatpush1.bf16.msra.mxu0 0
      %720 = vmatprep.subr.bf16.mxu0 0
      %721 = vmatpush1.bf16.msra.mxu0 0
      %722 = vmatprep.subr.bf16.mxu0 0
      %723 = vmatpush1.bf16.msra.mxu0 0
      %724 = vmatprep.subr.bf16.mxu0 0
      %725 = vmatpush1.bf16.msra.mxu0 %v708
      %726 = vmatprep.subr.bf16.mxu0 0
      %727 = vmatpush2.bf16.msra.mxu0 0
      %728 = vmatprep.subr.bf16.mxu0 0
      %729 = vmatpush2.bf16.msra.mxu0 0
      %730 = vmatprep.subr.bf16.mxu0 0
      %731 = vmatpush2.bf16.msra.mxu0 0
      %732 = vmatprep.subr.bf16.mxu0 0
      %733 = vmatpush2.bf16.msra.mxu0 0
      %734 = vmatprep.subr.bf16.mxu0 0
      %735 = vmatpush2.bf16.msra.mxu0 0
      %736 = vmatprep.subr.bf16.mxu0 0
      %737 = vmatpush2.bf16.msra.mxu0 0
      %738 = vmatprep.subr.bf16.mxu0 0
      %739 = vmatpush2.bf16.msra.mxu0 0
      %740 = vmatprep.subr.bf16.mxu0 0
      %741 = vmatpush2.bf16.msra.mxu0 0
      %742 = vmatprep.mubr.bf16.mxu0 0
      %743 = vmatmul.mubr.bf16.gmra.mxu0 %v696
      %v744 = vpop.f32.mrf.mxu0
      %v745 = vadd.f32 0.0, %v744
      %v746 = vpop.f32.mrf.mxu0
      %v747 = vpop.f32.mrf.mxu0
      %v748 = vadd.f32 0.0, %v747
      %v749 = vpop.f32.mrf.mxu0
      %750 = vmatprep.mubr.bf16.mxu0 0
      %751 = vmatmul.mubr.bf16.gmra.mxu0 %v699
      %v752 = vpop.f32.mrf.mxu0
      %v753 = vadd.f32 0.0, %v752
      %v754 = vpop.f32.mrf.mxu0
      %v755 = vpop.f32.mrf.mxu0
      %v756 = vadd.f32 0.0, %v755
      %v757 = vpop.f32.mrf.mxu0
      %758 = vmatprep.mubr.bf16.mxu0 0
      %759 = vmatmul.mubr.bf16.gmra.mxu0 %v702
      %v760 = vpop.f32.mrf.mxu0
      %v761 = vadd.f32 0.0, %v760
      %v762 = vpop.f32.mrf.mxu0
      %v763 = vpop.f32.mrf.mxu0
      %v764 = vadd.f32 0.0, %v763
      %v765 = vpop.f32.mrf.mxu0
      %766 = vmatprep.mubr.bf16.mxu0 0
      %767 = vmatmul.mubr.bf16.gmra.mxu0 %v705
      %v768 = vpop.f32.mrf.mxu0
      %v769 = vadd.f32 0.0, %v768
      %v770 = vpop.f32.mrf.mxu0
      %v771 = vpop.f32.mrf.mxu0
      %v772 = vadd.f32 0.0, %v771
      %v773 = vpop.f32.mrf.mxu0
      %774 = vdwg.mxu0
      %v775 = vadd.f32 %v673, %v745
      %v776 = vadd.f32 %v674, %v748
      %v777 = vadd.f32 %v675, %v753
      %v778 = vadd.f32 %v676, %v756
      %v779 = vadd.f32 %v677, %v761
      %v780 = vadd.f32 %v678, %v764
      %v781 = vadd.f32 %v679, %v769
      %v782 = vadd.f32 %v680, %v772
      %s783 = scalar_lea.vmem %s172, 16
      %v784 = vld [vmem:[%s783] sm:$0xff]
      %v785 = vld [vmem:[%s783 + $0x10] sm:$0xff]
      %v786 = vld [vmem:[%s783 + $0x20] sm:$0xff]
      %v787 = vld [vmem:[%s783 + $0x30] sm:$0xff]
      %v788 = vld [vmem:[%s783 + $0x40] sm:$0xff]
      %v789 = vld [vmem:[%s783 + $0x50] sm:$0xff]
      %v790 = vld [vmem:[%s783 + $0x60] sm:$0xff]
      %v791 = vld [vmem:[%s783 + $0x70] sm:$0xff]
      %v792 = vpack.c.bf16 %v785, %v784
      %v793 = vpack.c.bf16 %v787, %v786
      %v794 = vpack.c.bf16 %v789, %v788
      %v795 = vpack.c.bf16 %v791, %v790
      %s796 = scalar_lea.vmem %s1, 12
      %v797 = vld [vmem:[%s796] sm:$0x3]
      %v799 = vsel %vm211, %v792, 0
      %v802 = vsel %vm211, %v793, 0
      %v805 = vsel %vm211, %v794, 0
      %v808 = vsel %vm211, %v795, 0
      %v811 = vsel %vm224, %v797, 0
      %813 = vmatprep.subr.bf16.mxu0 0
      %814 = vmatpush1.bf16.msra.mxu0 0
      %815 = vmatprep.subr.bf16.mxu0 0
      %816 = vmatpush1.bf16.msra.mxu0 0
      %817 = vmatprep.subr.bf16.mxu0 0
      %818 = vmatpush1.bf16.msra.mxu0 0
      %819 = vmatprep.subr.bf16.mxu0 0
      %820 = vmatpush1.bf16.msra.mxu0 0
      %821 = vmatprep.subr.bf16.mxu0 0
      %822 = vmatpush1.bf16.msra.mxu0 0
      %823 = vmatprep.subr.bf16.mxu0 0
      %824 = vmatpush1.bf16.msra.mxu0 0
      %825 = vmatprep.subr.bf16.mxu0 0
      %826 = vmatpush1.bf16.msra.mxu0 0
      %827 = vmatprep.subr.bf16.mxu0 0
      %828 = vmatpush1.bf16.msra.mxu0 %v811
      %829 = vmatprep.subr.bf16.mxu0 0
      %830 = vmatpush2.bf16.msra.mxu0 0
      %831 = vmatprep.subr.bf16.mxu0 0
      %832 = vmatpush2.bf16.msra.mxu0 0
      %833 = vmatprep.subr.bf16.mxu0 0
      %834 = vmatpush2.bf16.msra.mxu0 0
      %835 = vmatprep.subr.bf16.mxu0 0
      %836 = vmatpush2.bf16.msra.mxu0 0
      %837 = vmatprep.subr.bf16.mxu0 0
      %838 = vmatpush2.bf16.msra.mxu0 0
      %839 = vmatprep.subr.bf16.mxu0 0
      %840 = vmatpush2.bf16.msra.mxu0 0
      %841 = vmatprep.subr.bf16.mxu0 0
      %842 = vmatpush2.bf16.msra.mxu0 0
      %843 = vmatprep.subr.bf16.mxu0 0
      %844 = vmatpush2.bf16.msra.mxu0 0
      %845 = vmatprep.mubr.bf16.mxu0 0
      %846 = vmatmul.mubr.bf16.gmra.mxu0 %v799
      %v847 = vpop.f32.mrf.mxu0
      %v848 = vadd.f32 0.0, %v847
      %v849 = vpop.f32.mrf.mxu0
      %v850 = vpop.f32.mrf.mxu0
      %v851 = vadd.f32 0.0, %v850
      %v852 = vpop.f32.mrf.mxu0
      %853 = vmatprep.mubr.bf16.mxu0 0
      %854 = vmatmul.mubr.bf16.gmra.mxu0 %v802
      %v855 = vpop.f32.mrf.mxu0
      %v856 = vadd.f32 0.0, %v855
      %v857 = vpop.f32.mrf.mxu0
      %v858 = vpop.f32.mrf.mxu0
      %v859 = vadd.f32 0.0, %v858
      %v860 = vpop.f32.mrf.mxu0
      %861 = vmatprep.mubr.bf16.mxu0 0
      %862 = vmatmul.mubr.bf16.gmra.mxu0 %v805
      %v863 = vpop.f32.mrf.mxu0
      %v864 = vadd.f32 0.0, %v863
      %v865 = vpop.f32.mrf.mxu0
      %v866 = vpop.f32.mrf.mxu0
      %v867 = vadd.f32 0.0, %v866
      %v868 = vpop.f32.mrf.mxu0
      %869 = vmatprep.mubr.bf16.mxu0 0
      %870 = vmatmul.mubr.bf16.gmra.mxu0 %v808
      %v871 = vpop.f32.mrf.mxu0
      %v872 = vadd.f32 0.0, %v871
      %v873 = vpop.f32.mrf.mxu0
      %v874 = vpop.f32.mrf.mxu0
      %v875 = vadd.f32 0.0, %v874
      %v876 = vpop.f32.mrf.mxu0
      %877 = vdwg.mxu0
      %v878 = vadd.f32 %v775, %v848
      %v879 = vadd.f32 %v776, %v851
      %v880 = vadd.f32 %v777, %v856
      %v881 = vadd.f32 %v778, %v859
      %v882 = vadd.f32 %v779, %v864
      %v883 = vadd.f32 %v780, %v867
      %v884 = vadd.f32 %v781, %v872
      %v885 = vadd.f32 %v782, %v875
      %s886 = scalar_lea.vmem %s172, 160
      %v887 = vld [vmem:[%s886] sm:$0xff]
      %v888 = vld [vmem:[%s886 + $0x10] sm:$0xff]
      %v889 = vld [vmem:[%s886 + $0x20] sm:$0xff]
      %v890 = vld [vmem:[%s886 + $0x30] sm:$0xff]
      %v891 = vld [vmem:[%s886 + $0x40] sm:$0xff]
      %v892 = vld [vmem:[%s886 + $0x50] sm:$0xff]
      %v893 = vld [vmem:[%s886 + $0x60] sm:$0xff]
      %v894 = vld [vmem:[%s886 + $0x70] sm:$0xff]
      %v895 = vpack.c.bf16 %v888, %v887
      %v896 = vpack.c.bf16 %v890, %v889
      %v897 = vpack.c.bf16 %v892, %v891
      %v898 = vpack.c.bf16 %v894, %v893
      %s899 = scalar_lea.vmem %s1, 14
      %v900 = vld [vmem:[%s899] sm:$0x3]
      %v902 = vsel %vm211, %v895, 0
      %v905 = vsel %vm211, %v896, 0
      %v908 = vsel %vm211, %v897, 0
      %v911 = vsel %vm211, %v898, 0
      %v914 = vsel %vm224, %v900, 0
      %916 = vmatprep.subr.bf16.mxu0 0
      %917 = vmatpush1.bf16.msra.mxu0 0
      %918 = vmatprep.subr.bf16.mxu0 0
      %919 = vmatpush1.bf16.msra.mxu0 0
      %920 = vmatprep.subr.bf16.mxu0 0
      %921 = vmatpush1.bf16.msra.mxu0 0
      %922 = vmatprep.subr.bf16.mxu0 0
      %923 = vmatpush1.bf16.msra.mxu0 0
      %924 = vmatprep.subr.bf16.mxu0 0
      %925 = vmatpush1.bf16.msra.mxu0 0
      %926 = vmatprep.subr.bf16.mxu0 0
      %927 = vmatpush1.bf16.msra.mxu0 0
      %928 = vmatprep.subr.bf16.mxu0 0
      %929 = vmatpush1.bf16.msra.mxu0 0
      %930 = vmatprep.subr.bf16.mxu0 0
      %931 = vmatpush1.bf16.msra.mxu0 %v914
      %932 = vmatprep.subr.bf16.mxu0 0
      %933 = vmatpush2.bf16.msra.mxu0 0
      %934 = vmatprep.subr.bf16.mxu0 0
      %935 = vmatpush2.bf16.msra.mxu0 0
      %936 = vmatprep.subr.bf16.mxu0 0
      %937 = vmatpush2.bf16.msra.mxu0 0
      %938 = vmatprep.subr.bf16.mxu0 0
      %939 = vmatpush2.bf16.msra.mxu0 0
      %940 = vmatprep.subr.bf16.mxu0 0
      %941 = vmatpush2.bf16.msra.mxu0 0
      %942 = vmatprep.subr.bf16.mxu0 0
      %943 = vmatpush2.bf16.msra.mxu0 0
      %944 = vmatprep.subr.bf16.mxu0 0
      %945 = vmatpush2.bf16.msra.mxu0 0
      %946 = vmatprep.subr.bf16.mxu0 0
      %947 = vmatpush2.bf16.msra.mxu0 0
      %948 = vmatprep.mubr.bf16.mxu0 0
      %949 = vmatmul.mubr.bf16.gmra.mxu0 %v902
      %v950 = vpop.f32.mrf.mxu0
      %v951 = vadd.f32 0.0, %v950
      %v952 = vpop.f32.mrf.mxu0
      %v953 = vpop.f32.mrf.mxu0
      %v954 = vadd.f32 0.0, %v953
      %v955 = vpop.f32.mrf.mxu0
      %956 = vmatprep.mubr.bf16.mxu0 0
      %957 = vmatmul.mubr.bf16.gmra.mxu0 %v905
      %v958 = vpop.f32.mrf.mxu0
      %v959 = vadd.f32 0.0, %v958
      %v960 = vpop.f32.mrf.mxu0
      %v961 = vpop.f32.mrf.mxu0
      %v962 = vadd.f32 0.0, %v961
      %v963 = vpop.f32.mrf.mxu0
      %964 = vmatprep.mubr.bf16.mxu0 0
      %965 = vmatmul.mubr.bf16.gmra.mxu0 %v908
      %v966 = vpop.f32.mrf.mxu0
      %v967 = vadd.f32 0.0, %v966
      %v968 = vpop.f32.mrf.mxu0
      %v969 = vpop.f32.mrf.mxu0
      %v970 = vadd.f32 0.0, %v969
      %v971 = vpop.f32.mrf.mxu0
      %972 = vmatprep.mubr.bf16.mxu0 0
      %973 = vmatmul.mubr.bf16.gmra.mxu0 %v911
      %v974 = vpop.f32.mrf.mxu0
      %v975 = vadd.f32 0.0, %v974
      %v976 = vpop.f32.mrf.mxu0
      %v977 = vpop.f32.mrf.mxu0
      %v978 = vadd.f32 0.0, %v977
      %v979 = vpop.f32.mrf.mxu0
      %980 = vdwg.mxu0
      %v981 = vadd.f32 %v878, %v951
      %v982 = vadd.f32 %v879, %v954
      %v983 = vadd.f32 %v880, %v959
      %v984 = vadd.f32 %v881, %v962
      %v985 = vadd.f32 %v882, %v967
      %v986 = vadd.f32 %v883, %v970
      %v987 = vadd.f32 %v884, %v975
      %v988 = vadd.f32 %v885, %v978
      %v989 = vld [vmem:[%s783 + $0x1] sm:$0xff]
      %v990 = vld [vmem:[%s783 + $0x11] sm:$0xff]
      %v991 = vld [vmem:[%s783 + $0x21] sm:$0xff]
      %v992 = vld [vmem:[%s783 + $0x31] sm:$0xff]
      %v993 = vld [vmem:[%s783 + $0x41] sm:$0xff]
      %v994 = vld [vmem:[%s783 + $0x51] sm:$0xff]
      %v995 = vld [vmem:[%s783 + $0x61] sm:$0xff]
      %v996 = vld [vmem:[%s783 + $0x71] sm:$0xff]
      %v997 = vpack.c.bf16 %v990, %v989
      %v998 = vpack.c.bf16 %v992, %v991
      %v999 = vpack.c.bf16 %v994, %v993
      %v1000 = vpack.c.bf16 %v996, %v995
      %s1001 = scalar_lea.vmem %s1, 16
      %v1002 = vld [vmem:[%s1001] sm:$0x3]
      %v1004 = vsel %vm211, %v997, 0
      %v1007 = vsel %vm211, %v998, 0
      %v1010 = vsel %vm211, %v999, 0
      %v1013 = vsel %vm211, %v1000, 0
      %v1016 = vsel %vm224, %v1002, 0
      %1018 = vmatprep.subr.bf16.mxu0 0
      %1019 = vmatpush1.bf16.msra.mxu0 0
      %1020 = vmatprep.subr.bf16.mxu0 0
      %1021 = vmatpush1.bf16.msra.mxu0 0
      %1022 = vmatprep.subr.bf16.mxu0 0
      %1023 = vmatpush1.bf16.msra.mxu0 0
      %1024 = vmatprep.subr.bf16.mxu0 0
      %1025 = vmatpush1.bf16.msra.mxu0 0
      %1026 = vmatprep.subr.bf16.mxu0 0
      %1027 = vmatpush1.bf16.msra.mxu0 0
      %1028 = vmatprep.subr.bf16.mxu0 0
      %1029 = vmatpush1.bf16.msra.mxu0 0
      %1030 = vmatprep.subr.bf16.mxu0 0
      %1031 = vmatpush1.bf16.msra.mxu0 0
      %1032 = vmatprep.subr.bf16.mxu0 0
      %1033 = vmatpush1.bf16.msra.mxu0 %v1016
      %1034 = vmatprep.subr.bf16.mxu0 0
      %1035 = vmatpush2.bf16.msra.mxu0 0
      %1036 = vmatprep.subr.bf16.mxu0 0
      %1037 = vmatpush2.bf16.msra.mxu0 0
      %1038 = vmatprep.subr.bf16.mxu0 0
      %1039 = vmatpush2.bf16.msra.mxu0 0
      %1040 = vmatprep.subr.bf16.mxu0 0
      %1041 = vmatpush2.bf16.msra.mxu0 0
      %1042 = vmatprep.subr.bf16.mxu0 0
      %1043 = vmatpush2.bf16.msra.mxu0 0
      %1044 = vmatprep.subr.bf16.mxu0 0
      %1045 = vmatpush2.bf16.msra.mxu0 0
      %1046 = vmatprep.subr.bf16.mxu0 0
      %1047 = vmatpush2.bf16.msra.mxu0 0
      %1048 = vmatprep.subr.bf16.mxu0 0
      %1049 = vmatpush2.bf16.msra.mxu0 0
      %1050 = vmatprep.mubr.bf16.mxu0 0
      %1051 = vmatmul.mubr.bf16.gmra.mxu0 %v1004
      %v1052 = vpop.f32.mrf.mxu0
      %v1053 = vadd.f32 0.0, %v1052
      %v1054 = vpop.f32.mrf.mxu0
      %v1055 = vpop.f32.mrf.mxu0
      %v1056 = vadd.f32 0.0, %v1055
      %v1057 = vpop.f32.mrf.mxu0
      %1058 = vmatprep.mubr.bf16.mxu0 0
      %1059 = vmatmul.mubr.bf16.gmra.mxu0 %v1007
      %v1060 = vpop.f32.mrf.mxu0
      %v1061 = vadd.f32 0.0, %v1060
      %v1062 = vpop.f32.mrf.mxu0
      %v1063 = vpop.f32.mrf.mxu0
      %v1064 = vadd.f32 0.0, %v1063
      %v1065 = vpop.f32.mrf.mxu0
      %1066 = vmatprep.mubr.bf16.mxu0 0
      %1067 = vmatmul.mubr.bf16.gmra.mxu0 %v1010
      %v1068 = vpop.f32.mrf.mxu0
      %v1069 = vadd.f32 0.0, %v1068
      %v1070 = vpop.f32.mrf.mxu0
      %v1071 = vpop.f32.mrf.mxu0
      %v1072 = vadd.f32 0.0, %v1071
      %v1073 = vpop.f32.mrf.mxu0
      %1074 = vmatprep.mubr.bf16.mxu0 0
      %1075 = vmatmul.mubr.bf16.gmra.mxu0 %v1013
      %v1076 = vpop.f32.mrf.mxu0
      %v1077 = vadd.f32 0.0, %v1076
      %v1078 = vpop.f32.mrf.mxu0
      %v1079 = vpop.f32.mrf.mxu0
      %v1080 = vadd.f32 0.0, %v1079
      %v1081 = vpop.f32.mrf.mxu0
      %1082 = vdwg.mxu0
      %v1083 = vadd.f32 %v981, %v1053
      %v1084 = vadd.f32 %v982, %v1056
      %v1085 = vadd.f32 %v983, %v1061
      %v1086 = vadd.f32 %v984, %v1064
      %v1087 = vadd.f32 %v985, %v1069
      %v1088 = vadd.f32 %v986, %v1072
      %v1089 = vadd.f32 %v987, %v1077
      %v1090 = vadd.f32 %v988, %v1080
      %v1091 = vpack.c.bf16 %v1084, %v1083
      %v1092 = vpack.c.bf16 %v1086, %v1085
      %v1093 = vpack.c.bf16 %v1088, %v1087
      %v1094 = vpack.c.bf16 %v1090, %v1089
      %v1099 = vunpack.c.l.b16 %v1091
      %v1100 = vunpack.c.h.b16 %v1091
      %v1101 = vunpack.c.l.b16 %v1092
      %v1102 = vunpack.c.h.b16 %v1092
      %v1103 = vunpack.c.l.b16 %v1093
      %v1104 = vunpack.c.h.b16 %v1093
      %v1105 = vunpack.c.l.b16 %v1094
      %v1106 = vunpack.c.h.b16 %v1094
      %v1107 = vpack.c.b16 %v1099, %v1099
      %v1108 = vpack.c.b16 %v1100, %v1100
      %v1109 = vpack.c.b16 %v1101, %v1101
      %v1110 = vpack.c.b16 %v1102, %v1102
      %v1111 = vpack.c.b16 %v1103, %v1103
      %v1112 = vpack.c.b16 %v1104, %v1104
      %v1113 = vpack.c.b16 %v1105, %v1105
      %v1114 = vpack.c.b16 %v1106, %v1106
      %1123 = vst [vmem:[%s177] sm:$0xf] %v1107
      %1124 = vst [vmem:[%s177 + $0x4] sm:$0xf] %v1108
      %1125 = vst [vmem:[%s177 + $0x8] sm:$0xf] %v1109
      %1126 = vst [vmem:[%s177 + $0xc] sm:$0xf] %v1110
      %1127 = vst [vmem:[%s177 + $0x10] sm:$0xf] %v1111
      %1128 = vst [vmem:[%s177 + $0x14] sm:$0xf] %v1112
      %1129 = vst [vmem:[%s177 + $0x18] sm:$0xf] %v1113
      %1130 = vst [vmem:[%s177 + $0x1c] sm:$0xf] %v1114
      %v1131 = vadd.f32 %v1083, %v1084
      %v1132 = vadd.f32 %v1131, %v1085
      %v1133 = vadd.f32 %v1132, %v1086
      %v1134 = vadd.f32 %v1133, %v1087
      %v1135 = vadd.f32 %v1134, %v1088
      %v1136 = vadd.f32 %v1135, %v1089
      %v1137 = vadd.f32 %v1136, %v1090
      %v1138 = vrot.slane %v1137, 4
      %v1139 = vadd.f32 %v1137, %v1138
      %v1140 = vrot.slane %v1139, 2
      %v1141 = vadd.f32 %v1139, %v1140
      %v1142 = vrot.slane %v1141, 1
      %v1143 = vadd.f32 %v1141, %v1142
      %v1144 = vmul.f32 %v1143, 0.015625
      %1145 = vst [vmem:[%s181] sm:$0x1] %v1144
      %v1146 = vsub.f32 %v1083, %v1144
      %v1147 = vsub.f32 %v1084, %v1144
      %v1148 = vsub.f32 %v1085, %v1144
      %v1149 = vsub.f32 %v1086, %v1144
      %v1150 = vsub.f32 %v1087, %v1144
      %v1151 = vsub.f32 %v1088, %v1144
      %v1152 = vsub.f32 %v1089, %v1144
      %v1153 = vsub.f32 %v1090, %v1144
      %v1154 = vmul.f32 %v1146, %v1146
      %v1155 = vmul.f32 %v1147, %v1147
      %v1156 = vmul.f32 %v1148, %v1148
      %v1157 = vmul.f32 %v1149, %v1149
      %v1158 = vmul.f32 %v1150, %v1150
      %v1159 = vmul.f32 %v1151, %v1151
      %v1160 = vmul.f32 %v1152, %v1152
      %v1161 = vmul.f32 %v1153, %v1153
      %v1162 = vadd.f32 %v1154, %v1155
      %v1163 = vadd.f32 %v1162, %v1156
      %v1164 = vadd.f32 %v1163, %v1157
      %v1165 = vadd.f32 %v1164, %v1158
      %v1166 = vadd.f32 %v1165, %v1159
      %v1167 = vadd.f32 %v1166, %v1160
      %v1168 = vadd.f32 %v1167, %v1161
      %v1169 = vrot.slane %v1168, 4
      %v1170 = vadd.f32 %v1168, %v1169
      %v1171 = vrot.slane %v1170, 2
      %v1172 = vadd.f32 %v1170, %v1171
      %v1173 = vrot.slane %v1172, 1
      %v1174 = vadd.f32 %v1172, %v1173
      %1175 = vst [vmem:[%s181 + $0x1] sm:$0x1] %v1174
      %p1176 = scmp.lt.s32.totalorder %s15, 1
      %s1177 = scalar_select %p1176, %s15, 1
      %s1178 = smul.addr %s1177, 8
      %s1179 = smul.addr %s1178, 4
      %s1180 = scalar_lea.vmem %s2, %s1179
      %p1181 = scmp.lt.s32.totalorder %s15, 1
      %s1182 = scalar_select %p1181, %s15, 1
      %s1183 = smul.addr %s1182, 2
      %s1184 = scalar_lea.vmem %s3, %s1183
      // Predicated region
      $region29: #{res_block_type2.3} parent=27 // pred_check
        %p1185 = pneg %p80
      $region30: #{res_block_type2.3} parent=27 // pred_check_branch
        %1187 = sbr.rel (%p1185) target = $region32
      $region31: #{res_block_type2.3} parent=27 // pred_region
        _
      $region32: #{res_block_type2.3} parent=27 // pred_fallthru
        _
      // Predicated region
      $region33: #{res_block_type2.3} parent=27 // pred_check
        %p1188 = pneg %p106
      $region34: #{res_block_type2.3} parent=27 // pred_check_branch
        %1190 = sbr.rel (%p1188) target = $region36
      $region35: #{res_block_type2.3} parent=27 // pred_region
        _
      $region36: #{res_block_type2.3} parent=27 // pred_fallthru
        _
    $region28: #{res_block_type2.3} parent=5 // pred_fallthru
      _
    %p1191 = scmp.le.s32.totalorder 2, %s10
    // Predicated region
    $region37: #{res_block_type2.3} parent=5 // pred_check
      %p1192 = pneg %p1191
    $region38: #{res_block_type2.3} parent=5 // pred_check_branch
      %1194 = sbr.rel (%p1192) target = $region40
    $region39: #{res_block_type2.3} parent=5 // pred_region
      %s1195 = ssub.s32 %s10, 2
      // Predicated region
      $region41: #{res_block_type2.3} parent=39 // pred_check
        %p1196 = pneg %p86
      $region42: #{res_block_type2.3} parent=39 // pred_check_branch
        %1198 = sbr.rel (%p1196) target = $region44
      $region43: #{res_block_type2.3} parent=39 // pred_region
        %p1199 = scmp.lt.s32.totalorder %s16, 1
        %s1200 = scalar_select %p1199, %s16, 1
        %s1201 = smul.addr %s1200, 8
        %s1202 = smul.addr %s1201, 4
        %s1203 = scalar_lea.vmem %s2, %s1202
      $region44: #{res_block_type2.3} parent=39 // pred_fallthru
        _
      // Predicated region
      $region45: #{res_block_type2.3} parent=39 // pred_check
        %p1204 = pneg %p112
      $region46: #{res_block_type2.3} parent=39 // pred_check_branch
        %1206 = sbr.rel (%p1204) target = $region48
      $region47: #{res_block_type2.3} parent=39 // pred_region
        %p1207 = scmp.lt.s32.totalorder %s16, 1
        %s1208 = scalar_select %p1207, %s16, 1
        %s1209 = smul.addr %s1208, 2
        %s1210 = scalar_lea.vmem %s3, %s1209
      $region48: #{res_block_type2.3} parent=39 // pred_fallthru
        _
    $region40: #{res_block_type2.3} parent=5 // pred_fallthru
      _
  $region6: #{res_block_type2.3} parent=0 // loop_footer
    %s14 = sadd.s32 1, %s10
  $region7: #{res_block_type2.3} parent=0 // loop_footer_branch
    %9 = sbr.rel target = $region3
  $region8: #{res_block_type2.3} parent=0 // loop_exit
    _

// kernel: res_block_type2.5
$region0: #{res_block_type2.5}
  #allocation0 [shape = 'u32[]', space=smem, size = 0x4, offset = 0x4, fixed_abs, tag = 'smem constant byte address 0x4 - core index']
  #allocation1 [shape = 'u32[144,128]{1,0:T(1,128)}', space=vmem, size = 0x12000, scoped, tag = 'internal scratch']
  %s0 = inlined_call_operand.vmem [shape: bf16[2,64,128], index: 0, kind: input, shape index: {}]
  %s1 = inlined_call_operand.vmem [shape: bf16[2,64,4], index: 1, kind: input, shape index: {}]
  %s2 = inlined_call_operand.vmem [shape: f32[2,128], index: 2, kind: input, shape index: {}]
  %s3 = inlined_call_operand.vmem [shape: bf16[4,128], index: 3, kind: input, shape index: {}]
  %s4 = inlined_call_operand.vmem [shape: f32[2,64,128], index: 4, kind: output, shape index: {}]
  %s5 = sld [smem:[#allocation0]]
  $region49: #{res_block_type2.5} parent=0
    _
  %s7 = ssub.s32 1, %s5
  %s8 = scalar_select 0, %s7, %s5
  loop: start=0, step=1, limit=4
  $region2: #{res_block_type2.5} parent=0 // loop_pre_header
    _
  $region3: #{res_block_type2.5} parent=0 // loop_header
    %s10 = sphi 0, %s14
    %p11 = scmp.ge.s32.totalorder %s10, 4
    %s20 = sphi 0, %s22
    %s23 = sphi 0, %s20
    %s24 = sphi 0, %s23
    %s40 = sphi 0, %s24
    %s46 = sphi 0, %s48
    %s49 = sphi 0, %s46
    %s50 = sphi 0, %s49
    %s66 = sphi 0, %s50
    %s70 = sphi 0, %s70
    %s72 = sphi 0, %s70
    %s73 = sphi 0, %s72
    %s87 = sphi 0, %s73
    %s91 = sphi 0, %s91
    %s93 = sphi 0, %s91
    %s94 = sphi 0, %s93
    %s108 = sphi 0, %s94
    %s114 = sphi 0, %s116
    %s117 = sphi 0, %s114
    %s118 = sphi 0, %s117
    %s134 = sphi 0, %s118
  $region4: #{res_block_type2.5} parent=0 // loop_header_branch
    %13 = sbr.rel (%p11) target = $region8
  $region5: #{res_block_type2.5} parent=0 // loop_body
    %s15 = ssub.s32 %s10, 1
    %s16 = ssub.s32 %s10, 2
    %s17 = sadd.s32 %s10, 1
    %s18 = ssub.s32 %s10, %s17
    %p19 = scmp.eq.s32.totalorder %s18, 0
    %s21 = sadd.s32 %s20, 1
    %s22 = scalar_select %p19, %s20, %s21
    %p25 = pneg %p19
    %p26 = scmp.eq.s32.totalorder %s10, 1
    %p27 = por %p25, %p26
    %p28 = scmp.ne.s32.totalorder %s20, %s23
    %p29 = scmp.eq.s32.totalorder %s10, 0
    %p30 = por %p28, %p29
    %p31 = scmp.ne.s32.totalorder %s20, %s23
    %p32 = scmp.eq.s32.totalorder %s15, 1
    %p33 = por %p31, %p32
    %p34 = scmp.ne.s32.totalorder %s23, %s24
    %p35 = scmp.eq.s32.totalorder %s15, 0
    %p36 = por %p34, %p35
    %p37 = scmp.ne.s32.totalorder %s23, %s24
    %p38 = scmp.eq.s32.totalorder %s16, 1
    %p39 = por %p37, %p38
    %p41 = scmp.ne.s32.totalorder %s24, %s40
    %p42 = scmp.eq.s32.totalorder %s16, 0
    %p43 = por %p41, %p42
    %s44 = ssub.s32 %s10, %s17
    %p45 = scmp.eq.s32.totalorder %s44, 0
    %s47 = sadd.s32 %s46, 1
    %s48 = scalar_select %p45, %s46, %s47
    %p51 = pneg %p45
    %p52 = scmp.eq.s32.totalorder %s10, 1
    %p53 = por %p51, %p52
    %p54 = scmp.ne.s32.totalorder %s46, %s49
    %p55 = scmp.eq.s32.totalorder %s10, 0
    %p56 = por %p54, %p55
    %p57 = scmp.ne.s32.totalorder %s46, %s49
    %p58 = scmp.eq.s32.totalorder %s15, 1
    %p59 = por %p57, %p58
    %p60 = scmp.ne.s32.totalorder %s49, %s50
    %p61 = scmp.eq.s32.totalorder %s15, 0
    %p62 = por %p60, %p61
    %p63 = scmp.ne.s32.totalorder %s49, %s50
    %p64 = scmp.eq.s32.totalorder %s16, 1
    %p65 = por %p63, %p64
    %p67 = scmp.ne.s32.totalorder %s50, %s66
    %p68 = scmp.eq.s32.totalorder %s16, 0
    %p69 = por %p67, %p68
    %s71 = sadd.s32 %s70, 1
    %p74 = scmp.eq.s32.totalorder %s10, 1
    %p75 = scmp.ne.s32.totalorder %s70, %s72
    %p76 = scmp.eq.s32.totalorder %s10, 0
    %p77 = por %p75, %p76
    %p78 = scmp.ne.s32.totalorder %s70, %s72
    %p79 = scmp.eq.s32.totalorder %s15, 1
    %p80 = por %p78, %p79
    %p81 = scmp.ne.s32.totalorder %s72, %s73
    %p82 = scmp.eq.s32.totalorder %s15, 0
    %p83 = por %p81, %p82
    %p84 = scmp.ne.s32.totalorder %s72, %s73
    %p85 = scmp.eq.s32.totalorder %s16, 1
    %p86 = por %p84, %p85
    %p88 = scmp.ne.s32.totalorder %s73, %s87
    %p89 = scmp.eq.s32.totalorder %s16, 0
    %p90 = por %p88, %p89
    %s92 = sadd.s32 %s91, 1
    %p95 = scmp.eq.s32.totalorder %s10, 1
    %p96 = scmp.ne.s32.totalorder %s91, %s93
    %p97 = scmp.eq.s32.totalorder %s10, 0
    %p98 = por %p96, %p97
    %p99 = scmp.ne.s32.totalorder %s91, %s93
    %p100 = scmp.eq.s32.totalorder %s15, 1
    %p101 = por %p99, %p100
    %p102 = scmp.ne.s32.totalorder %s93, %s94
    %p103 = scmp.eq.s32.totalorder %s15, 0
    %p104 = por %p102, %p103
    %p105 = scmp.ne.s32.totalorder %s93, %s94
    %p106 = scmp.eq.s32.totalorder %s16, 1
    %p107 = por %p105, %p106
    %p109 = scmp.ne.s32.totalorder %s94, %s108
    %p110 = scmp.eq.s32.totalorder %s16, 0
    %p111 = por %p109, %p110
    %s112 = ssub.s32 %s10, %s17
    %p113 = scmp.eq.s32.totalorder %s112, 0
    %s115 = sadd.s32 %s114, 1
    %s116 = scalar_select %p113, %s114, %s115
    %p119 = pneg %p113
    %p120 = scmp.eq.s32.totalorder %s10, 1
    %p121 = por %p119, %p120
    %p122 = scmp.ne.s32.totalorder %s114, %s117
    %p123 = scmp.eq.s32.totalorder %s10, 0
    %p124 = por %p122, %p123
    %p125 = scmp.ne.s32.totalorder %s114, %s117
    %p126 = scmp.eq.s32.totalorder %s15, 1
    %p127 = por %p125, %p126
    %p128 = scmp.ne.s32.totalorder %s117, %s118
    %p129 = scmp.eq.s32.totalorder %s15, 0
    %p130 = por %p128, %p129
    %p131 = scmp.ne.s32.totalorder %s117, %s118
    %p132 = scmp.eq.s32.totalorder %s16, 1
    %p133 = por %p131, %p132
    %p135 = scmp.ne.s32.totalorder %s118, %s134
    %p136 = scmp.eq.s32.totalorder %s16, 0
    %p137 = por %p135, %p136
    %p138 = scmp.le.s32.totalorder 1, %s10
    %p139 = scmp.lt.s32.totalorder %s10, 3
    %p140 = pnand %p138, %p139
    %p141 = pneg %p140
    // Predicated region
    $region9: #{res_block_type2.5} parent=5 // pred_check
      _
    $region10: #{res_block_type2.5} parent=5 // pred_check_branch
      %143 = sbr.rel (%p140) target = $region12
    $region11: #{res_block_type2.5} parent=5 // pred_region
      %s144 = ssub.s32 %s10, 1
      // Predicated region
      $region13: #{res_block_type2.5} parent=11 // pred_check
        %p145 = pneg %p83
      $region14: #{res_block_type2.5} parent=11 // pred_check_branch
        %147 = sbr.rel (%p145) target = $region16
      $region15: #{res_block_type2.5} parent=11 // pred_region
        _
      $region16: #{res_block_type2.5} parent=11 // pred_fallthru
        _
      // Predicated region
      $region17: #{res_block_type2.5} parent=11 // pred_check
        %p148 = pneg %p104
      $region18: #{res_block_type2.5} parent=11 // pred_check_branch
        %150 = sbr.rel (%p148) target = $region20
      $region19: #{res_block_type2.5} parent=11 // pred_region
        _
      $region20: #{res_block_type2.5} parent=11 // pred_fallthru
        _
    $region12: #{res_block_type2.5} parent=5 // pred_fallthru
      _
    %p151 = scmp.lt.s32.totalorder %s10, 2
    // Predicated region
    $region21: #{res_block_type2.5} parent=5 // pred_check
      %p152 = pneg %p151
    $region22: #{res_block_type2.5} parent=5 // pred_check_branch
      %154 = sbr.rel (%p152) target = $region24
    $region23: #{res_block_type2.5} parent=5 // pred_region
      // Predicated region
      $region25: #{res_block_type2.5} parent=23 // pred_check
        %p155 = pneg %p30
      $region26: #{res_block_type2.5} parent=23 // pred_check_branch
        %157 = sbr.rel (%p155) target = $region28
      $region27: #{res_block_type2.5} parent=23 // pred_region
        %p158 = scmp.lt.s32.totalorder %s10, 1
        %s159 = scalar_select %p158, %s10, 1
        %s160 = smul.addr %s159, 8
        %s161 = smul.addr %s160, 4
        %s162 = scalar_lea.vmem %s0, %s161
      $region28: #{res_block_type2.5} parent=23 // pred_fallthru
        _
      // Predicated region
      $region29: #{res_block_type2.5} parent=23 // pred_check
        %p163 = pneg %p56
      $region30: #{res_block_type2.5} parent=23 // pred_check_branch
        %165 = sbr.rel (%p163) target = $region32
      $region31: #{res_block_type2.5} parent=23 // pred_region
        %p166 = scmp.lt.s32.totalorder %s10, 1
        %s167 = scalar_select %p166, %s10, 1
        %s168 = smul.addr %s167, 8
        %s169 = smul.addr %s168, 4
        %s170 = scalar_lea.vmem %s1, %s169
      $region32: #{res_block_type2.5} parent=23 // pred_fallthru
        _
    $region24: #{res_block_type2.5} parent=5 // pred_fallthru
      _
    %p171 = scmp.le.s32.totalorder 1, %s10
    %p172 = scmp.lt.s32.totalorder %s10, 3
    %p173 = pnand %p171, %p172
    %p174 = pneg %p173
    // Predicated region
    $region33: #{res_block_type2.5} parent=5 // pred_check
      _
    $region34: #{res_block_type2.5} parent=5 // pred_check_branch
      %176 = sbr.rel (%p173) target = $region36
    $region35: #{res_block_type2.5} parent=5 // pred_region
      %s177 = ssub.s32 %s10, 1
      %p178 = scmp.lt.s32.totalorder %s15, 1
      %s179 = scalar_select %p178, %s15, 1
      %s180 = smul.addr %s179, 8
      %s181 = smul.addr %s180, 4
      %s182 = scalar_lea.vmem %s0, %s181
      %p183 = pneg %p36
      %p184 = pneg %p33
      %p185 = scmp.lt.s32.totalorder %s15, 1
      %s186 = scalar_select %p185, %s15, 1
      %s187 = smul.addr %s186, 8
      %s188 = smul.addr %s187, 4
      %s189 = scalar_lea.vmem %s1, %s188
      %p190 = pneg %p62
      %p191 = pneg %p59
      %p192 = pneg %p83
      %p193 = pneg %p80
      %p194 = pneg %p104
      %p195 = pneg %p101
      %p196 = pneg %p130
      %p197 = pneg %p127
      %p198 = scmp.lt.s32.totalorder %s15, 1
      %s199 = scalar_select %p198, %s15, 1
      %s200 = smul.addr %s199, 8
      %s201 = smul.addr %s200, 8
      %s202 = scalar_lea.vmem %s4, %s201
      %p203 = scmp.lt.s32.totalorder %s15, 1
      %s204 = scalar_select %p203, %s15, 1
      %s205 = smul.addr %s204, 8
      %s206 = smul.addr %s205, 4
      %s207 = scalar_lea.vmem %s0, %s206
      %p208 = scmp.lt.s32.totalorder %s15, 1
      %s209 = scalar_select %p208, %s15, 1
      %s210 = smul.addr %s209, 8
      %s211 = smul.addr %s210, 4
      %s212 = scalar_lea.vmem %s1, %s211
      %p213 = scmp.lt.s32.totalorder %s15, 1
      %s214 = scalar_select %p213, %s15, 1
      %s215 = smul.addr %s214, 8
      %s216 = smul.addr %s215, 8
      %s217 = scalar_lea.vmem %s4, %s216
      %v219 = vld [vmem:[%s212] sm:$0xf]
      %v220 = vld [vmem:[%s212 + $0x4] sm:$0xf]
      %v221 = vld [vmem:[%s212 + $0x8] sm:$0xf]
      %v222 = vld [vmem:[%s212 + $0xc] sm:$0xf]
      %v223 = vld [vmem:[%s212 + $0x10] sm:$0xf]
      %v224 = vld [vmem:[%s212 + $0x14] sm:$0xf]
      %v225 = vld [vmem:[%s212 + $0x18] sm:$0xf]
      %v226 = vld [vmem:[%s212 + $0x1c] sm:$0xf]
      %v227 = vld [vmem:[%s3] sm:$0x3]
      %v236 = vunpack.c.l.b16 %v219
      %v237 = vunpack.c.l.b16 %v220
      %v238 = vunpack.c.l.b16 %v221
      %v239 = vunpack.c.l.b16 %v222
      %v240 = vunpack.c.l.b16 %v223
      %v241 = vunpack.c.l.b16 %v224
      %v242 = vunpack.c.l.b16 %v225
      %v243 = vunpack.c.l.b16 %v226
      %v244 = vpack.c.b16 %v237, %v236
      %v245 = vpack.c.b16 %v239, %v238
      %v246 = vpack.c.b16 %v241, %v240
      %v247 = vpack.c.b16 %v243, %v242
      %vm248 = vcmask 31744
      %v250 = vsel %vm248, %v244, 0
      %v253 = vsel %vm248, %v245, 0
      %v256 = vsel %vm248, %v246, 0
      %v259 = vsel %vm248, %v247, 0
      %vm261 = vcmask 1041408
      %v263 = vsel %vm261, %v227, 0
      %265 = vmatprep.subr.bf16.mxu0 0
      %266 = vmatpush1.bf16.msra.mxu0 0
      %267 = vmatprep.subr.bf16.mxu0 0
      %268 = vmatpush1.bf16.msra.mxu0 0
      %269 = vmatprep.subr.bf16.mxu0 0
      %270 = vmatpush1.bf16.msra.mxu0 0
      %271 = vmatprep.subr.bf16.mxu0 0
      %272 = vmatpush1.bf16.msra.mxu0 0
      %273 = vmatprep.subr.bf16.mxu0 0
      %274 = vmatpush1.bf16.msra.mxu0 0
      %275 = vmatprep.subr.bf16.mxu0 0
      %276 = vmatpush1.bf16.msra.mxu0 0
      %277 = vmatprep.subr.bf16.mxu0 0
      %278 = vmatpush1.bf16.msra.mxu0 0
      %279 = vmatprep.subr.bf16.mxu0 0
      %280 = vmatpush1.bf16.msra.mxu0 %v263
      %281 = vmatprep.subr.bf16.mxu0 0
      %282 = vmatpush2.bf16.msra.mxu0 0
      %283 = vmatprep.subr.bf16.mxu0 0
      %284 = vmatpush2.bf16.msra.mxu0 0
      %285 = vmatprep.subr.bf16.mxu0 0
      %286 = vmatpush2.bf16.msra.mxu0 0
      %287 = vmatprep.subr.bf16.mxu0 0
      %288 = vmatpush2.bf16.msra.mxu0 0
      %289 = vmatprep.subr.bf16.mxu0 0
      %290 = vmatpush2.bf16.msra.mxu0 0
      %291 = vmatprep.subr.bf16.mxu0 0
      %292 = vmatpush2.bf16.msra.mxu0 0
      %293 = vmatprep.subr.bf16.mxu0 0
      %294 = vmatpush2.bf16.msra.mxu0 0
      %295 = vmatprep.subr.bf16.mxu0 0
      %296 = vmatpush2.bf16.msra.mxu0 0
      %297 = vmatprep.mubr.bf16.mxu0 0
      %298 = vmatmul.mubr.bf16.gmra.mxu0 %v250
      %v299 = vpop.f32.mrf.mxu0
      %v300 = vadd.f32 0.0, %v299
      %v301 = vpop.f32.mrf.mxu0
      %v302 = vpop.f32.mrf.mxu0
      %v303 = vadd.f32 0.0, %v302
      %v304 = vpop.f32.mrf.mxu0
      %305 = vmatprep.mubr.bf16.mxu0 0
      %306 = vmatmul.mubr.bf16.gmra.mxu0 %v253
      %v307 = vpop.f32.mrf.mxu0
      %v308 = vadd.f32 0.0, %v307
      %v309 = vpop.f32.mrf.mxu0
      %v310 = vpop.f32.mrf.mxu0
      %v311 = vadd.f32 0.0, %v310
      %v312 = vpop.f32.mrf.mxu0
      %313 = vmatprep.mubr.bf16.mxu0 0
      %314 = vmatmul.mubr.bf16.gmra.mxu0 %v256
      %v315 = vpop.f32.mrf.mxu0
      %v316 = vadd.f32 0.0, %v315
      %v317 = vpop.f32.mrf.mxu0
      %v318 = vpop.f32.mrf.mxu0
      %v319 = vadd.f32 0.0, %v318
      %v320 = vpop.f32.mrf.mxu0
      %321 = vmatprep.mubr.bf16.mxu0 0
      %322 = vmatmul.mubr.bf16.gmra.mxu0 %v259
      %v323 = vpop.f32.mrf.mxu0
      %v324 = vadd.f32 0.0, %v323
      %v325 = vpop.f32.mrf.mxu0
      %v326 = vpop.f32.mrf.mxu0
      %v327 = vadd.f32 0.0, %v326
      %v328 = vpop.f32.mrf.mxu0
      %329 = vdwg.mxu0
      %v330 = vld [vmem:[%s207] sm:$0xf]
      %v331 = vld [vmem:[%s207 + $0x4] sm:$0xf]
      %v332 = vld [vmem:[%s207 + $0x8] sm:$0xf]
      %v333 = vld [vmem:[%s207 + $0xc] sm:$0xf]
      %v334 = vld [vmem:[%s207 + $0x10] sm:$0xf]
      %v335 = vld [vmem:[%s207 + $0x14] sm:$0xf]
      %v336 = vld [vmem:[%s207 + $0x18] sm:$0xf]
      %v337 = vld [vmem:[%s207 + $0x1c] sm:$0xf]
      %v338 = vunpack.c.l.bf16 %v330
      %v339 = vunpack.c.l.bf16 %v331
      %v340 = vunpack.c.l.bf16 %v332
      %v341 = vunpack.c.l.bf16 %v333
      %v342 = vunpack.c.l.bf16 %v334
      %v343 = vunpack.c.l.bf16 %v335
      %v344 = vunpack.c.l.bf16 %v336
      %v345 = vunpack.c.l.bf16 %v337
      %v346 = vld [vmem:[%s2] sm:$0x1]
      %v347 = vlaneseq
      %v348 = vshrl.u32 %v347, 7
      %v349 = vsub.s32 0, %v348
      %v350 = vrot.slane %v346, %v349
      %v351 = vmul.f32 %v338, %v350
      %v352 = vmul.f32 %v339, %v350
      %v353 = vmul.f32 %v340, %v350
      %v354 = vmul.f32 %v341, %v350
      %v355 = vmul.f32 %v342, %v350
      %v356 = vmul.f32 %v343, %v350
      %v357 = vmul.f32 %v344, %v350
      %v358 = vmul.f32 %v345, %v350
      %v359 = vld [vmem:[%s2 + $0x1] sm:$0x1]
      %v360 = vlaneseq
      %v361 = vshrl.u32 %v360, 7
      %v362 = vsub.s32 0, %v361
      %v363 = vrot.slane %v359, %v362
      %v364 = vadd.f32 %v351, %v363
      %v365 = vadd.f32 %v352, %v363
      %v366 = vadd.f32 %v353, %v363
      %v367 = vadd.f32 %v354, %v363
      %v368 = vadd.f32 %v355, %v363
      %v369 = vadd.f32 %v356, %v363
      %v370 = vadd.f32 %v357, %v363
      %v371 = vadd.f32 %v358, %v363
      %v372 = vadd.f32 %v364, %v300
      %v373 = vadd.f32 %v365, %v303
      %v374 = vadd.f32 %v366, %v308
      %v375 = vadd.f32 %v367, %v311
      %v376 = vadd.f32 %v368, %v316
      %v377 = vadd.f32 %v369, %v319
      %v378 = vadd.f32 %v370, %v324
      %v379 = vadd.f32 %v371, %v327
      %v380 = vmax.f32 %v372, 0.0
      %v381 = vmax.f32 %v373, 0.0
      %v382 = vmax.f32 %v374, 0.0
      %v383 = vmax.f32 %v375, 0.0
      %v384 = vmax.f32 %v376, 0.0
      %v385 = vmax.f32 %v377, 0.0
      %v386 = vmax.f32 %v378, 0.0
      %v387 = vmax.f32 %v379, 0.0
      %388 = vst [vmem:[%s217] sm:$0xff] %v380
      %389 = vst [vmem:[%s217 + $0x8] sm:$0xff] %v381
      %390 = vst [vmem:[%s217 + $0x10] sm:$0xff] %v382
      %391 = vst [vmem:[%s217 + $0x18] sm:$0xff] %v383
      %392 = vst [vmem:[%s217 + $0x20] sm:$0xff] %v384
      %393 = vst [vmem:[%s217 + $0x28] sm:$0xff] %v385
      %394 = vst [vmem:[%s217 + $0x30] sm:$0xff] %v386
      %395 = vst [vmem:[%s217 + $0x38] sm:$0xff] %v387
      %p396 = scmp.lt.s32.totalorder %s15, 1
      %s397 = scalar_select %p396, %s15, 1
      %s398 = smul.addr %s397, 8
      %s399 = smul.addr %s398, 8
      %s400 = scalar_lea.vmem %s4, %s399
      // Predicated region
      $region37: #{res_block_type2.5} parent=35 // pred_check
        %p401 = pneg %p127
      $region38: #{res_block_type2.5} parent=35 // pred_check_branch
        %403 = sbr.rel (%p401) target = $region40
      $region39: #{res_block_type2.5} parent=35 // pred_region
        _
      $region40: #{res_block_type2.5} parent=35 // pred_fallthru
        _
    $region36: #{res_block_type2.5} parent=5 // pred_fallthru
      _
    %p404 = scmp.le.s32.totalorder 2, %s10
    // Predicated region
    $region41: #{res_block_type2.5} parent=5 // pred_check
      %p405 = pneg %p404
    $region42: #{res_block_type2.5} parent=5 // pred_check_branch
      %407 = sbr.rel (%p405) target = $region44
    $region43: #{res_block_type2.5} parent=5 // pred_region
      %s408 = ssub.s32 %s10, 2
      // Predicated region
      $region45: #{res_block_type2.5} parent=43 // pred_check
        %p409 = pneg %p133
      $region46: #{res_block_type2.5} parent=43 // pred_check_branch
        %411 = sbr.rel (%p409) target = $region48
      $region47: #{res_block_type2.5} parent=43 // pred_region
        %p412 = scmp.lt.s32.totalorder %s16, 1
        %s413 = scalar_select %p412, %s16, 1
        %s414 = smul.addr %s413, 8
        %s415 = smul.addr %s414, 8
        %s416 = scalar_lea.vmem %s4, %s415
      $region48: #{res_block_type2.5} parent=43 // pred_fallthru
        _
    $region44: #{res_block_type2.5} parent=5 // pred_fallthru
      _
  $region6: #{res_block_type2.5} parent=0 // loop_footer
    %s14 = sadd.s32 1, %s10
  $region7: #{res_block_type2.5} parent=0 // loop_footer_branch
    %9 = sbr.rel target = $region3
  $region8: #{res_block_type2.5} parent=0 // loop_exit
    _

// kernel: res_block_type2.4
$region0: #{res_block_type2.4}
  #allocation0 [shape = 'u32[]', space=smem, size = 0x4, offset = 0x4, fixed_abs, tag = 'smem constant byte address 0x4 - core index']
  #allocation1 [shape = 'u32[144,128]{1,0:T(1,128)}', space=vmem, size = 0x12000, scoped, tag = 'internal scratch']
  %s0 = inlined_call_operand.vmem [shape: bf16[2,10,10,128], index: 0, kind: input, shape index: {}]
  %s1 = inlined_call_operand.vmem [shape: f32[2,128], index: 1, kind: input, shape index: {}]
  %s2 = inlined_call_operand.vmem [shape: bf16[9,128,128], index: 2, kind: input, shape index: {}]
  %s3 = inlined_call_operand.vmem [shape: bf16[2,64,128], index: 3, kind: output, shape index: {0}]
  %s4 = inlined_call_operand.vmem [shape: f32[2,2,128], index: 4, kind: output, shape index: {1}]
  %5 = xla_tuple %s3, %s4
  %s6 = sld [smem:[#allocation0]]
  $region53: #{res_block_type2.4} parent=0
    _
  %s8 = ssub.s32 1, %s6
  %s9 = scalar_select 0, %s8, %s6
  loop: start=0, step=1, limit=4
  $region2: #{res_block_type2.4} parent=0 // loop_pre_header
    _
  $region3: #{res_block_type2.4} parent=0 // loop_header
    %s11 = sphi 0, %s15
    %p12 = scmp.ge.s32.totalorder %s11, 4
    %s21 = sphi 0, %s23
    %s24 = sphi 0, %s21
    %s25 = sphi 0, %s24
    %s41 = sphi 0, %s25
    %s45 = sphi 0, %s45
    %s47 = sphi 0, %s45
    %s48 = sphi 0, %s47
    %s62 = sphi 0, %s48
    %s66 = sphi 0, %s66
    %s68 = sphi 0, %s66
    %s69 = sphi 0, %s68
    %s83 = sphi 0, %s69
    %s89 = sphi 0, %s91
    %s92 = sphi 0, %s89
    %s93 = sphi 0, %s92
    %s109 = sphi 0, %s93
    %s115 = sphi 0, %s117
    %s118 = sphi 0, %s115
    %s119 = sphi 0, %s118
    %s135 = sphi 0, %s119
  $region4: #{res_block_type2.4} parent=0 // loop_header_branch
    %14 = sbr.rel (%p12) target = $region8
  $region5: #{res_block_type2.4} parent=0 // loop_body
    %s16 = ssub.s32 %s11, 1
    %s17 = ssub.s32 %s11, 2
    %s18 = sadd.s32 %s11, 1
    %s19 = ssub.s32 %s11, %s18
    %p20 = scmp.eq.s32.totalorder %s19, 0
    %s22 = sadd.s32 %s21, 1
    %s23 = scalar_select %p20, %s21, %s22
    %p26 = pneg %p20
    %p27 = scmp.eq.s32.totalorder %s11, 1
    %p28 = por %p26, %p27
    %p29 = scmp.ne.s32.totalorder %s21, %s24
    %p30 = scmp.eq.s32.totalorder %s11, 0
    %p31 = por %p29, %p30
    %p32 = scmp.ne.s32.totalorder %s21, %s24
    %p33 = scmp.eq.s32.totalorder %s16, 1
    %p34 = por %p32, %p33
    %p35 = scmp.ne.s32.totalorder %s24, %s25
    %p36 = scmp.eq.s32.totalorder %s16, 0
    %p37 = por %p35, %p36
    %p38 = scmp.ne.s32.totalorder %s24, %s25
    %p39 = scmp.eq.s32.totalorder %s17, 1
    %p40 = por %p38, %p39
    %p42 = scmp.ne.s32.totalorder %s25, %s41
    %p43 = scmp.eq.s32.totalorder %s17, 0
    %p44 = por %p42, %p43
    %s46 = sadd.s32 %s45, 1
    %p49 = scmp.eq.s32.totalorder %s11, 1
    %p50 = scmp.ne.s32.totalorder %s45, %s47
    %p51 = scmp.eq.s32.totalorder %s11, 0
    %p52 = por %p50, %p51
    %p53 = scmp.ne.s32.totalorder %s45, %s47
    %p54 = scmp.eq.s32.totalorder %s16, 1
    %p55 = por %p53, %p54
    %p56 = scmp.ne.s32.totalorder %s47, %s48
    %p57 = scmp.eq.s32.totalorder %s16, 0
    %p58 = por %p56, %p57
    %p59 = scmp.ne.s32.totalorder %s47, %s48
    %p60 = scmp.eq.s32.totalorder %s17, 1
    %p61 = por %p59, %p60
    %p63 = scmp.ne.s32.totalorder %s48, %s62
    %p64 = scmp.eq.s32.totalorder %s17, 0
    %p65 = por %p63, %p64
    %s67 = sadd.s32 %s66, 1
    %p70 = scmp.eq.s32.totalorder %s11, 1
    %p71 = scmp.ne.s32.totalorder %s66, %s68
    %p72 = scmp.eq.s32.totalorder %s11, 0
    %p73 = por %p71, %p72
    %p74 = scmp.ne.s32.totalorder %s66, %s68
    %p75 = scmp.eq.s32.totalorder %s16, 1
    %p76 = por %p74, %p75
    %p77 = scmp.ne.s32.totalorder %s68, %s69
    %p78 = scmp.eq.s32.totalorder %s16, 0
    %p79 = por %p77, %p78
    %p80 = scmp.ne.s32.totalorder %s68, %s69
    %p81 = scmp.eq.s32.totalorder %s17, 1
    %p82 = por %p80, %p81
    %p84 = scmp.ne.s32.totalorder %s69, %s83
    %p85 = scmp.eq.s32.totalorder %s17, 0
    %p86 = por %p84, %p85
    %s87 = ssub.s32 %s11, %s18
    %p88 = scmp.eq.s32.totalorder %s87, 0
    %s90 = sadd.s32 %s89, 1
    %s91 = scalar_select %p88, %s89, %s90
    %p94 = pneg %p88
    %p95 = scmp.eq.s32.totalorder %s11, 1
    %p96 = por %p94, %p95
    %p97 = scmp.ne.s32.totalorder %s89, %s92
    %p98 = scmp.eq.s32.totalorder %s11, 0
    %p99 = por %p97, %p98
    %p100 = scmp.ne.s32.totalorder %s89, %s92
    %p101 = scmp.eq.s32.totalorder %s16, 1
    %p102 = por %p100, %p101
    %p103 = scmp.ne.s32.totalorder %s92, %s93
    %p104 = scmp.eq.s32.totalorder %s16, 0
    %p105 = por %p103, %p104
    %p106 = scmp.ne.s32.totalorder %s92, %s93
    %p107 = scmp.eq.s32.totalorder %s17, 1
    %p108 = por %p106, %p107
    %p110 = scmp.ne.s32.totalorder %s93, %s109
    %p111 = scmp.eq.s32.totalorder %s17, 0
    %p112 = por %p110, %p111
    %s113 = ssub.s32 %s11, %s18
    %p114 = scmp.eq.s32.totalorder %s113, 0
    %s116 = sadd.s32 %s115, 1
    %s117 = scalar_select %p114, %s115, %s116
    %p120 = pneg %p114
    %p121 = scmp.eq.s32.totalorder %s11, 1
    %p122 = por %p120, %p121
    %p123 = scmp.ne.s32.totalorder %s115, %s118
    %p124 = scmp.eq.s32.totalorder %s11, 0
    %p125 = por %p123, %p124
    %p126 = scmp.ne.s32.totalorder %s115, %s118
    %p127 = scmp.eq.s32.totalorder %s16, 1
    %p128 = por %p126, %p127
    %p129 = scmp.ne.s32.totalorder %s118, %s119
    %p130 = scmp.eq.s32.totalorder %s16, 0
    %p131 = por %p129, %p130
    %p132 = scmp.ne.s32.totalorder %s118, %s119
    %p133 = scmp.eq.s32.totalorder %s17, 1
    %p134 = por %p132, %p133
    %p136 = scmp.ne.s32.totalorder %s119, %s135
    %p137 = scmp.eq.s32.totalorder %s17, 0
    %p138 = por %p136, %p137
    %p139 = scmp.le.s32.totalorder 1, %s11
    %p140 = scmp.lt.s32.totalorder %s11, 3
    %p141 = pnand %p139, %p140
    %p142 = pneg %p141
    // Predicated region
    $region9: #{res_block_type2.4} parent=5 // pred_check
      _
    $region10: #{res_block_type2.4} parent=5 // pred_check_branch
      %144 = sbr.rel (%p141) target = $region12
    $region11: #{res_block_type2.4} parent=5 // pred_region
      %s145 = ssub.s32 %s11, 1
      // Predicated region
      $region13: #{res_block_type2.4} parent=11 // pred_check
        %p146 = pneg %p58
      $region14: #{res_block_type2.4} parent=11 // pred_check_branch
        %148 = sbr.rel (%p146) target = $region16
      $region15: #{res_block_type2.4} parent=11 // pred_region
        _
      $region16: #{res_block_type2.4} parent=11 // pred_fallthru
        _
      // Predicated region
      $region17: #{res_block_type2.4} parent=11 // pred_check
        %p149 = pneg %p79
      $region18: #{res_block_type2.4} parent=11 // pred_check_branch
        %151 = sbr.rel (%p149) target = $region20
      $region19: #{res_block_type2.4} parent=11 // pred_region
        _
      $region20: #{res_block_type2.4} parent=11 // pred_fallthru
        _
    $region12: #{res_block_type2.4} parent=5 // pred_fallthru
      _
    %p152 = scmp.lt.s32.totalorder %s11, 2
    // Predicated region
    $region21: #{res_block_type2.4} parent=5 // pred_check
      %p153 = pneg %p152
    $region22: #{res_block_type2.4} parent=5 // pred_check_branch
      %155 = sbr.rel (%p153) target = $region24
    $region23: #{res_block_type2.4} parent=5 // pred_region
      // Predicated region
      $region25: #{res_block_type2.4} parent=23 // pred_check
        %p156 = pneg %p31
      $region26: #{res_block_type2.4} parent=23 // pred_check_branch
        %158 = sbr.rel (%p156) target = $region28
      $region27: #{res_block_type2.4} parent=23 // pred_region
        %p159 = scmp.lt.s32.totalorder %s11, 1
        %s160 = scalar_select %p159, %s11, 1
        %s161 = smul.addr %s160, 20
        %s162 = smul.addr %s161, 4
        %s163 = scalar_lea.vmem %s0, %s162
      $region28: #{res_block_type2.4} parent=23 // pred_fallthru
        _
    $region24: #{res_block_type2.4} parent=5 // pred_fallthru
      _
    %p164 = scmp.le.s32.totalorder 1, %s11
    %p165 = scmp.lt.s32.totalorder %s11, 3
    %p166 = pnand %p164, %p165
    %p167 = pneg %p166
    // Predicated region
    $region29: #{res_block_type2.4} parent=5 // pred_check
      _
    $region30: #{res_block_type2.4} parent=5 // pred_check_branch
      %169 = sbr.rel (%p166) target = $region32
    $region31: #{res_block_type2.4} parent=5 // pred_region
      %s170 = ssub.s32 %s11, 1
      %p171 = scmp.lt.s32.totalorder %s16, 1
      %s172 = scalar_select %p171, %s16, 1
      %s173 = smul.addr %s172, 20
      %s174 = smul.addr %s173, 4
      %s175 = scalar_lea.vmem %s0, %s174
      %p176 = pneg %p37
      %p177 = pneg %p34
      %p178 = pneg %p58
      %p179 = pneg %p55
      %p180 = pneg %p79
      %p181 = pneg %p76
      %p182 = pneg %p105
      %p183 = pneg %p102
      %p184 = scmp.lt.s32.totalorder %s16, 1
      %s185 = scalar_select %p184, %s16, 1
      %s186 = smul.addr %s185, 8
      %s187 = smul.addr %s186, 4
      %s188 = scalar_lea.vmem %s3, %s187
      %p189 = pneg %p131
      %p190 = pneg %p128
      %p191 = scmp.lt.s32.totalorder %s16, 1
      %s192 = scalar_select %p191, %s16, 1
      %s193 = smul.addr %s192, 2
      %s194 = scalar_lea.vmem %s4, %s193
      %p195 = scmp.lt.s32.totalorder %s16, 1
      %s196 = scalar_select %p195, %s16, 1
      %s197 = smul.addr %s196, 20
      %s198 = smul.addr %s197, 4
      %s199 = scalar_lea.vmem %s0, %s198
      %p200 = scmp.lt.s32.totalorder %s16, 1
      %s201 = scalar_select %p200, %s16, 1
      %s202 = smul.addr %s201, 8
      %s203 = smul.addr %s202, 4
      %s204 = scalar_lea.vmem %s3, %s203
      %p205 = scmp.lt.s32.totalorder %s16, 1
      %s206 = scalar_select %p205, %s16, 1
      %s207 = smul.addr %s206, 2
      %s208 = scalar_lea.vmem %s4, %s207
      %v210 = vld [vmem:[%s1] sm:$0x1]
      %v211 = vld [vmem:[%s1 + $0x1] sm:$0x1]
      %v212 = vld [vmem:[%s199] sm:$0xf]
      %v213 = vld [vmem:[%s199 + $0x4] sm:$0x1]
      %v214 = vld [vmem:[%s199 + $0x8] sm:$0xf]
      %v215 = vld [vmem:[%s199 + $0xc] sm:$0x1]
      %v216 = vld [vmem:[%s199 + $0x10] sm:$0xf]
      %v217 = vld [vmem:[%s199 + $0x14] sm:$0x1]
      %v218 = vld [vmem:[%s199 + $0x18] sm:$0xf]
      %v219 = vld [vmem:[%s199 + $0x1c] sm:$0x1]
      %v220 = vld [vmem:[%s199 + $0x20] sm:$0xf]
      %v221 = vld [vmem:[%s199 + $0x24] sm:$0x1]
      %v222 = vld [vmem:[%s199 + $0x28] sm:$0xf]
      %v223 = vld [vmem:[%s199 + $0x2c] sm:$0x1]
      %v224 = vld [vmem:[%s199 + $0x30] sm:$0xf]
      %v225 = vld [vmem:[%s199 + $0x34] sm:$0x1]
      %v226 = vld [vmem:[%s199 + $0x38] sm:$0xf]
      %v227 = vld [vmem:[%s199 + $0x3c] sm:$0x1]
      %v228 = vld [vmem:[%s199 + $0x40] sm:$0xf]
      %v229 = vld [vmem:[%s199 + $0x44] sm:$0x1]
      %v230 = vld [vmem:[%s199 + $0x48] sm:$0xf]
      %v231 = vld [vmem:[%s199 + $0x4c] sm:$0x1]
      %v232 = vunpack.c.l.bf16 %v212
      %v233 = vunpack.c.l.bf16 %v213
      %v234 = vunpack.c.l.bf16 %v214
      %v235 = vunpack.c.l.bf16 %v215
      %v236 = vunpack.c.l.bf16 %v216
      %v237 = vunpack.c.l.bf16 %v217
      %v238 = vunpack.c.l.bf16 %v218
      %v239 = vunpack.c.l.bf16 %v219
      %v240 = vunpack.c.l.bf16 %v220
      %v241 = vunpack.c.l.bf16 %v221
      %v242 = vunpack.c.l.bf16 %v222
      %v243 = vunpack.c.l.bf16 %v223
      %v244 = vunpack.c.l.bf16 %v224
      %v245 = vunpack.c.l.bf16 %v225
      %v246 = vunpack.c.l.bf16 %v226
      %v247 = vunpack.c.l.bf16 %v227
      %v248 = vunpack.c.l.bf16 %v228
      %v249 = vunpack.c.l.bf16 %v229
      %v250 = vunpack.c.l.bf16 %v230
      %v251 = vunpack.c.l.bf16 %v231
      %v252 = vlaneseq
      %v253 = vshrl.u32 %v252, 7
      %v254 = vsub.s32 0, %v253
      %v255 = vrot.slane %v210, %v254
      %v256 = vmul.f32 %v232, %v255
      %v257 = vmul.f32 %v233, %v255
      %v258 = vmul.f32 %v234, %v255
      %v259 = vmul.f32 %v235, %v255
      %v260 = vmul.f32 %v236, %v255
      %v261 = vmul.f32 %v237, %v255
      %v262 = vmul.f32 %v238, %v255
      %v263 = vmul.f32 %v239, %v255
      %v264 = vmul.f32 %v240, %v255
      %v265 = vmul.f32 %v241, %v255
      %v266 = vmul.f32 %v242, %v255
      %v267 = vmul.f32 %v243, %v255
      %v268 = vmul.f32 %v244, %v255
      %v269 = vmul.f32 %v245, %v255
      %v270 = vmul.f32 %v246, %v255
      %v271 = vmul.f32 %v247, %v255
      %v272 = vmul.f32 %v248, %v255
      %v273 = vmul.f32 %v249, %v255
      %v274 = vmul.f32 %v250, %v255
      %v275 = vmul.f32 %v251, %v255
      %v276 = vlaneseq
      %v277 = vshrl.u32 %v276, 7
      %v278 = vsub.s32 0, %v277
      %v279 = vrot.slane %v211, %v278
      %v280 = vadd.f32 %v256, %v279
      %v281 = vadd.f32 %v257, %v279
      %v282 = vadd.f32 %v258, %v279
      %v283 = vadd.f32 %v259, %v279
      %v284 = vadd.f32 %v260, %v279
      %v285 = vadd.f32 %v261, %v279
      %v286 = vadd.f32 %v262, %v279
      %v287 = vadd.f32 %v263, %v279
      %v288 = vadd.f32 %v264, %v279
      %v289 = vadd.f32 %v265, %v279
      %v290 = vadd.f32 %v266, %v279
      %v291 = vadd.f32 %v267, %v279
      %v292 = vadd.f32 %v268, %v279
      %v293 = vadd.f32 %v269, %v279
      %v294 = vadd.f32 %v270, %v279
      %v295 = vadd.f32 %v271, %v279
      %v296 = vadd.f32 %v272, %v279
      %v297 = vadd.f32 %v273, %v279
      %v298 = vadd.f32 %v274, %v279
      %v299 = vadd.f32 %v275, %v279
      %v300 = vmax.f32 %v280, 0.0
      %v301 = vmax.f32 %v281, 0.0
      %v302 = vmax.f32 %v282, 0.0
      %v303 = vmax.f32 %v283, 0.0
      %v304 = vmax.f32 %v284, 0.0
      %v305 = vmax.f32 %v285, 0.0
      %v306 = vmax.f32 %v286, 0.0
      %v307 = vmax.f32 %v287, 0.0
      %v308 = vmax.f32 %v288, 0.0
      %v309 = vmax.f32 %v289, 0.0
      %v310 = vmax.f32 %v290, 0.0
      %v311 = vmax.f32 %v291, 0.0
      %v312 = vmax.f32 %v292, 0.0
      %v313 = vmax.f32 %v293, 0.0
      %v314 = vmax.f32 %v294, 0.0
      %v315 = vmax.f32 %v295, 0.0
      %v316 = vmax.f32 %v296, 0.0
      %v317 = vmax.f32 %v297, 0.0
      %v318 = vmax.f32 %v298, 0.0
      %v319 = vmax.f32 %v299, 0.0
      %v320 = vlaneseq
      %v321 = vshrl.u32 %v320, 7
      %v322 = vadd.s32 %v321, 8
      %vm323 = vcmp.ge.s32.totalorder %v321, 1
      %vm324 = vcmp.ge.s32.totalorder %v322, 1
      %vm325 = vmand 0, %vm323
      %vm326 = vmand 0, %vm324
      %vm327 = vmand 1, %vm323
      %vm328 = vmand 1, %vm324
      %vm329 = vcmp.le.s32.totalorder %v321, 8
      %vm330 = vcmp.le.s32.totalorder %v322, 8
      %vm331 = vmand %vm325, %vm329
      %vm332 = vmand %vm326, %vm330
      %vm333 = vmand %vm327, %vm329
      %vm334 = vmand %vm328, %vm330
      %v335 = vsel %vm331, %v300, 0.0
      %v336 = vsel %vm332, %v301, 0.0
      %v337 = vsel %vm333, %v302, 0.0
      %v338 = vsel %vm334, %v303, 0.0
      %v339 = vsel %vm333, %v304, 0.0
      %v340 = vsel %vm334, %v305, 0.0
      %v341 = vsel %vm333, %v306, 0.0
      %v342 = vsel %vm334, %v307, 0.0
      %v343 = vsel %vm333, %v308, 0.0
      %v344 = vsel %vm334, %v309, 0.0
      %v345 = vsel %vm333, %v310, 0.0
      %v346 = vsel %vm334, %v311, 0.0
      %v347 = vsel %vm333, %v312, 0.0
      %v348 = vsel %vm334, %v313, 0.0
      %v349 = vsel %vm333, %v314, 0.0
      %v350 = vsel %vm334, %v315, 0.0
      %v351 = vsel %vm333, %v316, 0.0
      %v352 = vsel %vm334, %v317, 0.0
      %v353 = vsel %vm331, %v318, 0.0
      %v354 = vsel %vm332, %v319, 0.0
      %v355 = vpack.c.bf16 %v337, %v335
      %v356 = vpack.c.bf16 %v341, %v339
      %v357 = vpack.c.bf16 %v345, %v343
      %v358 = vpack.c.bf16 %v349, %v347
      %v359 = vld [vmem:[%s2] sm:$0xf]
      %v360 = vld [vmem:[%s2 + $0x4] sm:$0xf]
      %v361 = vld [vmem:[%s2 + $0x8] sm:$0xf]
      %v362 = vld [vmem:[%s2 + $0xc] sm:$0xf]
      %v363 = vld [vmem:[%s2 + $0x10] sm:$0xf]
      %v364 = vld [vmem:[%s2 + $0x14] sm:$0xf]
      %v365 = vld [vmem:[%s2 + $0x18] sm:$0xf]
      %v366 = vld [vmem:[%s2 + $0x1c] sm:$0xf]
      %v367 = vld [vmem:[%s2 + $0x20] sm:$0xf]
      %v368 = vld [vmem:[%s2 + $0x24] sm:$0xf]
      %v369 = vld [vmem:[%s2 + $0x28] sm:$0xf]
      %v370 = vld [vmem:[%s2 + $0x2c] sm:$0xf]
      %v371 = vld [vmem:[%s2 + $0x30] sm:$0xf]
      %v372 = vld [vmem:[%s2 + $0x34] sm:$0xf]
      %v373 = vld [vmem:[%s2 + $0x38] sm:$0xf]
      %v374 = vld [vmem:[%s2 + $0x3c] sm:$0xf]
      %vm391 = vcmask 1046528
      %v392 = vrot.slane %v335, 1
      %v393 = vrot.slane %v336, 1
      %v394 = vsel %vm391, %v392, %v393
      %v395 = vrot.slane %v337, 1
      %v396 = vrot.slane %v338, 1
      %v397 = vsel %vm391, %v395, %v396
      %v398 = vrot.slane %v339, 1
      %v399 = vrot.slane %v340, 1
      %v400 = vsel %vm391, %v398, %v399
      %v401 = vrot.slane %v341, 1
      %v402 = vrot.slane %v342, 1
      %v403 = vsel %vm391, %v401, %v402
      %v404 = vrot.slane %v343, 1
      %v405 = vrot.slane %v344, 1
      %v406 = vsel %vm391, %v404, %v405
      %v407 = vrot.slane %v345, 1
      %v408 = vrot.slane %v346, 1
      %v409 = vsel %vm391, %v407, %v408
      %v410 = vrot.slane %v347, 1
      %v411 = vrot.slane %v348, 1
      %v412 = vsel %vm391, %v410, %v411
      %v413 = vrot.slane %v349, 1
      %v414 = vrot.slane %v350, 1
      %v415 = vsel %vm391, %v413, %v414
      %v424 = vpack.c.bf16 %v397, %v394
      %v425 = vpack.c.bf16 %v403, %v400
      %v426 = vpack.c.bf16 %v409, %v406
      %v427 = vpack.c.bf16 %v415, %v412
      %s428 = scalar_lea.vmem %s2, 64
      %v429 = vld [vmem:[%s428] sm:$0xf]
      %v430 = vld [vmem:[%s428 + $0x4] sm:$0xf]
      %v431 = vld [vmem:[%s428 + $0x8] sm:$0xf]
      %v432 = vld [vmem:[%s428 + $0xc] sm:$0xf]
      %v433 = vld [vmem:[%s428 + $0x10] sm:$0xf]
      %v434 = vld [vmem:[%s428 + $0x14] sm:$0xf]
      %v435 = vld [vmem:[%s428 + $0x18] sm:$0xf]
      %v436 = vld [vmem:[%s428 + $0x1c] sm:$0xf]
      %v437 = vld [vmem:[%s428 + $0x20] sm:$0xf]
      %v438 = vld [vmem:[%s428 + $0x24] sm:$0xf]
      %v439 = vld [vmem:[%s428 + $0x28] sm:$0xf]
      %v440 = vld [vmem:[%s428 + $0x2c] sm:$0xf]
      %v441 = vld [vmem:[%s428 + $0x30] sm:$0xf]
      %v442 = vld [vmem:[%s428 + $0x34] sm:$0xf]
      %v443 = vld [vmem:[%s428 + $0x38] sm:$0xf]
      %v444 = vld [vmem:[%s428 + $0x3c] sm:$0xf]
      %v461 = vunpack.c.l.b16 %v429
      %v462 = vunpack.c.l.b16 %v430
      %v463 = vunpack.c.l.b16 %v431
      %v464 = vunpack.c.l.b16 %v432
      %v465 = vunpack.c.l.b16 %v433
      %v466 = vunpack.c.l.b16 %v434
      %v467 = vunpack.c.l.b16 %v435
      %v468 = vunpack.c.l.b16 %v436
      %v469 = vunpack.c.l.b16 %v437
      %v470 = vunpack.c.l.b16 %v438
      %v471 = vunpack.c.l.b16 %v439
      %v472 = vunpack.c.l.b16 %v440
      %v473 = vunpack.c.l.b16 %v441
      %v474 = vunpack.c.l.b16 %v442
      %v475 = vunpack.c.l.b16 %v443
      %v476 = vunpack.c.l.b16 %v444
      %v477 = vpack.c.b16 %v462, %v461
      %v478 = vpack.c.b16 %v464, %v463
      %v479 = vpack.c.b16 %v466, %v465
      %v480 = vpack.c.b16 %v468, %v467
      %v481 = vpack.c.b16 %v470, %v469
      %v482 = vpack.c.b16 %v472, %v471
      %v483 = vpack.c.b16 %v474, %v473
      %v484 = vpack.c.b16 %v476, %v475
      %493 = vmatprep.subr.bf16.mxu0 0
      %494 = vmatpush1.bf16.msra.mxu0 %v484
      %495 = vmatprep.subr.bf16.mxu0 0
      %496 = vmatpush1.bf16.msra.mxu0 %v483
      %497 = vmatprep.subr.bf16.mxu0 0
      %498 = vmatpush1.bf16.msra.mxu0 %v482
      %499 = vmatprep.subr.bf16.mxu0 0
      %500 = vmatpush1.bf16.msra.mxu0 %v481
      %501 = vmatprep.subr.bf16.mxu0 0
      %502 = vmatpush1.bf16.msra.mxu0 %v480
      %503 = vmatprep.subr.bf16.mxu0 0
      %504 = vmatpush1.bf16.msra.mxu0 %v479
      %505 = vmatprep.subr.bf16.mxu0 0
      %506 = vmatpush1.bf16.msra.mxu0 %v478
      %507 = vmatprep.subr.bf16.mxu0 0
      %508 = vmatpush1.bf16.msra.mxu0 %v477
      %509 = vmatprep.subr.bf16.mxu0 0
      %510 = vmatpush2.bf16.msra.mxu0 0
      %511 = vmatprep.subr.bf16.mxu0 0
      %512 = vmatpush2.bf16.msra.mxu0 0
      %513 = vmatprep.subr.bf16.mxu0 0
      %514 = vmatpush2.bf16.msra.mxu0 0
      %515 = vmatprep.subr.bf16.mxu0 0
      %516 = vmatpush2.bf16.msra.mxu0 0
      %517 = vmatprep.subr.bf16.mxu0 0
      %518 = vmatpush2.bf16.msra.mxu0 0
      %519 = vmatprep.subr.bf16.mxu0 0
      %520 = vmatpush2.bf16.msra.mxu0 0
      %521 = vmatprep.subr.bf16.mxu0 0
      %522 = vmatpush2.bf16.msra.mxu0 0
      %523 = vmatprep.subr.bf16.mxu0 0
      %524 = vmatpush2.bf16.msra.mxu0 0
      %525 = vmatprep.mubr.bf16.mxu0 0
      %526 = vmatmul.mubr.bf16.gmra.mxu0 %v424
      %v527 = vpop.f32.mrf.mxu0
      %v528 = vadd.f32 0.0, %v527
      %v529 = vpop.f32.mrf.mxu0
      %v530 = vpop.f32.mrf.mxu0
      %v531 = vadd.f32 0.0, %v530
      %v532 = vpop.f32.mrf.mxu0
      %533 = vmatprep.mubr.bf16.mxu0 0
      %534 = vmatmul.mubr.bf16.gmra.mxu0 %v425
      %v535 = vpop.f32.mrf.mxu0
      %v536 = vadd.f32 0.0, %v535
      %v537 = vpop.f32.mrf.mxu0
      %v538 = vpop.f32.mrf.mxu0
      %v539 = vadd.f32 0.0, %v538
      %v540 = vpop.f32.mrf.mxu0
      %541 = vmatprep.mubr.bf16.mxu0 0
      %542 = vmatmul.mubr.bf16.gmra.mxu0 %v426
      %v543 = vpop.f32.mrf.mxu0
      %v544 = vadd.f32 0.0, %v543
      %v545 = vpop.f32.mrf.mxu0
      %v546 = vpop.f32.mrf.mxu0
      %v547 = vadd.f32 0.0, %v546
      %v548 = vpop.f32.mrf.mxu0
      %549 = vmatprep.mubr.bf16.mxu0 0
      %550 = vmatmul.mubr.bf16.gmra.mxu0 %v427
      %v551 = vpop.f32.mrf.mxu0
      %v552 = vadd.f32 0.0, %v551
      %v553 = vpop.f32.mrf.mxu0
      %v554 = vpop.f32.mrf.mxu0
      %v555 = vadd.f32 0.0, %v554
      %v556 = vpop.f32.mrf.mxu0
      %557 = vdwg.mxu0
      %v574 = vunpack.c.l.b16 %v359
      %v575 = vunpack.c.l.b16 %v360
      %v576 = vunpack.c.l.b16 %v361
      %v577 = vunpack.c.l.b16 %v362
      %v578 = vunpack.c.l.b16 %v363
      %v579 = vunpack.c.l.b16 %v364
      %v580 = vunpack.c.l.b16 %v365
      %v581 = vunpack.c.l.b16 %v366
      %v582 = vunpack.c.l.b16 %v367
      %v583 = vunpack.c.l.b16 %v368
      %v584 = vunpack.c.l.b16 %v369
      %v585 = vunpack.c.l.b16 %v370
      %v586 = vunpack.c.l.b16 %v371
      %v587 = vunpack.c.l.b16 %v372
      %v588 = vunpack.c.l.b16 %v373
      %v589 = vunpack.c.l.b16 %v374
      %v590 = vpack.c.b16 %v575, %v574
      %v591 = vpack.c.b16 %v577, %v576
      %v592 = vpack.c.b16 %v579, %v578
      %v593 = vpack.c.b16 %v581, %v580
      %v594 = vpack.c.b16 %v583, %v582
      %v595 = vpack.c.b16 %v585, %v584
      %v596 = vpack.c.b16 %v587, %v586
      %v597 = vpack.c.b16 %v589, %v588
      %606 = vmatprep.subr.bf16.mxu0 0
      %607 = vmatpush1.bf16.msra.mxu0 %v597
      %608 = vmatprep.subr.bf16.mxu0 0
      %609 = vmatpush1.bf16.msra.mxu0 %v596
      %610 = vmatprep.subr.bf16.mxu0 0
      %611 = vmatpush1.bf16.msra.mxu0 %v595
      %612 = vmatprep.subr.bf16.mxu0 0
      %613 = vmatpush1.bf16.msra.mxu0 %v594
      %614 = vmatprep.subr.bf16.mxu0 0
      %615 = vmatpush1.bf16.msra.mxu0 %v593
      %616 = vmatprep.subr.bf16.mxu0 0
      %617 = vmatpush1.bf16.msra.mxu0 %v592
      %618 = vmatprep.subr.bf16.mxu0 0
      %619 = vmatpush1.bf16.msra.mxu0 %v591
      %620 = vmatprep.subr.bf16.mxu0 0
      %621 = vmatpush1.bf16.msra.mxu0 %v590
      %622 = vmatprep.subr.bf16.mxu0 0
      %623 = vmatpush2.bf16.msra.mxu0 0
      %624 = vmatprep.subr.bf16.mxu0 0
      %625 = vmatpush2.bf16.msra.mxu0 0
      %626 = vmatprep.subr.bf16.mxu0 0
      %627 = vmatpush2.bf16.msra.mxu0 0
      %628 = vmatprep.subr.bf16.mxu0 0
      %629 = vmatpush2.bf16.msra.mxu0 0
      %630 = vmatprep.subr.bf16.mxu0 0
      %631 = vmatpush2.bf16.msra.mxu0 0
      %632 = vmatprep.subr.bf16.mxu0 0
      %633 = vmatpush2.bf16.msra.mxu0 0
      %634 = vmatprep.subr.bf16.mxu0 0
      %635 = vmatpush2.bf16.msra.mxu0 0
      %636 = vmatprep.subr.bf16.mxu0 0
      %637 = vmatpush2.bf16.msra.mxu0 0
      %638 = vmatprep.mubr.bf16.mxu0 0
      %639 = vmatmul.mubr.bf16.gmra.mxu0 %v355
      %v640 = vpop.f32.mrf.mxu0
      %v641 = vadd.f32 %v528, %v640
      %v642 = vpop.f32.mrf.mxu0
      %v643 = vpop.f32.mrf.mxu0
      %v644 = vadd.f32 %v531, %v643
      %v645 = vpop.f32.mrf.mxu0
      %646 = vmatprep.mubr.bf16.mxu0 0
      %647 = vmatmul.mubr.bf16.gmra.mxu0 %v356
      %v648 = vpop.f32.mrf.mxu0
      %v649 = vadd.f32 %v536, %v648
      %v650 = vpop.f32.mrf.mxu0
      %v651 = vpop.f32.mrf.mxu0
      %v652 = vadd.f32 %v539, %v651
      %v653 = vpop.f32.mrf.mxu0
      %654 = vmatprep.mubr.bf16.mxu0 0
      %655 = vmatmul.mubr.bf16.gmra.mxu0 %v357
      %v656 = vpop.f32.mrf.mxu0
      %v657 = vadd.f32 %v544, %v656
      %v658 = vpop.f32.mrf.mxu0
      %v659 = vpop.f32.mrf.mxu0
      %v660 = vadd.f32 %v547, %v659
      %v661 = vpop.f32.mrf.mxu0
      %662 = vmatprep.mubr.bf16.mxu0 0
      %663 = vmatmul.mubr.bf16.gmra.mxu0 %v358
      %v664 = vpop.f32.mrf.mxu0
      %v665 = vadd.f32 %v552, %v664
      %v666 = vpop.f32.mrf.mxu0
      %v667 = vpop.f32.mrf.mxu0
      %v668 = vadd.f32 %v555, %v667
      %v669 = vpop.f32.mrf.mxu0
      %670 = vdwg.mxu0
      %vm671 = vcmask 1045504
      %v672 = vrot.slane %v335, 2
      %v673 = vrot.slane %v336, 2
      %v674 = vsel %vm671, %v672, %v673
      %v675 = vrot.slane %v337, 2
      %v676 = vrot.slane %v338, 2
      %v677 = vsel %vm671, %v675, %v676
      %v678 = vrot.slane %v339, 2
      %v679 = vrot.slane %v340, 2
      %v680 = vsel %vm671, %v678, %v679
      %v681 = vrot.slane %v341, 2
      %v682 = vrot.slane %v342, 2
      %v683 = vsel %vm671, %v681, %v682
      %v684 = vrot.slane %v343, 2
      %v685 = vrot.slane %v344, 2
      %v686 = vsel %vm671, %v684, %v685
      %v687 = vrot.slane %v345, 2
      %v688 = vrot.slane %v346, 2
      %v689 = vsel %vm671, %v687, %v688
      %v690 = vrot.slane %v347, 2
      %v691 = vrot.slane %v348, 2
      %v692 = vsel %vm671, %v690, %v691
      %v693 = vrot.slane %v349, 2
      %v694 = vrot.slane %v350, 2
      %v695 = vsel %vm671, %v693, %v694
      %v704 = vpack.c.bf16 %v677, %v674
      %v705 = vpack.c.bf16 %v683, %v680
      %v706 = vpack.c.bf16 %v689, %v686
      %v707 = vpack.c.bf16 %v695, %v692
      %s708 = scalar_lea.vmem %s2, 128
      %v709 = vld [vmem:[%s708] sm:$0xf]
      %v710 = vld [vmem:[%s708 + $0x4] sm:$0xf]
      %v711 = vld [vmem:[%s708 + $0x8] sm:$0xf]
      %v712 = vld [vmem:[%s708 + $0xc] sm:$0xf]
      %v713 = vld [vmem:[%s708 + $0x10] sm:$0xf]
      %v714 = vld [vmem:[%s708 + $0x14] sm:$0xf]
      %v715 = vld [vmem:[%s708 + $0x18] sm:$0xf]
      %v716 = vld [vmem:[%s708 + $0x1c] sm:$0xf]
      %v717 = vld [vmem:[%s708 + $0x20] sm:$0xf]
      %v718 = vld [vmem:[%s708 + $0x24] sm:$0xf]
      %v719 = vld [vmem:[%s708 + $0x28] sm:$0xf]
      %v720 = vld [vmem:[%s708 + $0x2c] sm:$0xf]
      %v721 = vld [vmem:[%s708 + $0x30] sm:$0xf]
      %v722 = vld [vmem:[%s708 + $0x34] sm:$0xf]
      %v723 = vld [vmem:[%s708 + $0x38] sm:$0xf]
      %v724 = vld [vmem:[%s708 + $0x3c] sm:$0xf]
      %v741 = vunpack.c.l.b16 %v709
      %v742 = vunpack.c.l.b16 %v710
      %v743 = vunpack.c.l.b16 %v711
      %v744 = vunpack.c.l.b16 %v712
      %v745 = vunpack.c.l.b16 %v713
      %v746 = vunpack.c.l.b16 %v714
      %v747 = vunpack.c.l.b16 %v715
      %v748 = vunpack.c.l.b16 %v716
      %v749 = vunpack.c.l.b16 %v717
      %v750 = vunpack.c.l.b16 %v718
      %v751 = vunpack.c.l.b16 %v719
      %v752 = vunpack.c.l.b16 %v720
      %v753 = vunpack.c.l.b16 %v721
      %v754 = vunpack.c.l.b16 %v722
      %v755 = vunpack.c.l.b16 %v723
      %v756 = vunpack.c.l.b16 %v724
      %v757 = vpack.c.b16 %v742, %v741
      %v758 = vpack.c.b16 %v744, %v743
      %v759 = vpack.c.b16 %v746, %v745
      %v760 = vpack.c.b16 %v748, %v747
      %v761 = vpack.c.b16 %v750, %v749
      %v762 = vpack.c.b16 %v752, %v751
      %v763 = vpack.c.b16 %v754, %v753
      %v764 = vpack.c.b16 %v756, %v755
      %773 = vmatprep.subr.bf16.mxu0 0
      %774 = vmatpush1.bf16.msra.mxu0 %v764
      %775 = vmatprep.subr.bf16.mxu0 0
      %776 = vmatpush1.bf16.msra.mxu0 %v763
      %777 = vmatprep.subr.bf16.mxu0 0
      %778 = vmatpush1.bf16.msra.mxu0 %v762
      %779 = vmatprep.subr.bf16.mxu0 0
      %780 = vmatpush1.bf16.msra.mxu0 %v761
      %781 = vmatprep.subr.bf16.mxu0 0
      %782 = vmatpush1.bf16.msra.mxu0 %v760
      %783 = vmatprep.subr.bf16.mxu0 0
      %784 = vmatpush1.bf16.msra.mxu0 %v759
      %785 = vmatprep.subr.bf16.mxu0 0
      %786 = vmatpush1.bf16.msra.mxu0 %v758
      %787 = vmatprep.subr.bf16.mxu0 0
      %788 = vmatpush1.bf16.msra.mxu0 %v757
      %789 = vmatprep.subr.bf16.mxu0 0
      %790 = vmatpush2.bf16.msra.mxu0 0
      %791 = vmatprep.subr.bf16.mxu0 0
      %792 = vmatpush2.bf16.msra.mxu0 0
      %793 = vmatprep.subr.bf16.mxu0 0
      %794 = vmatpush2.bf16.msra.mxu0 0
      %795 = vmatprep.subr.bf16.mxu0 0
      %796 = vmatpush2.bf16.msra.mxu0 0
      %797 = vmatprep.subr.bf16.mxu0 0
      %798 = vmatpush2.bf16.msra.mxu0 0
      %799 = vmatprep.subr.bf16.mxu0 0
      %800 = vmatpush2.bf16.msra.mxu0 0
      %801 = vmatprep.subr.bf16.mxu0 0
      %802 = vmatpush2.bf16.msra.mxu0 0
      %803 = vmatprep.subr.bf16.mxu0 0
      %804 = vmatpush2.bf16.msra.mxu0 0
      %805 = vmatprep.mubr.bf16.mxu0 0
      %806 = vmatmul.mubr.bf16.gmra.mxu0 %v704
      %v807 = vpop.f32.mrf.mxu0
      %v808 = vadd.f32 0.0, %v807
      %v809 = vpop.f32.mrf.mxu0
      %v810 = vpop.f32.mrf.mxu0
      %v811 = vadd.f32 0.0, %v810
      %v812 = vpop.f32.mrf.mxu0
      %813 = vmatprep.mubr.bf16.mxu0 0
      %814 = vmatmul.mubr.bf16.gmra.mxu0 %v705
      %v815 = vpop.f32.mrf.mxu0
      %v816 = vadd.f32 0.0, %v815
      %v817 = vpop.f32.mrf.mxu0
      %v818 = vpop.f32.mrf.mxu0
      %v819 = vadd.f32 0.0, %v818
      %v820 = vpop.f32.mrf.mxu0
      %821 = vmatprep.mubr.bf16.mxu0 0
      %822 = vmatmul.mubr.bf16.gmra.mxu0 %v706
      %v823 = vpop.f32.mrf.mxu0
      %v824 = vadd.f32 0.0, %v823
      %v825 = vpop.f32.mrf.mxu0
      %v826 = vpop.f32.mrf.mxu0
      %v827 = vadd.f32 0.0, %v826
      %v828 = vpop.f32.mrf.mxu0
      %829 = vmatprep.mubr.bf16.mxu0 0
      %830 = vmatmul.mubr.bf16.gmra.mxu0 %v707
      %v831 = vpop.f32.mrf.mxu0
      %v832 = vadd.f32 0.0, %v831
      %v833 = vpop.f32.mrf.mxu0
      %v834 = vpop.f32.mrf.mxu0
      %v835 = vadd.f32 0.0, %v834
      %v836 = vpop.f32.mrf.mxu0
      %837 = vdwg.mxu0
      %v838 = vadd.f32 %v641, %v808
      %v839 = vadd.f32 %v644, %v811
      %v840 = vadd.f32 %v649, %v816
      %v841 = vadd.f32 %v652, %v819
      %v842 = vadd.f32 %v657, %v824
      %v843 = vadd.f32 %v660, %v827
      %v844 = vadd.f32 %v665, %v832
      %v845 = vadd.f32 %v668, %v835
      %v846 = vpack.c.bf16 %v339, %v337
      %v847 = vpack.c.bf16 %v343, %v341
      %v848 = vpack.c.bf16 %v347, %v345
      %v849 = vpack.c.bf16 %v351, %v349
      %s850 = scalar_lea.vmem %s2, 192
      %v851 = vld [vmem:[%s850] sm:$0xf]
      %v852 = vld [vmem:[%s850 + $0x4] sm:$0xf]
      %v853 = vld [vmem:[%s850 + $0x8] sm:$0xf]
      %v854 = vld [vmem:[%s850 + $0xc] sm:$0xf]
      %v855 = vld [vmem:[%s850 + $0x10] sm:$0xf]
      %v856 = vld [vmem:[%s850 + $0x14] sm:$0xf]
      %v857 = vld [vmem:[%s850 + $0x18] sm:$0xf]
      %v858 = vld [vmem:[%s850 + $0x1c] sm:$0xf]
      %v859 = vld [vmem:[%s850 + $0x20] sm:$0xf]
      %v860 = vld [vmem:[%s850 + $0x24] sm:$0xf]
      %v861 = vld [vmem:[%s850 + $0x28] sm:$0xf]
      %v862 = vld [vmem:[%s850 + $0x2c] sm:$0xf]
      %v863 = vld [vmem:[%s850 + $0x30] sm:$0xf]
      %v864 = vld [vmem:[%s850 + $0x34] sm:$0xf]
      %v865 = vld [vmem:[%s850 + $0x38] sm:$0xf]
      %v866 = vld [vmem:[%s850 + $0x3c] sm:$0xf]
      %v883 = vunpack.c.l.b16 %v851
      %v884 = vunpack.c.l.b16 %v852
      %v885 = vunpack.c.l.b16 %v853
      %v886 = vunpack.c.l.b16 %v854
      %v887 = vunpack.c.l.b16 %v855
      %v888 = vunpack.c.l.b16 %v856
      %v889 = vunpack.c.l.b16 %v857
      %v890 = vunpack.c.l.b16 %v858
      %v891 = vunpack.c.l.b16 %v859
      %v892 = vunpack.c.l.b16 %v860
      %v893 = vunpack.c.l.b16 %v861
      %v894 = vunpack.c.l.b16 %v862
      %v895 = vunpack.c.l.b16 %v863
      %v896 = vunpack.c.l.b16 %v864
      %v897 = vunpack.c.l.b16 %v865
      %v898 = vunpack.c.l.b16 %v866
      %v899 = vpack.c.b16 %v884, %v883
      %v900 = vpack.c.b16 %v886, %v885
      %v901 = vpack.c.b16 %v888, %v887
      %v902 = vpack.c.b16 %v890, %v889
      %v903 = vpack.c.b16 %v892, %v891
      %v904 = vpack.c.b16 %v894, %v893
      %v905 = vpack.c.b16 %v896, %v895
      %v906 = vpack.c.b16 %v898, %v897
      %915 = vmatprep.subr.bf16.mxu0 0
      %916 = vmatpush1.bf16.msra.mxu0 %v906
      %917 = vmatprep.subr.bf16.mxu0 0
      %918 = vmatpush1.bf16.msra.mxu0 %v905
      %919 = vmatprep.subr.bf16.mxu0 0
      %920 = vmatpush1.bf16.msra.mxu0 %v904
      %921 = vmatprep.subr.bf16.mxu0 0
      %922 = vmatpush1.bf16.msra.mxu0 %v903
      %923 = vmatprep.subr.bf16.mxu0 0
      %924 = vmatpush1.bf16.msra.mxu0 %v902
      %925 = vmatprep.subr.bf16.mxu0 0
      %926 = vmatpush1.bf16.msra.mxu0 %v901
      %927 = vmatprep.subr.bf16.mxu0 0
      %928 = vmatpush1.bf16.msra.mxu0 %v900
      %929 = vmatprep.subr.bf16.mxu0 0
      %930 = vmatpush1.bf16.msra.mxu0 %v899
      %931 = vmatprep.subr.bf16.mxu0 0
      %932 = vmatpush2.bf16.msra.mxu0 0
      %933 = vmatprep.subr.bf16.mxu0 0
      %934 = vmatpush2.bf16.msra.mxu0 0
      %935 = vmatprep.subr.bf16.mxu0 0
      %936 = vmatpush2.bf16.msra.mxu0 0
      %937 = vmatprep.subr.bf16.mxu0 0
      %938 = vmatpush2.bf16.msra.mxu0 0
      %939 = vmatprep.subr.bf16.mxu0 0
      %940 = vmatpush2.bf16.msra.mxu0 0
      %941 = vmatprep.subr.bf16.mxu0 0
      %942 = vmatpush2.bf16.msra.mxu0 0
      %943 = vmatprep.subr.bf16.mxu0 0
      %944 = vmatpush2.bf16.msra.mxu0 0
      %945 = vmatprep.subr.bf16.mxu0 0
      %946 = vmatpush2.bf16.msra.mxu0 0
      %947 = vmatprep.mubr.bf16.mxu0 0
      %948 = vmatmul.mubr.bf16.gmra.mxu0 %v846
      %v949 = vpop.f32.mrf.mxu0
      %v950 = vadd.f32 0.0, %v949
      %v951 = vpop.f32.mrf.mxu0
      %v952 = vpop.f32.mrf.mxu0
      %v953 = vadd.f32 0.0, %v952
      %v954 = vpop.f32.mrf.mxu0
      %955 = vmatprep.mubr.bf16.mxu0 0
      %956 = vmatmul.mubr.bf16.gmra.mxu0 %v847
      %v957 = vpop.f32.mrf.mxu0
      %v958 = vadd.f32 0.0, %v957
      %v959 = vpop.f32.mrf.mxu0
      %v960 = vpop.f32.mrf.mxu0
      %v961 = vadd.f32 0.0, %v960
      %v962 = vpop.f32.mrf.mxu0
      %963 = vmatprep.mubr.bf16.mxu0 0
      %964 = vmatmul.mubr.bf16.gmra.mxu0 %v848
      %v965 = vpop.f32.mrf.mxu0
      %v966 = vadd.f32 0.0, %v965
      %v967 = vpop.f32.mrf.mxu0
      %v968 = vpop.f32.mrf.mxu0
      %v969 = vadd.f32 0.0, %v968
      %v970 = vpop.f32.mrf.mxu0
      %971 = vmatprep.mubr.bf16.mxu0 0
      %972 = vmatmul.mubr.bf16.gmra.mxu0 %v849
      %v973 = vpop.f32.mrf.mxu0
      %v974 = vadd.f32 0.0, %v973
      %v975 = vpop.f32.mrf.mxu0
      %v976 = vpop.f32.mrf.mxu0
      %v977 = vadd.f32 0.0, %v976
      %v978 = vpop.f32.mrf.mxu0
      %979 = vdwg.mxu0
      %v980 = vadd.f32 %v838, %v950
      %v981 = vadd.f32 %v839, %v953
      %v982 = vadd.f32 %v840, %v958
      %v983 = vadd.f32 %v841, %v961
      %v984 = vadd.f32 %v842, %v966
      %v985 = vadd.f32 %v843, %v969
      %v986 = vadd.f32 %v844, %v974
      %v987 = vadd.f32 %v845, %v977
      %v990 = vrot.slane %v351, 1
      %v991 = vrot.slane %v352, 1
      %v992 = vsel %vm391, %v990, %v991
      %v994 = vpack.c.bf16 %v400, %v397
      %v995 = vpack.c.bf16 %v406, %v403
      %v996 = vpack.c.bf16 %v412, %v409
      %v997 = vpack.c.bf16 %v992, %v415
      %s998 = scalar_lea.vmem %s2, 256
      %v999 = vld [vmem:[%s998] sm:$0xf]
      %v1000 = vld [vmem:[%s998 + $0x4] sm:$0xf]
      %v1001 = vld [vmem:[%s998 + $0x8] sm:$0xf]
      %v1002 = vld [vmem:[%s998 + $0xc] sm:$0xf]
      %v1003 = vld [vmem:[%s998 + $0x10] sm:$0xf]
      %v1004 = vld [vmem:[%s998 + $0x14] sm:$0xf]
      %v1005 = vld [vmem:[%s998 + $0x18] sm:$0xf]
      %v1006 = vld [vmem:[%s998 + $0x1c] sm:$0xf]
      %v1007 = vld [vmem:[%s998 + $0x20] sm:$0xf]
      %v1008 = vld [vmem:[%s998 + $0x24] sm:$0xf]
      %v1009 = vld [vmem:[%s998 + $0x28] sm:$0xf]
      %v1010 = vld [vmem:[%s998 + $0x2c] sm:$0xf]
      %v1011 = vld [vmem:[%s998 + $0x30] sm:$0xf]
      %v1012 = vld [vmem:[%s998 + $0x34] sm:$0xf]
      %v1013 = vld [vmem:[%s998 + $0x38] sm:$0xf]
      %v1014 = vld [vmem:[%s998 + $0x3c] sm:$0xf]
      %v1031 = vunpack.c.l.b16 %v999
      %v1032 = vunpack.c.l.b16 %v1000
      %v1033 = vunpack.c.l.b16 %v1001
      %v1034 = vunpack.c.l.b16 %v1002
      %v1035 = vunpack.c.l.b16 %v1003
      %v1036 = vunpack.c.l.b16 %v1004
      %v1037 = vunpack.c.l.b16 %v1005
      %v1038 = vunpack.c.l.b16 %v1006
      %v1039 = vunpack.c.l.b16 %v1007
      %v1040 = vunpack.c.l.b16 %v1008
      %v1041 = vunpack.c.l.b16 %v1009
      %v1042 = vunpack.c.l.b16 %v1010
      %v1043 = vunpack.c.l.b16 %v1011
      %v1044 = vunpack.c.l.b16 %v1012
      %v1045 = vunpack.c.l.b16 %v1013
      %v1046 = vunpack.c.l.b16 %v1014
      %v1047 = vpack.c.b16 %v1032, %v1031
      %v1048 = vpack.c.b16 %v1034, %v1033
      %v1049 = vpack.c.b16 %v1036, %v1035
      %v1050 = vpack.c.b16 %v1038, %v1037
      %v1051 = vpack.c.b16 %v1040, %v1039
      %v1052 = vpack.c.b16 %v1042, %v1041
      %v1053 = vpack.c.b16 %v1044, %v1043
      %v1054 = vpack.c.b16 %v1046, %v1045
      %1063 = vmatprep.subr.bf16.mxu0 0
      %1064 = vmatpush1.bf16.msra.mxu0 %v1054
      %1065 = vmatprep.subr.bf16.mxu0 0
      %1066 = vmatpush1.bf16.msra.mxu0 %v1053
      %1067 = vmatprep.subr.bf16.mxu0 0
      %1068 = vmatpush1.bf16.msra.mxu0 %v1052
      %1069 = vmatprep.subr.bf16.mxu0 0
      %1070 = vmatpush1.bf16.msra.mxu0 %v1051
      %1071 = vmatprep.subr.bf16.mxu0 0
      %1072 = vmatpush1.bf16.msra.mxu0 %v1050
      %1073 = vmatprep.subr.bf16.mxu0 0
      %1074 = vmatpush1.bf16.msra.mxu0 %v1049
      %1075 = vmatprep.subr.bf16.mxu0 0
      %1076 = vmatpush1.bf16.msra.mxu0 %v1048
      %1077 = vmatprep.subr.bf16.mxu0 0
      %1078 = vmatpush1.bf16.msra.mxu0 %v1047
      %1079 = vmatprep.subr.bf16.mxu0 0
      %1080 = vmatpush2.bf16.msra.mxu0 0
      %1081 = vmatprep.subr.bf16.mxu0 0
      %1082 = vmatpush2.bf16.msra.mxu0 0
      %1083 = vmatprep.subr.bf16.mxu0 0
      %1084 = vmatpush2.bf16.msra.mxu0 0
      %1085 = vmatprep.subr.bf16.mxu0 0
      %1086 = vmatpush2.bf16.msra.mxu0 0
      %1087 = vmatprep.subr.bf16.mxu0 0
      %1088 = vmatpush2.bf16.msra.mxu0 0
      %1089 = vmatprep.subr.bf16.mxu0 0
      %1090 = vmatpush2.bf16.msra.mxu0 0
      %1091 = vmatprep.subr.bf16.mxu0 0
      %1092 = vmatpush2.bf16.msra.mxu0 0
      %1093 = vmatprep.subr.bf16.mxu0 0
      %1094 = vmatpush2.bf16.msra.mxu0 0
      %1095 = vmatprep.mubr.bf16.mxu0 0
      %1096 = vmatmul.mubr.bf16.gmra.mxu0 %v994
      %v1097 = vpop.f32.mrf.mxu0
      %v1098 = vadd.f32 0.0, %v1097
      %v1099 = vpop.f32.mrf.mxu0
      %v1100 = vpop.f32.mrf.mxu0
      %v1101 = vadd.f32 0.0, %v1100
      %v1102 = vpop.f32.mrf.mxu0
      %1103 = vmatprep.mubr.bf16.mxu0 0
      %1104 = vmatmul.mubr.bf16.gmra.mxu0 %v995
      %v1105 = vpop.f32.mrf.mxu0
      %v1106 = vadd.f32 0.0, %v1105
      %v1107 = vpop.f32.mrf.mxu0
      %v1108 = vpop.f32.mrf.mxu0
      %v1109 = vadd.f32 0.0, %v1108
      %v1110 = vpop.f32.mrf.mxu0
      %1111 = vmatprep.mubr.bf16.mxu0 0
      %1112 = vmatmul.mubr.bf16.gmra.mxu0 %v996
      %v1113 = vpop.f32.mrf.mxu0
      %v1114 = vadd.f32 0.0, %v1113
      %v1115 = vpop.f32.mrf.mxu0
      %v1116 = vpop.f32.mrf.mxu0
      %v1117 = vadd.f32 0.0, %v1116
      %v1118 = vpop.f32.mrf.mxu0
      %1119 = vmatprep.mubr.bf16.mxu0 0
      %1120 = vmatmul.mubr.bf16.gmra.mxu0 %v997
      %v1121 = vpop.f32.mrf.mxu0
      %v1122 = vadd.f32 0.0, %v1121
      %v1123 = vpop.f32.mrf.mxu0
      %v1124 = vpop.f32.mrf.mxu0
      %v1125 = vadd.f32 0.0, %v1124
      %v1126 = vpop.f32.mrf.mxu0
      %1127 = vdwg.mxu0
      %v1128 = vadd.f32 %v980, %v1098
      %v1129 = vadd.f32 %v981, %v1101
      %v1130 = vadd.f32 %v982, %v1106
      %v1131 = vadd.f32 %v983, %v1109
      %v1132 = vadd.f32 %v984, %v1114
      %v1133 = vadd.f32 %v985, %v1117
      %v1134 = vadd.f32 %v986, %v1122
      %v1135 = vadd.f32 %v987, %v1125
      %v1136 = vrot.slane %v351, 2
      %v1137 = vrot.slane %v352, 2
      %v1138 = vsel %vm671, %v1136, %v1137
      %v1140 = vpack.c.bf16 %v680, %v677
      %v1141 = vpack.c.bf16 %v686, %v683
      %v1142 = vpack.c.bf16 %v692, %v689
      %v1143 = vpack.c.bf16 %v1138, %v695
      %s1144 = scalar_lea.vmem %s2, 320
      %v1145 = vld [vmem:[%s1144] sm:$0xf]
      %v1146 = vld [vmem:[%s1144 + $0x4] sm:$0xf]
      %v1147 = vld [vmem:[%s1144 + $0x8] sm:$0xf]
      %v1148 = vld [vmem:[%s1144 + $0xc] sm:$0xf]
      %v1149 = vld [vmem:[%s1144 + $0x10] sm:$0xf]
      %v1150 = vld [vmem:[%s1144 + $0x14] sm:$0xf]
      %v1151 = vld [vmem:[%s1144 + $0x18] sm:$0xf]
      %v1152 = vld [vmem:[%s1144 + $0x1c] sm:$0xf]
      %v1153 = vld [vmem:[%s1144 + $0x20] sm:$0xf]
      %v1154 = vld [vmem:[%s1144 + $0x24] sm:$0xf]
      %v1155 = vld [vmem:[%s1144 + $0x28] sm:$0xf]
      %v1156 = vld [vmem:[%s1144 + $0x2c] sm:$0xf]
      %v1157 = vld [vmem:[%s1144 + $0x30] sm:$0xf]
      %v1158 = vld [vmem:[%s1144 + $0x34] sm:$0xf]
      %v1159 = vld [vmem:[%s1144 + $0x38] sm:$0xf]
      %v1160 = vld [vmem:[%s1144 + $0x3c] sm:$0xf]
      %v1177 = vunpack.c.l.b16 %v1145
      %v1178 = vunpack.c.l.b16 %v1146
      %v1179 = vunpack.c.l.b16 %v1147
      %v1180 = vunpack.c.l.b16 %v1148
      %v1181 = vunpack.c.l.b16 %v1149
      %v1182 = vunpack.c.l.b16 %v1150
      %v1183 = vunpack.c.l.b16 %v1151
      %v1184 = vunpack.c.l.b16 %v1152
      %v1185 = vunpack.c.l.b16 %v1153
      %v1186 = vunpack.c.l.b16 %v1154
      %v1187 = vunpack.c.l.b16 %v1155
      %v1188 = vunpack.c.l.b16 %v1156
      %v1189 = vunpack.c.l.b16 %v1157
      %v1190 = vunpack.c.l.b16 %v1158
      %v1191 = vunpack.c.l.b16 %v1159
      %v1192 = vunpack.c.l.b16 %v1160
      %v1193 = vpack.c.b16 %v1178, %v1177
      %v1194 = vpack.c.b16 %v1180, %v1179
      %v1195 = vpack.c.b16 %v1182, %v1181
      %v1196 = vpack.c.b16 %v1184, %v1183
      %v1197 = vpack.c.b16 %v1186, %v1185
      %v1198 = vpack.c.b16 %v1188, %v1187
      %v1199 = vpack.c.b16 %v1190, %v1189
      %v1200 = vpack.c.b16 %v1192, %v1191
      %1209 = vmatprep.subr.bf16.mxu0 0
      %1210 = vmatpush1.bf16.msra.mxu0 %v1200
      %1211 = vmatprep.subr.bf16.mxu0 0
      %1212 = vmatpush1.bf16.msra.mxu0 %v1199
      %1213 = vmatprep.subr.bf16.mxu0 0
      %1214 = vmatpush1.bf16.msra.mxu0 %v1198
      %1215 = vmatprep.subr.bf16.mxu0 0
      %1216 = vmatpush1.bf16.msra.mxu0 %v1197
      %1217 = vmatprep.subr.bf16.mxu0 0
      %1218 = vmatpush1.bf16.msra.mxu0 %v1196
      %1219 = vmatprep.subr.bf16.mxu0 0
      %1220 = vmatpush1.bf16.msra.mxu0 %v1195
      %1221 = vmatprep.subr.bf16.mxu0 0
      %1222 = vmatpush1.bf16.msra.mxu0 %v1194
      %1223 = vmatprep.subr.bf16.mxu0 0
      %1224 = vmatpush1.bf16.msra.mxu0 %v1193
      %1225 = vmatprep.subr.bf16.mxu0 0
      %1226 = vmatpush2.bf16.msra.mxu0 0
      %1227 = vmatprep.subr.bf16.mxu0 0
      %1228 = vmatpush2.bf16.msra.mxu0 0
      %1229 = vmatprep.subr.bf16.mxu0 0
      %1230 = vmatpush2.bf16.msra.mxu0 0
      %1231 = vmatprep.subr.bf16.mxu0 0
      %1232 = vmatpush2.bf16.msra.mxu0 0
      %1233 = vmatprep.subr.bf16.mxu0 0
      %1234 = vmatpush2.bf16.msra.mxu0 0
      %1235 = vmatprep.subr.bf16.mxu0 0
      %1236 = vmatpush2.bf16.msra.mxu0 0
      %1237 = vmatprep.subr.bf16.mxu0 0
      %1238 = vmatpush2.bf16.msra.mxu0 0
      %1239 = vmatprep.subr.bf16.mxu0 0
      %1240 = vmatpush2.bf16.msra.mxu0 0
      %1241 = vmatprep.mubr.bf16.mxu0 0
      %1242 = vmatmul.mubr.bf16.gmra.mxu0 %v1140
      %v1243 = vpop.f32.mrf.mxu0
      %v1244 = vadd.f32 0.0, %v1243
      %v1245 = vpop.f32.mrf.mxu0
      %v1246 = vpop.f32.mrf.mxu0
      %v1247 = vadd.f32 0.0, %v1246
      %v1248 = vpop.f32.mrf.mxu0
      %1249 = vmatprep.mubr.bf16.mxu0 0
      %1250 = vmatmul.mubr.bf16.gmra.mxu0 %v1141
      %v1251 = vpop.f32.mrf.mxu0
      %v1252 = vadd.f32 0.0, %v1251
      %v1253 = vpop.f32.mrf.mxu0
      %v1254 = vpop.f32.mrf.mxu0
      %v1255 = vadd.f32 0.0, %v1254
      %v1256 = vpop.f32.mrf.mxu0
      %1257 = vmatprep.mubr.bf16.mxu0 0
      %1258 = vmatmul.mubr.bf16.gmra.mxu0 %v1142
      %v1259 = vpop.f32.mrf.mxu0
      %v1260 = vadd.f32 0.0, %v1259
      %v1261 = vpop.f32.mrf.mxu0
      %v1262 = vpop.f32.mrf.mxu0
      %v1263 = vadd.f32 0.0, %v1262
      %v1264 = vpop.f32.mrf.mxu0
      %1265 = vmatprep.mubr.bf16.mxu0 0
      %1266 = vmatmul.mubr.bf16.gmra.mxu0 %v1143
      %v1267 = vpop.f32.mrf.mxu0
      %v1268 = vadd.f32 0.0, %v1267
      %v1269 = vpop.f32.mrf.mxu0
      %v1270 = vpop.f32.mrf.mxu0
      %v1271 = vadd.f32 0.0, %v1270
      %v1272 = vpop.f32.mrf.mxu0
      %1273 = vdwg.mxu0
      %v1274 = vadd.f32 %v1128, %v1244
      %v1275 = vadd.f32 %v1129, %v1247
      %v1276 = vadd.f32 %v1130, %v1252
      %v1277 = vadd.f32 %v1131, %v1255
      %v1278 = vadd.f32 %v1132, %v1260
      %v1279 = vadd.f32 %v1133, %v1263
      %v1280 = vadd.f32 %v1134, %v1268
      %v1281 = vadd.f32 %v1135, %v1271
      %v1282 = vpack.c.bf16 %v353, %v351
      %s1283 = scalar_lea.vmem %s2, 384
      %v1284 = vld [vmem:[%s1283] sm:$0xf]
      %v1285 = vld [vmem:[%s1283 + $0x4] sm:$0xf]
      %v1286 = vld [vmem:[%s1283 + $0x8] sm:$0xf]
      %v1287 = vld [vmem:[%s1283 + $0xc] sm:$0xf]
      %v1288 = vld [vmem:[%s1283 + $0x10] sm:$0xf]
      %v1289 = vld [vmem:[%s1283 + $0x14] sm:$0xf]
      %v1290 = vld [vmem:[%s1283 + $0x18] sm:$0xf]
      %v1291 = vld [vmem:[%s1283 + $0x1c] sm:$0xf]
      %v1292 = vld [vmem:[%s1283 + $0x20] sm:$0xf]
      %v1293 = vld [vmem:[%s1283 + $0x24] sm:$0xf]
      %v1294 = vld [vmem:[%s1283 + $0x28] sm:$0xf]
      %v1295 = vld [vmem:[%s1283 + $0x2c] sm:$0xf]
      %v1296 = vld [vmem:[%s1283 + $0x30] sm:$0xf]
      %v1297 = vld [vmem:[%s1283 + $0x34] sm:$0xf]
      %v1298 = vld [vmem:[%s1283 + $0x38] sm:$0xf]
      %v1299 = vld [vmem:[%s1283 + $0x3c] sm:$0xf]
      %v1316 = vunpack.c.l.b16 %v1284
      %v1317 = vunpack.c.l.b16 %v1285
      %v1318 = vunpack.c.l.b16 %v1286
      %v1319 = vunpack.c.l.b16 %v1287
      %v1320 = vunpack.c.l.b16 %v1288
      %v1321 = vunpack.c.l.b16 %v1289
      %v1322 = vunpack.c.l.b16 %v1290
      %v1323 = vunpack.c.l.b16 %v1291
      %v1324 = vunpack.c.l.b16 %v1292
      %v1325 = vunpack.c.l.b16 %v1293
      %v1326 = vunpack.c.l.b16 %v1294
      %v1327 = vunpack.c.l.b16 %v1295
      %v1328 = vunpack.c.l.b16 %v1296
      %v1329 = vunpack.c.l.b16 %v1297
      %v1330 = vunpack.c.l.b16 %v1298
      %v1331 = vunpack.c.l.b16 %v1299
      %v1332 = vpack.c.b16 %v1317, %v1316
      %v1333 = vpack.c.b16 %v1319, %v1318
      %v1334 = vpack.c.b16 %v1321, %v1320
      %v1335 = vpack.c.b16 %v1323, %v1322
      %v1336 = vpack.c.b16 %v1325, %v1324
      %v1337 = vpack.c.b16 %v1327, %v1326
      %v1338 = vpack.c.b16 %v1329, %v1328
      %v1339 = vpack.c.b16 %v1331, %v1330
      %1348 = vmatprep.subr.bf16.mxu0 0
      %1349 = vmatpush1.bf16.msra.mxu0 %v1339
      %1350 = vmatprep.subr.bf16.mxu0 0
      %1351 = vmatpush1.bf16.msra.mxu0 %v1338
      %1352 = vmatprep.subr.bf16.mxu0 0
      %1353 = vmatpush1.bf16.msra.mxu0 %v1337
      %1354 = vmatprep.subr.bf16.mxu0 0
      %1355 = vmatpush1.bf16.msra.mxu0 %v1336
      %1356 = vmatprep.subr.bf16.mxu0 0
      %1357 = vmatpush1.bf16.msra.mxu0 %v1335
      %1358 = vmatprep.subr.bf16.mxu0 0
      %1359 = vmatpush1.bf16.msra.mxu0 %v1334
      %1360 = vmatprep.subr.bf16.mxu0 0
      %1361 = vmatpush1.bf16.msra.mxu0 %v1333
      %1362 = vmatprep.subr.bf16.mxu0 0
      %1363 = vmatpush1.bf16.msra.mxu0 %v1332
      %1364 = vmatprep.subr.bf16.mxu0 0
      %1365 = vmatpush2.bf16.msra.mxu0 0
      %1366 = vmatprep.subr.bf16.mxu0 0
      %1367 = vmatpush2.bf16.msra.mxu0 0
      %1368 = vmatprep.subr.bf16.mxu0 0
      %1369 = vmatpush2.bf16.msra.mxu0 0
      %1370 = vmatprep.subr.bf16.mxu0 0
      %1371 = vmatpush2.bf16.msra.mxu0 0
      %1372 = vmatprep.subr.bf16.mxu0 0
      %1373 = vmatpush2.bf16.msra.mxu0 0
      %1374 = vmatprep.subr.bf16.mxu0 0
      %1375 = vmatpush2.bf16.msra.mxu0 0
      %1376 = vmatprep.subr.bf16.mxu0 0
      %1377 = vmatpush2.bf16.msra.mxu0 0
      %1378 = vmatprep.subr.bf16.mxu0 0
      %1379 = vmatpush2.bf16.msra.mxu0 0
      %1380 = vmatprep.mubr.bf16.mxu0 0
      %1381 = vmatmul.mubr.bf16.gmra.mxu0 %v356
      %v1382 = vpop.f32.mrf.mxu0
      %v1383 = vadd.f32 0.0, %v1382
      %v1384 = vpop.f32.mrf.mxu0
      %v1385 = vpop.f32.mrf.mxu0
      %v1386 = vadd.f32 0.0, %v1385
      %v1387 = vpop.f32.mrf.mxu0
      %1388 = vmatprep.mubr.bf16.mxu0 0
      %1389 = vmatmul.mubr.bf16.gmra.mxu0 %v357
      %v1390 = vpop.f32.mrf.mxu0
      %v1391 = vadd.f32 0.0, %v1390
      %v1392 = vpop.f32.mrf.mxu0
      %v1393 = vpop.f32.mrf.mxu0
      %v1394 = vadd.f32 0.0, %v1393
      %v1395 = vpop.f32.mrf.mxu0
      %1396 = vmatprep.mubr.bf16.mxu0 0
      %1397 = vmatmul.mubr.bf16.gmra.mxu0 %v358
      %v1398 = vpop.f32.mrf.mxu0
      %v1399 = vadd.f32 0.0, %v1398
      %v1400 = vpop.f32.mrf.mxu0
      %v1401 = vpop.f32.mrf.mxu0
      %v1402 = vadd.f32 0.0, %v1401
      %v1403 = vpop.f32.mrf.mxu0
      %1404 = vmatprep.mubr.bf16.mxu0 0
      %1405 = vmatmul.mubr.bf16.gmra.mxu0 %v1282
      %v1406 = vpop.f32.mrf.mxu0
      %v1407 = vadd.f32 0.0, %v1406
      %v1408 = vpop.f32.mrf.mxu0
      %v1409 = vpop.f32.mrf.mxu0
      %v1410 = vadd.f32 0.0, %v1409
      %v1411 = vpop.f32.mrf.mxu0
      %1412 = vdwg.mxu0
      %v1413 = vadd.f32 %v1274, %v1383
      %v1414 = vadd.f32 %v1275, %v1386
      %v1415 = vadd.f32 %v1276, %v1391
      %v1416 = vadd.f32 %v1277, %v1394
      %v1417 = vadd.f32 %v1278, %v1399
      %v1418 = vadd.f32 %v1279, %v1402
      %v1419 = vadd.f32 %v1280, %v1407
      %v1420 = vadd.f32 %v1281, %v1410
      %v1423 = vrot.slane %v353, 1
      %v1424 = vrot.slane %v354, 1
      %v1425 = vsel %vm391, %v1423, %v1424
      %v1427 = vpack.c.bf16 %v1425, %v992
      %s1428 = scalar_lea.vmem %s2, 448
      %v1429 = vld [vmem:[%s1428] sm:$0xf]
      %v1430 = vld [vmem:[%s1428 + $0x4] sm:$0xf]
      %v1431 = vld [vmem:[%s1428 + $0x8] sm:$0xf]
      %v1432 = vld [vmem:[%s1428 + $0xc] sm:$0xf]
      %v1433 = vld [vmem:[%s1428 + $0x10] sm:$0xf]
      %v1434 = vld [vmem:[%s1428 + $0x14] sm:$0xf]
      %v1435 = vld [vmem:[%s1428 + $0x18] sm:$0xf]
      %v1436 = vld [vmem:[%s1428 + $0x1c] sm:$0xf]
      %v1437 = vld [vmem:[%s1428 + $0x20] sm:$0xf]
      %v1438 = vld [vmem:[%s1428 + $0x24] sm:$0xf]
      %v1439 = vld [vmem:[%s1428 + $0x28] sm:$0xf]
      %v1440 = vld [vmem:[%s1428 + $0x2c] sm:$0xf]
      %v1441 = vld [vmem:[%s1428 + $0x30] sm:$0xf]
      %v1442 = vld [vmem:[%s1428 + $0x34] sm:$0xf]
      %v1443 = vld [vmem:[%s1428 + $0x38] sm:$0xf]
      %v1444 = vld [vmem:[%s1428 + $0x3c] sm:$0xf]
      %v1461 = vunpack.c.l.b16 %v1429
      %v1462 = vunpack.c.l.b16 %v1430
      %v1463 = vunpack.c.l.b16 %v1431
      %v1464 = vunpack.c.l.b16 %v1432
      %v1465 = vunpack.c.l.b16 %v1433
      %v1466 = vunpack.c.l.b16 %v1434
      %v1467 = vunpack.c.l.b16 %v1435
      %v1468 = vunpack.c.l.b16 %v1436
      %v1469 = vunpack.c.l.b16 %v1437
      %v1470 = vunpack.c.l.b16 %v1438
      %v1471 = vunpack.c.l.b16 %v1439
      %v1472 = vunpack.c.l.b16 %v1440
      %v1473 = vunpack.c.l.b16 %v1441
      %v1474 = vunpack.c.l.b16 %v1442
      %v1475 = vunpack.c.l.b16 %v1443
      %v1476 = vunpack.c.l.b16 %v1444
      %v1477 = vpack.c.b16 %v1462, %v1461
      %v1478 = vpack.c.b16 %v1464, %v1463
      %v1479 = vpack.c.b16 %v1466, %v1465
      %v1480 = vpack.c.b16 %v1468, %v1467
      %v1481 = vpack.c.b16 %v1470, %v1469
      %v1482 = vpack.c.b16 %v1472, %v1471
      %v1483 = vpack.c.b16 %v1474, %v1473
      %v1484 = vpack.c.b16 %v1476, %v1475
      %1493 = vmatprep.subr.bf16.mxu0 0
      %1494 = vmatpush1.bf16.msra.mxu0 %v1484
      %1495 = vmatprep.subr.bf16.mxu0 0
      %1496 = vmatpush1.bf16.msra.mxu0 %v1483
      %1497 = vmatprep.subr.bf16.mxu0 0
      %1498 = vmatpush1.bf16.msra.mxu0 %v1482
      %1499 = vmatprep.subr.bf16.mxu0 0
      %1500 = vmatpush1.bf16.msra.mxu0 %v1481
      %1501 = vmatprep.subr.bf16.mxu0 0
      %1502 = vmatpush1.bf16.msra.mxu0 %v1480
      %1503 = vmatprep.subr.bf16.mxu0 0
      %1504 = vmatpush1.bf16.msra.mxu0 %v1479
      %1505 = vmatprep.subr.bf16.mxu0 0
      %1506 = vmatpush1.bf16.msra.mxu0 %v1478
      %1507 = vmatprep.subr.bf16.mxu0 0
      %1508 = vmatpush1.bf16.msra.mxu0 %v1477
      %1509 = vmatprep.subr.bf16.mxu0 0
      %1510 = vmatpush2.bf16.msra.mxu0 0
      %1511 = vmatprep.subr.bf16.mxu0 0
      %1512 = vmatpush2.bf16.msra.mxu0 0
      %1513 = vmatprep.subr.bf16.mxu0 0
      %1514 = vmatpush2.bf16.msra.mxu0 0
      %1515 = vmatprep.subr.bf16.mxu0 0
      %1516 = vmatpush2.bf16.msra.mxu0 0
      %1517 = vmatprep.subr.bf16.mxu0 0
      %1518 = vmatpush2.bf16.msra.mxu0 0
      %1519 = vmatprep.subr.bf16.mxu0 0
      %1520 = vmatpush2.bf16.msra.mxu0 0
      %1521 = vmatprep.subr.bf16.mxu0 0
      %1522 = vmatpush2.bf16.msra.mxu0 0
      %1523 = vmatprep.subr.bf16.mxu0 0
      %1524 = vmatpush2.bf16.msra.mxu0 0
      %1525 = vmatprep.mubr.bf16.mxu0 0
      %1526 = vmatmul.mubr.bf16.gmra.mxu0 %v425
      %v1527 = vpop.f32.mrf.mxu0
      %v1528 = vadd.f32 0.0, %v1527
      %v1529 = vpop.f32.mrf.mxu0
      %v1530 = vpop.f32.mrf.mxu0
      %v1531 = vadd.f32 0.0, %v1530
      %v1532 = vpop.f32.mrf.mxu0
      %1533 = vmatprep.mubr.bf16.mxu0 0
      %1534 = vmatmul.mubr.bf16.gmra.mxu0 %v426
      %v1535 = vpop.f32.mrf.mxu0
      %v1536 = vadd.f32 0.0, %v1535
      %v1537 = vpop.f32.mrf.mxu0
      %v1538 = vpop.f32.mrf.mxu0
      %v1539 = vadd.f32 0.0, %v1538
      %v1540 = vpop.f32.mrf.mxu0
      %1541 = vmatprep.mubr.bf16.mxu0 0
      %1542 = vmatmul.mubr.bf16.gmra.mxu0 %v427
      %v1543 = vpop.f32.mrf.mxu0
      %v1544 = vadd.f32 0.0, %v1543
      %v1545 = vpop.f32.mrf.mxu0
      %v1546 = vpop.f32.mrf.mxu0
      %v1547 = vadd.f32 0.0, %v1546
      %v1548 = vpop.f32.mrf.mxu0
      %1549 = vmatprep.mubr.bf16.mxu0 0
      %1550 = vmatmul.mubr.bf16.gmra.mxu0 %v1427
      %v1551 = vpop.f32.mrf.mxu0
      %v1552 = vadd.f32 0.0, %v1551
      %v1553 = vpop.f32.mrf.mxu0
      %v1554 = vpop.f32.mrf.mxu0
      %v1555 = vadd.f32 0.0, %v1554
      %v1556 = vpop.f32.mrf.mxu0
      %1557 = vdwg.mxu0
      %v1558 = vadd.f32 %v1413, %v1528
      %v1559 = vadd.f32 %v1414, %v1531
      %v1560 = vadd.f32 %v1415, %v1536
      %v1561 = vadd.f32 %v1416, %v1539
      %v1562 = vadd.f32 %v1417, %v1544
      %v1563 = vadd.f32 %v1418, %v1547
      %v1564 = vadd.f32 %v1419, %v1552
      %v1565 = vadd.f32 %v1420, %v1555
      %v1566 = vrot.slane %v353, 2
      %v1567 = vrot.slane %v354, 2
      %v1568 = vsel %vm671, %v1566, %v1567
      %v1570 = vpack.c.bf16 %v1568, %v1138
      %s1571 = scalar_lea.vmem %s2, 512
      %v1572 = vld [vmem:[%s1571] sm:$0xf]
      %v1573 = vld [vmem:[%s1571 + $0x4] sm:$0xf]
      %v1574 = vld [vmem:[%s1571 + $0x8] sm:$0xf]
      %v1575 = vld [vmem:[%s1571 + $0xc] sm:$0xf]
      %v1576 = vld [vmem:[%s1571 + $0x10] sm:$0xf]
      %v1577 = vld [vmem:[%s1571 + $0x14] sm:$0xf]
      %v1578 = vld [vmem:[%s1571 + $0x18] sm:$0xf]
      %v1579 = vld [vmem:[%s1571 + $0x1c] sm:$0xf]
      %v1580 = vld [vmem:[%s1571 + $0x20] sm:$0xf]
      %v1581 = vld [vmem:[%s1571 + $0x24] sm:$0xf]
      %v1582 = vld [vmem:[%s1571 + $0x28] sm:$0xf]
      %v1583 = vld [vmem:[%s1571 + $0x2c] sm:$0xf]
      %v1584 = vld [vmem:[%s1571 + $0x30] sm:$0xf]
      %v1585 = vld [vmem:[%s1571 + $0x34] sm:$0xf]
      %v1586 = vld [vmem:[%s1571 + $0x38] sm:$0xf]
      %v1587 = vld [vmem:[%s1571 + $0x3c] sm:$0xf]
      %v1604 = vunpack.c.l.b16 %v1572
      %v1605 = vunpack.c.l.b16 %v1573
      %v1606 = vunpack.c.l.b16 %v1574
      %v1607 = vunpack.c.l.b16 %v1575
      %v1608 = vunpack.c.l.b16 %v1576
      %v1609 = vunpack.c.l.b16 %v1577
      %v1610 = vunpack.c.l.b16 %v1578
      %v1611 = vunpack.c.l.b16 %v1579
      %v1612 = vunpack.c.l.b16 %v1580
      %v1613 = vunpack.c.l.b16 %v1581
      %v1614 = vunpack.c.l.b16 %v1582
      %v1615 = vunpack.c.l.b16 %v1583
      %v1616 = vunpack.c.l.b16 %v1584
      %v1617 = vunpack.c.l.b16 %v1585
      %v1618 = vunpack.c.l.b16 %v1586
      %v1619 = vunpack.c.l.b16 %v1587
      %v1620 = vpack.c.b16 %v1605, %v1604
      %v1621 = vpack.c.b16 %v1607, %v1606
      %v1622 = vpack.c.b16 %v1609, %v1608
      %v1623 = vpack.c.b16 %v1611, %v1610
      %v1624 = vpack.c.b16 %v1613, %v1612
      %v1625 = vpack.c.b16 %v1615, %v1614
      %v1626 = vpack.c.b16 %v1617, %v1616
      %v1627 = vpack.c.b16 %v1619, %v1618
      %1636 = vmatprep.subr.bf16.mxu0 0
      %1637 = vmatpush1.bf16.msra.mxu0 %v1627
      %1638 = vmatprep.subr.bf16.mxu0 0
      %1639 = vmatpush1.bf16.msra.mxu0 %v1626
      %1640 = vmatprep.subr.bf16.mxu0 0
      %1641 = vmatpush1.bf16.msra.mxu0 %v1625
      %1642 = vmatprep.subr.bf16.mxu0 0
      %1643 = vmatpush1.bf16.msra.mxu0 %v1624
      %1644 = vmatprep.subr.bf16.mxu0 0
      %1645 = vmatpush1.bf16.msra.mxu0 %v1623
      %1646 = vmatprep.subr.bf16.mxu0 0
      %1647 = vmatpush1.bf16.msra.mxu0 %v1622
      %1648 = vmatprep.subr.bf16.mxu0 0
      %1649 = vmatpush1.bf16.msra.mxu0 %v1621
      %1650 = vmatprep.subr.bf16.mxu0 0
      %1651 = vmatpush1.bf16.msra.mxu0 %v1620
      %1652 = vmatprep.subr.bf16.mxu0 0
      %1653 = vmatpush2.bf16.msra.mxu0 0
      %1654 = vmatprep.subr.bf16.mxu0 0
      %1655 = vmatpush2.bf16.msra.mxu0 0
      %1656 = vmatprep.subr.bf16.mxu0 0
      %1657 = vmatpush2.bf16.msra.mxu0 0
      %1658 = vmatprep.subr.bf16.mxu0 0
      %1659 = vmatpush2.bf16.msra.mxu0 0
      %1660 = vmatprep.subr.bf16.mxu0 0
      %1661 = vmatpush2.bf16.msra.mxu0 0
      %1662 = vmatprep.subr.bf16.mxu0 0
      %1663 = vmatpush2.bf16.msra.mxu0 0
      %1664 = vmatprep.subr.bf16.mxu0 0
      %1665 = vmatpush2.bf16.msra.mxu0 0
      %1666 = vmatprep.subr.bf16.mxu0 0
      %1667 = vmatpush2.bf16.msra.mxu0 0
      %1668 = vmatprep.mubr.bf16.mxu0 0
      %1669 = vmatmul.mubr.bf16.gmra.mxu0 %v705
      %v1670 = vpop.f32.mrf.mxu0
      %v1671 = vadd.f32 0.0, %v1670
      %v1672 = vpop.f32.mrf.mxu0
      %v1673 = vpop.f32.mrf.mxu0
      %v1674 = vadd.f32 0.0, %v1673
      %v1675 = vpop.f32.mrf.mxu0
      %1676 = vmatprep.mubr.bf16.mxu0 0
      %1677 = vmatmul.mubr.bf16.gmra.mxu0 %v706
      %v1678 = vpop.f32.mrf.mxu0
      %v1679 = vadd.f32 0.0, %v1678
      %v1680 = vpop.f32.mrf.mxu0
      %v1681 = vpop.f32.mrf.mxu0
      %v1682 = vadd.f32 0.0, %v1681
      %v1683 = vpop.f32.mrf.mxu0
      %1684 = vmatprep.mubr.bf16.mxu0 0
      %1685 = vmatmul.mubr.bf16.gmra.mxu0 %v707
      %v1686 = vpop.f32.mrf.mxu0
      %v1687 = vadd.f32 0.0, %v1686
      %v1688 = vpop.f32.mrf.mxu0
      %v1689 = vpop.f32.mrf.mxu0
      %v1690 = vadd.f32 0.0, %v1689
      %v1691 = vpop.f32.mrf.mxu0
      %1692 = vmatprep.mubr.bf16.mxu0 0
      %1693 = vmatmul.mubr.bf16.gmra.mxu0 %v1570
      %v1694 = vpop.f32.mrf.mxu0
      %v1695 = vadd.f32 0.0, %v1694
      %v1696 = vpop.f32.mrf.mxu0
      %v1697 = vpop.f32.mrf.mxu0
      %v1698 = vadd.f32 0.0, %v1697
      %v1699 = vpop.f32.mrf.mxu0
      %1700 = vdwg.mxu0
      %v1701 = vadd.f32 %v1558, %v1671
      %v1702 = vadd.f32 %v1559, %v1674
      %v1703 = vadd.f32 %v1560, %v1679
      %v1704 = vadd.f32 %v1561, %v1682
      %v1705 = vadd.f32 %v1562, %v1687
      %v1706 = vadd.f32 %v1563, %v1690
      %v1707 = vadd.f32 %v1564, %v1695
      %v1708 = vadd.f32 %v1565, %v1698
      %v1709 = vpack.c.bf16 %v1702, %v1701
      %v1710 = vpack.c.bf16 %v1704, %v1703
      %v1711 = vpack.c.bf16 %v1706, %v1705
      %v1712 = vpack.c.bf16 %v1708, %v1707
      %v1717 = vunpack.c.l.b16 %v1709
      %v1718 = vunpack.c.h.b16 %v1709
      %v1719 = vunpack.c.l.b16 %v1710
      %v1720 = vunpack.c.h.b16 %v1710
      %v1721 = vunpack.c.l.b16 %v1711
      %v1722 = vunpack.c.h.b16 %v1711
      %v1723 = vunpack.c.l.b16 %v1712
      %v1724 = vunpack.c.h.b16 %v1712
      %v1725 = vpack.c.b16 %v1717, %v1717
      %v1726 = vpack.c.b16 %v1718, %v1718
      %v1727 = vpack.c.b16 %v1719, %v1719
      %v1728 = vpack.c.b16 %v1720, %v1720
      %v1729 = vpack.c.b16 %v1721, %v1721
      %v1730 = vpack.c.b16 %v1722, %v1722
      %v1731 = vpack.c.b16 %v1723, %v1723
      %v1732 = vpack.c.b16 %v1724, %v1724
      %1741 = vst [vmem:[%s204] sm:$0xf] %v1725
      %1742 = vst [vmem:[%s204 + $0x4] sm:$0xf] %v1726
      %1743 = vst [vmem:[%s204 + $0x8] sm:$0xf] %v1727
      %1744 = vst [vmem:[%s204 + $0xc] sm:$0xf] %v1728
      %1745 = vst [vmem:[%s204 + $0x10] sm:$0xf] %v1729
      %1746 = vst [vmem:[%s204 + $0x14] sm:$0xf] %v1730
      %1747 = vst [vmem:[%s204 + $0x18] sm:$0xf] %v1731
      %1748 = vst [vmem:[%s204 + $0x1c] sm:$0xf] %v1732
      %v1749 = vadd.f32 %v1701, %v1702
      %v1750 = vadd.f32 %v1749, %v1703
      %v1751 = vadd.f32 %v1750, %v1704
      %v1752 = vadd.f32 %v1751, %v1705
      %v1753 = vadd.f32 %v1752, %v1706
      %v1754 = vadd.f32 %v1753, %v1707
      %v1755 = vadd.f32 %v1754, %v1708
      %v1756 = vrot.slane %v1755, 4
      %v1757 = vadd.f32 %v1755, %v1756
      %v1758 = vrot.slane %v1757, 2
      %v1759 = vadd.f32 %v1757, %v1758
      %v1760 = vrot.slane %v1759, 1
      %v1761 = vadd.f32 %v1759, %v1760
      %v1762 = vmul.f32 %v1761, 0.015625
      %1763 = vst [vmem:[%s208] sm:$0x1] %v1762
      %v1764 = vsub.f32 %v1701, %v1762
      %v1765 = vsub.f32 %v1702, %v1762
      %v1766 = vsub.f32 %v1703, %v1762
      %v1767 = vsub.f32 %v1704, %v1762
      %v1768 = vsub.f32 %v1705, %v1762
      %v1769 = vsub.f32 %v1706, %v1762
      %v1770 = vsub.f32 %v1707, %v1762
      %v1771 = vsub.f32 %v1708, %v1762
      %v1772 = vmul.f32 %v1764, %v1764
      %v1773 = vmul.f32 %v1765, %v1765
      %v1774 = vmul.f32 %v1766, %v1766
      %v1775 = vmul.f32 %v1767, %v1767
      %v1776 = vmul.f32 %v1768, %v1768
      %v1777 = vmul.f32 %v1769, %v1769
      %v1778 = vmul.f32 %v1770, %v1770
      %v1779 = vmul.f32 %v1771, %v1771
      %v1780 = vadd.f32 %v1772, %v1773
      %v1781 = vadd.f32 %v1780, %v1774
      %v1782 = vadd.f32 %v1781, %v1775
      %v1783 = vadd.f32 %v1782, %v1776
      %v1784 = vadd.f32 %v1783, %v1777
      %v1785 = vadd.f32 %v1784, %v1778
      %v1786 = vadd.f32 %v1785, %v1779
      %v1787 = vrot.slane %v1786, 4
      %v1788 = vadd.f32 %v1786, %v1787
      %v1789 = vrot.slane %v1788, 2
      %v1790 = vadd.f32 %v1788, %v1789
      %v1791 = vrot.slane %v1790, 1
      %v1792 = vadd.f32 %v1790, %v1791
      %1793 = vst [vmem:[%s208 + $0x1] sm:$0x1] %v1792
      %p1794 = scmp.lt.s32.totalorder %s16, 1
      %s1795 = scalar_select %p1794, %s16, 1
      %s1796 = smul.addr %s1795, 8
      %s1797 = smul.addr %s1796, 4
      %s1798 = scalar_lea.vmem %s3, %s1797
      %p1799 = scmp.lt.s32.totalorder %s16, 1
      %s1800 = scalar_select %p1799, %s16, 1
      %s1801 = smul.addr %s1800, 2
      %s1802 = scalar_lea.vmem %s4, %s1801
      // Predicated region
      $region33: #{res_block_type2.4} parent=31 // pred_check
        %p1803 = pneg %p102
      $region34: #{res_block_type2.4} parent=31 // pred_check_branch
        %1805 = sbr.rel (%p1803) target = $region36
      $region35: #{res_block_type2.4} parent=31 // pred_region
        _
      $region36: #{res_block_type2.4} parent=31 // pred_fallthru
        _
      // Predicated region
      $region37: #{res_block_type2.4} parent=31 // pred_check
        %p1806 = pneg %p128
      $region38: #{res_block_type2.4} parent=31 // pred_check_branch
        %1808 = sbr.rel (%p1806) target = $region40
      $region39: #{res_block_type2.4} parent=31 // pred_region
        _
      $region40: #{res_block_type2.4} parent=31 // pred_fallthru
        _
    $region32: #{res_block_type2.4} parent=5 // pred_fallthru
      _
    %p1809 = scmp.le.s32.totalorder 2, %s11
    // Predicated region
    $region41: #{res_block_type2.4} parent=5 // pred_check
      %p1810 = pneg %p1809
    $region42: #{res_block_type2.4} parent=5 // pred_check_branch
      %1812 = sbr.rel (%p1810) target = $region44
    $region43: #{res_block_type2.4} parent=5 // pred_region
      %s1813 = ssub.s32 %s11, 2
      // Predicated region
      $region45: #{res_block_type2.4} parent=43 // pred_check
        %p1814 = pneg %p108
      $region46: #{res_block_type2.4} parent=43 // pred_check_branch
        %1816 = sbr.rel (%p1814) target = $region48
      $region47: #{res_block_type2.4} parent=43 // pred_region
        %p1817 = scmp.lt.s32.totalorder %s17, 1
        %s1818 = scalar_select %p1817, %s17, 1
        %s1819 = smul.addr %s1818, 8
        %s1820 = smul.addr %s1819, 4
        %s1821 = scalar_lea.vmem %s3, %s1820
      $region48: #{res_block_type2.4} parent=43 // pred_fallthru
        _
      // Predicated region
      $region49: #{res_block_type2.4} parent=43 // pred_check
        %p1822 = pneg %p134
      $region50: #{res_block_type2.4} parent=43 // pred_check_branch
        %1824 = sbr.rel (%p1822) target = $region52
      $region51: #{res_block_type2.4} parent=43 // pred_region
        %p1825 = scmp.lt.s32.totalorder %s17, 1
        %s1826 = scalar_select %p1825, %s17, 1
        %s1827 = smul.addr %s1826, 2
        %s1828 = scalar_lea.vmem %s4, %s1827
      $region52: #{res_block_type2.4} parent=43 // pred_fallthru
        _
    $region44: #{res_block_type2.4} parent=5 // pred_fallthru
      _
  $region6: #{res_block_type2.4} parent=0 // loop_footer
    %s15 = sadd.s32 1, %s11
  $region7: #{res_block_type2.4} parent=0 // loop_footer_branch
    %10 = sbr.rel target = $region3
  $region8: #{res_block_type2.4} parent=0 // loop_exit
    _

</llo_original>
